<compile_context>
chip_gen: v7x
topology: tpu7x:2x2x1
jax: 0.10.0
libtpu: 0.0.40
codegen_flags: <defaults>
</compile_context>

<pallas_src>
import numpy as np

import jax
import jax.numpy as jnp
from jax.experimental import pallas as pl
from jax.experimental.pallas import tpu as pltpu


# --------------------------------------------------------------------------
# Host-side parameter packing: fold conv/convT/maxpool geometry + weights into
# small constant matrices so the kernel only does 2-D matmuls.
# Layout convention for activations: X[h, w*C + c]  (channels-last, flattened W*C).
# --------------------------------------------------------------------------
def _conv2d_mats(w, b, hin, win, stride, padding):
    """Conv2d (PyTorch weight layout (Cout, Cin, kh, kw)).

    Returns A (kh, OH, Hin), M (kh, Win*Cin, OW*Cout), bias_row (1, OW*Cout), OH, OW
    such that  out = sum_i (A[i] @ X) @ M[i] + bias_row  equals the conv output
    in flattened (OH, OW*Cout) layout (zero padding folded into A/M).
    """
    cout, cin, kh, kw = w.shape
    oh = (hin + 2 * padding - kh) // stride + 1
    ow = (win + 2 * padding - kw) // stride + 1
    A = np.zeros((kh, oh, hin), np.float32)
    M = np.zeros((kh, win * cin, ow * cout), np.float32)
    for i in range(kh):
        for r in range(oh):
            h = stride * r + i - padding
            if 0 <= h < hin:
                A[i, r, h] = 1.0
        for c in range(ow):
            for j in range(kw):
                wi = stride * c + j - padding
                if 0 <= wi < win:
                    # M[i, wi*Cin + ci, c*Cout + co] = w[co, ci, i, j]
                    M[i, wi * cin:(wi + 1) * cin, c * cout:(c + 1) * cout] = w[:, :, i, j].T
    brow = np.tile(np.asarray(b, np.float32), ow)[None, :]
    return A, M, brow, oh, ow


def _convT2d_mats(w, b, hin, win, stride, padding):
    """ConvTranspose2d (PyTorch weight layout (Cin, Cout, kh, kw)).

    Direct formulation: out[oh, ow, co] = sum_{hi,wi,ci} X[hi,wi,ci] *
    w[ci, co, oh+p-s*hi, ow+p-s*wi] (kernel indices in range).  Same
    (A_i, M_i) structure as a regular conv -- no dilated buffer is ever built.
    """
    cin, cout, kh, kw = w.shape
    oh = (hin - 1) * stride - 2 * padding + kh
    ow = (win - 1) * stride - 2 * padding + kw
    A = np.zeros((kh, oh, hin), np.float32)
    M = np.zeros((kh, win * cin, ow * cout), np.float32)
    for i in range(kh):
        for r in range(oh):
            t = r + padding - i
            if t >= 0 and t % stride == 0 and (t // stride) < hin:
                A[i, r, t // stride] = 1.0
        for c in range(ow):
            for wi in range(win):
                j = c + padding - stride * wi
                if 0 <= j < kw:
                    # M[i, wi*Cin + ci, c*Cout + co] = w[ci, co, i, j]
                    M[i, wi * cin:(wi + 1) * cin, c * cout:(c + 1) * cout] = w[:, :, i, j]
    brow = np.tile(np.asarray(b, np.float32), ow)[None, :]
    return A, M, brow, oh, ow


def _maxpool_mats(hin, win, ch, stride):
    """MaxPool2d(kernel_size=2, stride=stride) as 0/1 row-gather (P) and
    column-gather (S) selection matrices: out = max_{dh,dw} (P[dh] @ X) @ S[dw]."""
    oh = (hin - 2) // stride + 1
    ow = (win - 2) // stride + 1
    P = np.zeros((2, oh, hin), np.float32)
    S = np.zeros((2, win * ch, ow * ch), np.float32)
    eye = np.eye(ch, dtype=np.float32)
    for d in range(2):
        for r in range(oh):
            P[d, r, stride * r + d] = 1.0
        for c in range(ow):
            wi = stride * c + d
            S[d, wi * ch:(wi + 1) * ch, c * ch:(c + 1) * ch] = eye
    return P, S, oh, ow


def _fuse_conv_pool(A, M, brow, P, S):
    """Fold a 2x2 MaxPool into the preceding conv.  P/S are 0/1 selection
    matrices (one 1 per row / per column), which commute with ReLU, so
      maxpool(relu(conv(x)))
        == max_{dh,dw} relu( sum_i (P[dh]A[i]) @ X @ (M[i]S[dw]) + brow @ S[dw] ).
    Returns Af (2*kh, OH', Hin), Mf (2*kh, Win*Cin, OW'*Cout), bf (2, 1, OW'*Cout)
    indexed as Af[dh*kh+i], Mf[dw*kh+i], bf[dw].
    """
    kh = A.shape[0]
    Af = np.stack([P[dh] @ A[i] for dh in range(2) for i in range(kh)]).astype(np.float32)
    Mf = np.stack([M[i] @ S[dw] for dw in range(2) for i in range(kh)]).astype(np.float32)
    bf = np.stack([brow @ S[dw] for dw in range(2)]).astype(np.float32)
    return Af, Mf, bf


def prepare_packed_params(params, h, w):
    """Runs once on the host: fold PyTorch-layout weights (and the maxpools)
    into the constant gather/weight matrices consumed by the fused kernel."""
    np_ = lambda k: np.asarray(params[k], np.float32)
    packed = []

    # encoder stage 1: Conv2d(1,16,3,s=3,p=1) + ReLU + MaxPool2d(2,s=2)   (fused)
    A, M, B, h, w = _conv2d_mats(np_("enc1_w"), np_("enc1_b"), h, w, stride=3, padding=1)
    P, S, h, w = _maxpool_mats(h, w, ch=16, stride=2)
    packed += list(_fuse_conv_pool(A, M, B, P, S))

    # encoder stage 2: Conv2d(16,8,3,s=2,p=1) + ReLU + MaxPool2d(2,s=1)   (fused)
    A, M, B, h, w = _conv2d_mats(np_("enc2_w"), np_("enc2_b"), h, w, stride=2, padding=1)
    P, S, h, w = _maxpool_mats(h, w, ch=8, stride=1)
    packed += list(_fuse_conv_pool(A, M, B, P, S))

    # decoder: ConvTranspose2d(8,16,3,s=2) / (16,8,5,s=3,p=1) / (8,1,2,s=2,p=1)
    A, M, B, h, w = _convT2d_mats(np_("dec1_w"), np_("dec1_b"), h, w, stride=2, padding=0)
    packed += [A, M, B]
    A, M, B, h, w = _convT2d_mats(np_("dec2_w"), np_("dec2_b"), h, w, stride=3, padding=1)
    packed += [A, M, B]
    A, M, B, h, w = _convT2d_mats(np_("dec3_w"), np_("dec3_b"), h, w, stride=2, padding=1)
    packed += [A, M, B]

    return tuple(jnp.asarray(p) for p in packed), (h, w)


# --------------------------------------------------------------------------
# The single fused Pallas kernel: whole autoencoder forward for one image.
# --------------------------------------------------------------------------
def _fused_autoencoder_kernel(
        x_ref,
        a1, m1, b1,                    # enc conv1 + pool1 (folded)
        a2, m2, b2,                    # enc conv2 + pool2 (folded)
        a3, m3, b3,                    # dec convT1
        a4, m4, b4,                    # dec convT2
        a5, m5, b5,                    # dec convT3
        o_ref):
    f32 = jnp.float32

    def conv(x, a_ref, m_ref, b_ref, act):
        acc = b_ref[...]                                     # (1, OW*Cout) broadcast
        for i in range(a_ref.shape[0]):                      # kernel rows, unrolled (<=5)
            rows = jnp.dot(a_ref[i], x, preferred_element_type=f32)
            acc = acc + jnp.dot(rows, m_ref[i], preferred_element_type=f32)
        if act == "relu":
            return jnp.maximum(acc, 0.0)                     # VPU
        return jnp.tanh(acc)                                 # EUP, fused epilogue

    def conv_pool(x, a_ref, m_ref, b_ref):
        # Fused Conv2d + ReLU + MaxPool2d(2): max over the 4 (dh, dw) taps of a
        # ReLU'd pooled-size conv.  Row-gathers are shared across dw.
        kh = a_ref.shape[0] // 2
        out = None
        for dh in range(2):
            rows = [jnp.dot(a_ref[dh * kh + i], x, preferred_element_type=f32)
                    for i in range(kh)]
            for dw in range(2):
                acc = b_ref[dw]                              # (1, OW'*Cout)
                for i in range(kh):
                    acc = acc + jnp.dot(rows[i], m_ref[dw * kh + i],
                                        preferred_element_type=f32)
                v = jnp.maximum(acc, 0.0)                    # ReLU before the pool-max
                out = v if out is None else jnp.maximum(out, v)
        return out

    x = x_ref[0, 0].astype(f32)          # (28, 28)  == (H, W*Cin) with Cin == 1
    x = conv_pool(x, a1, m1, b1)         # (5,  80)   conv1+relu+pool1
    x = conv_pool(x, a2, m2, b2)         # (2,  16)   conv2+relu+pool2
    x = conv(x, a3, m3, b3, "relu")      # (5,  80)
    x = conv(x, a4, m4, b4, "relu")      # (15, 120)
    x = conv(x, a5, m5, b5, "tanh")      # (28, 28)
    o_ref[0, 0] = x.astype(o_ref.dtype)


# --------------------------------------------------------------------------
# Forward pass (mirrors autoencoder.forward) -- one pallas_call total.
# --------------------------------------------------------------------------
@jax.jit
def autoencoder_forward(packed, x):
    """x: (B, 1, H, W) NCHW float32."""
    b, _, h, w = x.shape
    oh = packed[-3].shape[1]             # last layer's A: (kh, Hout, Hin)
    ow = packed[-2].shape[2]             # last layer's M: (kh, ., Wout*Cout), Cout=1

    in_specs = [pl.BlockSpec((1, 1, h, w), lambda i: (i, 0, 0, 0))]
    # Full-array blocks for all packed constants (constant index_map -> stays
    # resident in VMEM across the whole grid; no manual (8,128) padding).
    in_specs += [pl.BlockSpec(p.shape, lambda i, n=p.ndim: (0,) * n) for p in packed]

    out = pl.pallas_call(
        _fused_autoencoder_kernel,
        out_shape=jax.ShapeDtypeStruct((b, 1, oh, ow), jnp.float32),
        grid=(b,),
        in_specs=in_specs,
        out_specs=pl.BlockSpec((1, 1, oh, ow), lambda i: (i, 0, 0, 0)),
        compiler_params=pltpu.CompilerParams(
            dimension_semantics=("parallel",),   # batch across v7x's 2 TensorCores
        ),
    )(x.astype(jnp.float32), *packed)
    return out


# --------------------------------------------------------------------------
# Parameters (deterministic, PyTorch-default-style uniform init)
# --------------------------------------------------------------------------
def init_params(key):
    keys = jax.random.split(key, 10)

    def u(k, shape, fan_in):
        bound = 1.0 / np.sqrt(float(fan_in))
        return jax.random.uniform(k, shape, jnp.float32, -bound, bound)

    return {
        # encoder: Conv2d weight layout (Cout, Cin, kh, kw)
        "enc1_w": u(keys[0], (16, 1, 3, 3), 1 * 3 * 3),
        "enc1_b": u(keys[1], (16,), 1 * 3 * 3),
        "enc2_w": u(keys[2], (8, 16, 3, 3), 16 * 3 * 3),
        "enc2_b": u(keys[3], (8,), 16 * 3 * 3),
        # decoder: ConvTranspose2d weight layout (Cin, Cout, kh, kw)
        "dec1_w": u(keys[4], (8, 16, 3, 3), 16 * 3 * 3),
        "dec1_b": u(keys[5], (16,), 16 * 3 * 3),
        "dec2_w": u(keys[6], (16, 8, 5, 5), 8 * 5 * 5),
        "dec2_b": u(keys[7], (8,), 8 * 5 * 5),
        "dec3_w": u(keys[8], (8, 1, 2, 2), 1 * 2 * 2),
        "dec3_b": u(keys[9], (1,), 1 * 2 * 2),
    }


if __name__ == "__main__":
    key = jax.random.PRNGKey(0)
    k_param, k_x = jax.random.split(key)
    params = init_params(k_param)

    H = W = 28  # MNIST-style input implied by the module
    packed, out_hw = prepare_packed_params(params, H, W)

    x = jax.random.normal(k_x, (2, 1, H, W), jnp.float32)

    out = autoencoder_forward(packed, x)
    out = jax.block_until_ready(out)

    assert out.shape == (2, 1, out_hw[0], out_hw[1]), out.shape
    assert out.shape == (2, 1, 28, 28), out.shape
    assert bool(jnp.all(jnp.isfinite(out)))
    assert bool(jnp.all(jnp.abs(out) <= 1.0 + 1e-6))   # tanh output range
    print("KERNEL_OK")
</pallas_src>

<mosaic_0001>
module attributes {stable_mosaic.version = 11 : i64} {
  func.func @_fused_autoencoder_kernel(%arg0: i32, %arg1: memref<1x1x28x28xf32, #tpu.memory_space<vmem>>, %arg2: memref<6x5x28xf32, #tpu.memory_space<vmem>>, %arg3: memref<6x28x80xf32, #tpu.memory_space<vmem>>, %arg4: memref<2x1x80xf32, #tpu.memory_space<vmem>>, %arg5: memref<6x2x5xf32, #tpu.memory_space<vmem>>, %arg6: memref<6x80x16xf32, #tpu.memory_space<vmem>>, %arg7: memref<2x1x16xf32, #tpu.memory_space<vmem>>, %arg8: memref<3x5x2xf32, #tpu.memory_space<vmem>>, %arg9: memref<3x16x80xf32, #tpu.memory_space<vmem>>, %arg10: memref<1x80xf32, #tpu.memory_space<vmem>>, %arg11: memref<5x15x5xf32, #tpu.memory_space<vmem>>, %arg12: memref<5x80x120xf32, #tpu.memory_space<vmem>>, %arg13: memref<1x120xf32, #tpu.memory_space<vmem>>, %arg14: memref<2x28x15xf32, #tpu.memory_space<vmem>>, %arg15: memref<2x120x28xf32, #tpu.memory_space<vmem>>, %arg16: memref<1x28xf32, #tpu.memory_space<vmem>>, %arg17: memref<1x1x28x28xf32, #tpu.memory_space<vmem>>) attributes {dimension_semantics = [#tpu.dimension_semantics<parallel>], iteration_bounds = array<i64: 2>, scalar_prefetch = 0 : i64, scratch_operands = 0 : i64, tpu.core_type = #tpu.core_type<tc>, window_params = [{transform_indices = @transform_0, window_bounds = array<i64: 1, 1, 28, 28>}, {pipeline_mode = #tpu.pipeline_mode<synchronous>, transform_indices = @transform_1, window_bounds = array<i64: 6, 5, 28>}, {pipeline_mode = #tpu.pipeline_mode<synchronous>, transform_indices = @transform_2, window_bounds = array<i64: 6, 28, 80>}, {pipeline_mode = #tpu.pipeline_mode<synchronous>, transform_indices = @transform_3, window_bounds = array<i64: 2, 1, 80>}, {pipeline_mode = #tpu.pipeline_mode<synchronous>, transform_indices = @transform_4, window_bounds = array<i64: 6, 2, 5>}, {pipeline_mode = #tpu.pipeline_mode<synchronous>, transform_indices = @transform_5, window_bounds = array<i64: 6, 80, 16>}, {pipeline_mode = #tpu.pipeline_mode<synchronous>, transform_indices = @transform_6, window_bounds = array<i64: 2, 1, 16>}, {pipeline_mode = #tpu.pipeline_mode<synchronous>, transform_indices = @transform_7, window_bounds = array<i64: 3, 5, 2>}, {pipeline_mode = #tpu.pipeline_mode<synchronous>, transform_indices = @transform_8, window_bounds = array<i64: 3, 16, 80>}, {pipeline_mode = #tpu.pipeline_mode<synchronous>, transform_indices = @transform_9, window_bounds = array<i64: 1, 80>}, {pipeline_mode = #tpu.pipeline_mode<synchronous>, transform_indices = @transform_10, window_bounds = array<i64: 5, 15, 5>}, {pipeline_mode = #tpu.pipeline_mode<synchronous>, transform_indices = @transform_11, window_bounds = array<i64: 5, 80, 120>}, {pipeline_mode = #tpu.pipeline_mode<synchronous>, transform_indices = @transform_12, window_bounds = array<i64: 1, 120>}, {pipeline_mode = #tpu.pipeline_mode<synchronous>, transform_indices = @transform_13, window_bounds = array<i64: 2, 28, 15>}, {pipeline_mode = #tpu.pipeline_mode<synchronous>, transform_indices = @transform_14, window_bounds = array<i64: 2, 120, 28>}, {pipeline_mode = #tpu.pipeline_mode<synchronous>, transform_indices = @transform_15, window_bounds = array<i64: 1, 28>}, {transform_indices = @transform_16, window_bounds = array<i64: 1, 1, 28, 28>}]} {
    %c0 = arith.constant 0 : index
    %c0_0 = arith.constant 0 : index
    %c0_1 = arith.constant 0 : index
    %c0_2 = arith.constant 0 : index
    %0 = vector.load %arg1[%c0, %c0_0, %c0_1, %c0_2] : memref<1x1x28x28xf32, #tpu.memory_space<vmem>>, vector<1x1x28x28xf32>
    %1 = vector.shape_cast %0 : vector<1x1x28x28xf32> to vector<28x28xf32>
    %c0_3 = arith.constant 0 : index
    %c0_4 = arith.constant 0 : index
    %c0_5 = arith.constant 0 : index
    %2 = vector.load %arg2[%c0_3, %c0_4, %c0_5] : memref<6x5x28xf32, #tpu.memory_space<vmem>>, vector<1x5x28xf32>
    %3 = vector.shape_cast %2 : vector<1x5x28xf32> to vector<5x28xf32>
    %cst = arith.constant dense<0.000000e+00> : vector<5x28xf32>
    %4 = tpu.matmul %3, %1, %cst {dimension_numbers = #tpu.dot_dimension_numbers<[1], [0], [0], [1], [0, 0, 1, 1], [], []>} : vector<5x28xf32>, vector<28x28xf32>, vector<5x28xf32> -> vector<5x28xf32>
    %c1 = arith.constant 1 : index
    %c0_6 = arith.constant 0 : index
    %c0_7 = arith.constant 0 : index
    %5 = vector.load %arg2[%c1, %c0_6, %c0_7] : memref<6x5x28xf32, #tpu.memory_space<vmem>>, vector<1x5x28xf32>
    %6 = vector.shape_cast %5 : vector<1x5x28xf32> to vector<5x28xf32>
    %cst_8 = arith.constant dense<0.000000e+00> : vector<5x28xf32>
    %7 = tpu.matmul %6, %1, %cst_8 {dimension_numbers = #tpu.dot_dimension_numbers<[1], [0], [0], [1], [0, 0, 1, 1], [], []>} : vector<5x28xf32>, vector<28x28xf32>, vector<5x28xf32> -> vector<5x28xf32>
    %c2 = arith.constant 2 : index
    %c0_9 = arith.constant 0 : index
    %c0_10 = arith.constant 0 : index
    %8 = vector.load %arg2[%c2, %c0_9, %c0_10] : memref<6x5x28xf32, #tpu.memory_space<vmem>>, vector<1x5x28xf32>
    %9 = vector.shape_cast %8 : vector<1x5x28xf32> to vector<5x28xf32>
    %cst_11 = arith.constant dense<0.000000e+00> : vector<5x28xf32>
    %10 = tpu.matmul %9, %1, %cst_11 {dimension_numbers = #tpu.dot_dimension_numbers<[1], [0], [0], [1], [0, 0, 1, 1], [], []>} : vector<5x28xf32>, vector<28x28xf32>, vector<5x28xf32> -> vector<5x28xf32>
    %c0_12 = arith.constant 0 : index
    %c0_13 = arith.constant 0 : index
    %c0_14 = arith.constant 0 : index
    %11 = vector.load %arg4[%c0_12, %c0_13, %c0_14] : memref<2x1x80xf32, #tpu.memory_space<vmem>>, vector<1x1x80xf32>
    %12 = vector.shape_cast %11 : vector<1x1x80xf32> to vector<1x80xf32>
    %c0_15 = arith.constant 0 : index
    %c0_16 = arith.constant 0 : index
    %c0_17 = arith.constant 0 : index
    %13 = vector.load %arg3[%c0_15, %c0_16, %c0_17] : memref<6x28x80xf32, #tpu.memory_space<vmem>>, vector<1x28x80xf32>
    %14 = vector.shape_cast %13 : vector<1x28x80xf32> to vector<28x80xf32>
    %cst_18 = arith.constant dense<0.000000e+00> : vector<5x80xf32>
    %15 = tpu.matmul %4, %14, %cst_18 {dimension_numbers = #tpu.dot_dimension_numbers<[1], [0], [0], [1], [0, 0, 1, 1], [], []>} : vector<5x28xf32>, vector<28x80xf32>, vector<5x80xf32> -> vector<5x80xf32>
    %16 = vector.broadcast %12 : vector<1x80xf32> to vector<5x80xf32>
    %17 = arith.addf %16, %15 : vector<5x80xf32>
    %c1_19 = arith.constant 1 : index
    %c0_20 = arith.constant 0 : index
    %c0_21 = arith.constant 0 : index
    %18 = vector.load %arg3[%c1_19, %c0_20, %c0_21] : memref<6x28x80xf32, #tpu.memory_space<vmem>>, vector<1x28x80xf32>
    %19 = vector.shape_cast %18 : vector<1x28x80xf32> to vector<28x80xf32>
    %cst_22 = arith.constant dense<0.000000e+00> : vector<5x80xf32>
    %20 = tpu.matmul %7, %19, %cst_22 {dimension_numbers = #tpu.dot_dimension_numbers<[1], [0], [0], [1], [0, 0, 1, 1], [], []>} : vector<5x28xf32>, vector<28x80xf32>, vector<5x80xf32> -> vector<5x80xf32>
    %21 = arith.addf %17, %20 : vector<5x80xf32>
    %c2_23 = arith.constant 2 : index
    %c0_24 = arith.constant 0 : index
    %c0_25 = arith.constant 0 : index
    %22 = vector.load %arg3[%c2_23, %c0_24, %c0_25] : memref<6x28x80xf32, #tpu.memory_space<vmem>>, vector<1x28x80xf32>
    %23 = vector.shape_cast %22 : vector<1x28x80xf32> to vector<28x80xf32>
    %cst_26 = arith.constant dense<0.000000e+00> : vector<5x80xf32>
    %24 = tpu.matmul %10, %23, %cst_26 {dimension_numbers = #tpu.dot_dimension_numbers<[1], [0], [0], [1], [0, 0, 1, 1], [], []>} : vector<5x28xf32>, vector<28x80xf32>, vector<5x80xf32> -> vector<5x80xf32>
    %25 = arith.addf %21, %24 : vector<5x80xf32>
    %cst_27 = arith.constant 0.000000e+00 : f32
    %26 = vector.broadcast %cst_27 : f32 to vector<5x80xf32>
    %27 = arith.maximumf %25, %26 : vector<5x80xf32>
    %c1_28 = arith.constant 1 : index
    %c0_29 = arith.constant 0 : index
    %c0_30 = arith.constant 0 : index
    %28 = vector.load %arg4[%c1_28, %c0_29, %c0_30] : memref<2x1x80xf32, #tpu.memory_space<vmem>>, vector<1x1x80xf32>
    %29 = vector.shape_cast %28 : vector<1x1x80xf32> to vector<1x80xf32>
    %c3 = arith.constant 3 : index
    %c0_31 = arith.constant 0 : index
    %c0_32 = arith.constant 0 : index
    %30 = vector.load %arg3[%c3, %c0_31, %c0_32] : memref<6x28x80xf32, #tpu.memory_space<vmem>>, vector<1x28x80xf32>
    %31 = vector.shape_cast %30 : vector<1x28x80xf32> to vector<28x80xf32>
    %cst_33 = arith.constant dense<0.000000e+00> : vector<5x80xf32>
    %32 = tpu.matmul %4, %31, %cst_33 {dimension_numbers = #tpu.dot_dimension_numbers<[1], [0], [0], [1], [0, 0, 1, 1], [], []>} : vector<5x28xf32>, vector<28x80xf32>, vector<5x80xf32> -> vector<5x80xf32>
    %33 = vector.broadcast %29 : vector<1x80xf32> to vector<5x80xf32>
    %34 = arith.addf %33, %32 : vector<5x80xf32>
    %c4 = arith.constant 4 : index
    %c0_34 = arith.constant 0 : index
    %c0_35 = arith.constant 0 : index
    %35 = vector.load %arg3[%c4, %c0_34, %c0_35] : memref<6x28x80xf32, #tpu.memory_space<vmem>>, vector<1x28x80xf32>
    %36 = vector.shape_cast %35 : vector<1x28x80xf32> to vector<28x80xf32>
    %cst_36 = arith.constant dense<0.000000e+00> : vector<5x80xf32>
    %37 = tpu.matmul %7, %36, %cst_36 {dimension_numbers = #tpu.dot_dimension_numbers<[1], [0], [0], [1], [0, 0, 1, 1], [], []>} : vector<5x28xf32>, vector<28x80xf32>, vector<5x80xf32> -> vector<5x80xf32>
    %38 = arith.addf %34, %37 : vector<5x80xf32>
    %c5 = arith.constant 5 : index
    %c0_37 = arith.constant 0 : index
    %c0_38 = arith.constant 0 : index
    %39 = vector.load %arg3[%c5, %c0_37, %c0_38] : memref<6x28x80xf32, #tpu.memory_space<vmem>>, vector<1x28x80xf32>
    %40 = vector.shape_cast %39 : vector<1x28x80xf32> to vector<28x80xf32>
    %cst_39 = arith.constant dense<0.000000e+00> : vector<5x80xf32>
    %41 = tpu.matmul %10, %40, %cst_39 {dimension_numbers = #tpu.dot_dimension_numbers<[1], [0], [0], [1], [0, 0, 1, 1], [], []>} : vector<5x28xf32>, vector<28x80xf32>, vector<5x80xf32> -> vector<5x80xf32>
    %42 = arith.addf %38, %41 : vector<5x80xf32>
    %cst_40 = arith.constant 0.000000e+00 : f32
    %43 = vector.broadcast %cst_40 : f32 to vector<5x80xf32>
    %44 = arith.maximumf %42, %43 : vector<5x80xf32>
    %45 = arith.maximumf %27, %44 : vector<5x80xf32>
    %c3_41 = arith.constant 3 : index
    %c0_42 = arith.constant 0 : index
    %c0_43 = arith.constant 0 : index
    %46 = vector.load %arg2[%c3_41, %c0_42, %c0_43] : memref<6x5x28xf32, #tpu.memory_space<vmem>>, vector<1x5x28xf32>
    %47 = vector.shape_cast %46 : vector<1x5x28xf32> to vector<5x28xf32>
    %cst_44 = arith.constant dense<0.000000e+00> : vector<5x28xf32>
    %48 = tpu.matmul %47, %1, %cst_44 {dimension_numbers = #tpu.dot_dimension_numbers<[1], [0], [0], [1], [0, 0, 1, 1], [], []>} : vector<5x28xf32>, vector<28x28xf32>, vector<5x28xf32> -> vector<5x28xf32>
    %c4_45 = arith.constant 4 : index
    %c0_46 = arith.constant 0 : index
    %c0_47 = arith.constant 0 : index
    %49 = vector.load %arg2[%c4_45, %c0_46, %c0_47] : memref<6x5x28xf32, #tpu.memory_space<vmem>>, vector<1x5x28xf32>
    %50 = vector.shape_cast %49 : vector<1x5x28xf32> to vector<5x28xf32>
    %cst_48 = arith.constant dense<0.000000e+00> : vector<5x28xf32>
    %51 = tpu.matmul %50, %1, %cst_48 {dimension_numbers = #tpu.dot_dimension_numbers<[1], [0], [0], [1], [0, 0, 1, 1], [], []>} : vector<5x28xf32>, vector<28x28xf32>, vector<5x28xf32> -> vector<5x28xf32>
    %c5_49 = arith.constant 5 : index
    %c0_50 = arith.constant 0 : index
    %c0_51 = arith.constant 0 : index
    %52 = vector.load %arg2[%c5_49, %c0_50, %c0_51] : memref<6x5x28xf32, #tpu.memory_space<vmem>>, vector<1x5x28xf32>
    %53 = vector.shape_cast %52 : vector<1x5x28xf32> to vector<5x28xf32>
    %cst_52 = arith.constant dense<0.000000e+00> : vector<5x28xf32>
    %54 = tpu.matmul %53, %1, %cst_52 {dimension_numbers = #tpu.dot_dimension_numbers<[1], [0], [0], [1], [0, 0, 1, 1], [], []>} : vector<5x28xf32>, vector<28x28xf32>, vector<5x28xf32> -> vector<5x28xf32>
    %c0_53 = arith.constant 0 : index
    %c0_54 = arith.constant 0 : index
    %c0_55 = arith.constant 0 : index
    %55 = vector.load %arg4[%c0_53, %c0_54, %c0_55] : memref<2x1x80xf32, #tpu.memory_space<vmem>>, vector<1x1x80xf32>
    %56 = vector.shape_cast %55 : vector<1x1x80xf32> to vector<1x80xf32>
    %c0_56 = arith.constant 0 : index
    %c0_57 = arith.constant 0 : index
    %c0_58 = arith.constant 0 : index
    %57 = vector.load %arg3[%c0_56, %c0_57, %c0_58] : memref<6x28x80xf32, #tpu.memory_space<vmem>>, vector<1x28x80xf32>
    %58 = vector.shape_cast %57 : vector<1x28x80xf32> to vector<28x80xf32>
    %cst_59 = arith.constant dense<0.000000e+00> : vector<5x80xf32>
    %59 = tpu.matmul %48, %58, %cst_59 {dimension_numbers = #tpu.dot_dimension_numbers<[1], [0], [0], [1], [0, 0, 1, 1], [], []>} : vector<5x28xf32>, vector<28x80xf32>, vector<5x80xf32> -> vector<5x80xf32>
    %60 = vector.broadcast %56 : vector<1x80xf32> to vector<5x80xf32>
    %61 = arith.addf %60, %59 : vector<5x80xf32>
    %c1_60 = arith.constant 1 : index
    %c0_61 = arith.constant 0 : index
    %c0_62 = arith.constant 0 : index
    %62 = vector.load %arg3[%c1_60, %c0_61, %c0_62] : memref<6x28x80xf32, #tpu.memory_space<vmem>>, vector<1x28x80xf32>
    %63 = vector.shape_cast %62 : vector<1x28x80xf32> to vector<28x80xf32>
    %cst_63 = arith.constant dense<0.000000e+00> : vector<5x80xf32>
    %64 = tpu.matmul %51, %63, %cst_63 {dimension_numbers = #tpu.dot_dimension_numbers<[1], [0], [0], [1], [0, 0, 1, 1], [], []>} : vector<5x28xf32>, vector<28x80xf32>, vector<5x80xf32> -> vector<5x80xf32>
    %65 = arith.addf %61, %64 : vector<5x80xf32>
    %c2_64 = arith.constant 2 : index
    %c0_65 = arith.constant 0 : index
    %c0_66 = arith.constant 0 : index
    %66 = vector.load %arg3[%c2_64, %c0_65, %c0_66] : memref<6x28x80xf32, #tpu.memory_space<vmem>>, vector<1x28x80xf32>
    %67 = vector.shape_cast %66 : vector<1x28x80xf32> to vector<28x80xf32>
    %cst_67 = arith.constant dense<0.000000e+00> : vector<5x80xf32>
    %68 = tpu.matmul %54, %67, %cst_67 {dimension_numbers = #tpu.dot_dimension_numbers<[1], [0], [0], [1], [0, 0, 1, 1], [], []>} : vector<5x28xf32>, vector<28x80xf32>, vector<5x80xf32> -> vector<5x80xf32>
    %69 = arith.addf %65, %68 : vector<5x80xf32>
    %cst_68 = arith.constant 0.000000e+00 : f32
    %70 = vector.broadcast %cst_68 : f32 to vector<5x80xf32>
    %71 = arith.maximumf %69, %70 : vector<5x80xf32>
    %72 = arith.maximumf %45, %71 : vector<5x80xf32>
    %c1_69 = arith.constant 1 : index
    %c0_70 = arith.constant 0 : index
    %c0_71 = arith.constant 0 : index
    %73 = vector.load %arg4[%c1_69, %c0_70, %c0_71] : memref<2x1x80xf32, #tpu.memory_space<vmem>>, vector<1x1x80xf32>
    %74 = vector.shape_cast %73 : vector<1x1x80xf32> to vector<1x80xf32>
    %c3_72 = arith.constant 3 : index
    %c0_73 = arith.constant 0 : index
    %c0_74 = arith.constant 0 : index
    %75 = vector.load %arg3[%c3_72, %c0_73, %c0_74] : memref<6x28x80xf32, #tpu.memory_space<vmem>>, vector<1x28x80xf32>
    %76 = vector.shape_cast %75 : vector<1x28x80xf32> to vector<28x80xf32>
    %cst_75 = arith.constant dense<0.000000e+00> : vector<5x80xf32>
    %77 = tpu.matmul %48, %76, %cst_75 {dimension_numbers = #tpu.dot_dimension_numbers<[1], [0], [0], [1], [0, 0, 1, 1], [], []>} : vector<5x28xf32>, vector<28x80xf32>, vector<5x80xf32> -> vector<5x80xf32>
    %78 = vector.broadcast %74 : vector<1x80xf32> to vector<5x80xf32>
    %79 = arith.addf %78, %77 : vector<5x80xf32>
    %c4_76 = arith.constant 4 : index
    %c0_77 = arith.constant 0 : index
    %c0_78 = arith.constant 0 : index
    %80 = vector.load %arg3[%c4_76, %c0_77, %c0_78] : memref<6x28x80xf32, #tpu.memory_space<vmem>>, vector<1x28x80xf32>
    %81 = vector.shape_cast %80 : vector<1x28x80xf32> to vector<28x80xf32>
    %cst_79 = arith.constant dense<0.000000e+00> : vector<5x80xf32>
    %82 = tpu.matmul %51, %81, %cst_79 {dimension_numbers = #tpu.dot_dimension_numbers<[1], [0], [0], [1], [0, 0, 1, 1], [], []>} : vector<5x28xf32>, vector<28x80xf32>, vector<5x80xf32> -> vector<5x80xf32>
    %83 = arith.addf %79, %82 : vector<5x80xf32>
    %c5_80 = arith.constant 5 : index
    %c0_81 = arith.constant 0 : index
    %c0_82 = arith.constant 0 : index
    %84 = vector.load %arg3[%c5_80, %c0_81, %c0_82] : memref<6x28x80xf32, #tpu.memory_space<vmem>>, vector<1x28x80xf32>
    %85 = vector.shape_cast %84 : vector<1x28x80xf32> to vector<28x80xf32>
    %cst_83 = arith.constant dense<0.000000e+00> : vector<5x80xf32>
    %86 = tpu.matmul %54, %85, %cst_83 {dimension_numbers = #tpu.dot_dimension_numbers<[1], [0], [0], [1], [0, 0, 1, 1], [], []>} : vector<5x28xf32>, vector<28x80xf32>, vector<5x80xf32> -> vector<5x80xf32>
    %87 = arith.addf %83, %86 : vector<5x80xf32>
    %cst_84 = arith.constant 0.000000e+00 : f32
    %88 = vector.broadcast %cst_84 : f32 to vector<5x80xf32>
    %89 = arith.maximumf %87, %88 : vector<5x80xf32>
    %90 = arith.maximumf %72, %89 : vector<5x80xf32>
    %c0_85 = arith.constant 0 : index
    %c0_86 = arith.constant 0 : index
    %c0_87 = arith.constant 0 : index
    %91 = vector.load %arg5[%c0_85, %c0_86, %c0_87] : memref<6x2x5xf32, #tpu.memory_space<vmem>>, vector<1x2x5xf32>
    %92 = vector.shape_cast %91 : vector<1x2x5xf32> to vector<2x5xf32>
    %cst_88 = arith.constant dense<0.000000e+00> : vector<2x80xf32>
    %93 = tpu.matmul %92, %90, %cst_88 {dimension_numbers = #tpu.dot_dimension_numbers<[1], [0], [0], [1], [0, 0, 1, 1], [], []>} : vector<2x5xf32>, vector<5x80xf32>, vector<2x80xf32> -> vector<2x80xf32>
    %c1_89 = arith.constant 1 : index
    %c0_90 = arith.constant 0 : index
    %c0_91 = arith.constant 0 : index
    %94 = vector.load %arg5[%c1_89, %c0_90, %c0_91] : memref<6x2x5xf32, #tpu.memory_space<vmem>>, vector<1x2x5xf32>
    %95 = vector.shape_cast %94 : vector<1x2x5xf32> to vector<2x5xf32>
    %cst_92 = arith.constant dense<0.000000e+00> : vector<2x80xf32>
    %96 = tpu.matmul %95, %90, %cst_92 {dimension_numbers = #tpu.dot_dimension_numbers<[1], [0], [0], [1], [0, 0, 1, 1], [], []>} : vector<2x5xf32>, vector<5x80xf32>, vector<2x80xf32> -> vector<2x80xf32>
    %c2_93 = arith.constant 2 : index
    %c0_94 = arith.constant 0 : index
    %c0_95 = arith.constant 0 : index
    %97 = vector.load %arg5[%c2_93, %c0_94, %c0_95] : memref<6x2x5xf32, #tpu.memory_space<vmem>>, vector<1x2x5xf32>
    %98 = vector.shape_cast %97 : vector<1x2x5xf32> to vector<2x5xf32>
    %cst_96 = arith.constant dense<0.000000e+00> : vector<2x80xf32>
    %99 = tpu.matmul %98, %90, %cst_96 {dimension_numbers = #tpu.dot_dimension_numbers<[1], [0], [0], [1], [0, 0, 1, 1], [], []>} : vector<2x5xf32>, vector<5x80xf32>, vector<2x80xf32> -> vector<2x80xf32>
    %c0_97 = arith.constant 0 : index
    %c0_98 = arith.constant 0 : index
    %c0_99 = arith.constant 0 : index
    %100 = vector.load %arg7[%c0_97, %c0_98, %c0_99] : memref<2x1x16xf32, #tpu.memory_space<vmem>>, vector<1x1x16xf32>
    %101 = vector.shape_cast %100 : vector<1x1x16xf32> to vector<1x16xf32>
    %c0_100 = arith.constant 0 : index
    %c0_101 = arith.constant 0 : index
    %c0_102 = arith.constant 0 : index
    %102 = vector.load %arg6[%c0_100, %c0_101, %c0_102] : memref<6x80x16xf32, #tpu.memory_space<vmem>>, vector<1x80x16xf32>
    %103 = vector.shape_cast %102 : vector<1x80x16xf32> to vector<80x16xf32>
    %cst_103 = arith.constant dense<0.000000e+00> : vector<2x16xf32>
    %104 = tpu.matmul %93, %103, %cst_103 {dimension_numbers = #tpu.dot_dimension_numbers<[1], [0], [0], [1], [0, 0, 1, 1], [], []>} : vector<2x80xf32>, vector<80x16xf32>, vector<2x16xf32> -> vector<2x16xf32>
    %105 = vector.broadcast %101 : vector<1x16xf32> to vector<2x16xf32>
    %106 = arith.addf %105, %104 : vector<2x16xf32>
    %c1_104 = arith.constant 1 : index
    %c0_105 = arith.constant 0 : index
    %c0_106 = arith.constant 0 : index
    %107 = vector.load %arg6[%c1_104, %c0_105, %c0_106] : memref<6x80x16xf32, #tpu.memory_space<vmem>>, vector<1x80x16xf32>
    %108 = vector.shape_cast %107 : vector<1x80x16xf32> to vector<80x16xf32>
    %cst_107 = arith.constant dense<0.000000e+00> : vector<2x16xf32>
    %109 = tpu.matmul %96, %108, %cst_107 {dimension_numbers = #tpu.dot_dimension_numbers<[1], [0], [0], [1], [0, 0, 1, 1], [], []>} : vector<2x80xf32>, vector<80x16xf32>, vector<2x16xf32> -> vector<2x16xf32>
    %110 = arith.addf %106, %109 : vector<2x16xf32>
    %c2_108 = arith.constant 2 : index
    %c0_109 = arith.constant 0 : index
    %c0_110 = arith.constant 0 : index
    %111 = vector.load %arg6[%c2_108, %c0_109, %c0_110] : memref<6x80x16xf32, #tpu.memory_space<vmem>>, vector<1x80x16xf32>
    %112 = vector.shape_cast %111 : vector<1x80x16xf32> to vector<80x16xf32>
    %cst_111 = arith.constant dense<0.000000e+00> : vector<2x16xf32>
    %113 = tpu.matmul %99, %112, %cst_111 {dimension_numbers = #tpu.dot_dimension_numbers<[1], [0], [0], [1], [0, 0, 1, 1], [], []>} : vector<2x80xf32>, vector<80x16xf32>, vector<2x16xf32> -> vector<2x16xf32>
    %114 = arith.addf %110, %113 : vector<2x16xf32>
    %cst_112 = arith.constant 0.000000e+00 : f32
    %115 = vector.broadcast %cst_112 : f32 to vector<2x16xf32>
    %116 = arith.maximumf %114, %115 : vector<2x16xf32>
    %c1_113 = arith.constant 1 : index
    %c0_114 = arith.constant 0 : index
    %c0_115 = arith.constant 0 : index
    %117 = vector.load %arg7[%c1_113, %c0_114, %c0_115] : memref<2x1x16xf32, #tpu.memory_space<vmem>>, vector<1x1x16xf32>
    %118 = vector.shape_cast %117 : vector<1x1x16xf32> to vector<1x16xf32>
    %c3_116 = arith.constant 3 : index
    %c0_117 = arith.constant 0 : index
    %c0_118 = arith.constant 0 : index
    %119 = vector.load %arg6[%c3_116, %c0_117, %c0_118] : memref<6x80x16xf32, #tpu.memory_space<vmem>>, vector<1x80x16xf32>
    %120 = vector.shape_cast %119 : vector<1x80x16xf32> to vector<80x16xf32>
    %cst_119 = arith.constant dense<0.000000e+00> : vector<2x16xf32>
    %121 = tpu.matmul %93, %120, %cst_119 {dimension_numbers = #tpu.dot_dimension_numbers<[1], [0], [0], [1], [0, 0, 1, 1], [], []>} : vector<2x80xf32>, vector<80x16xf32>, vector<2x16xf32> -> vector<2x16xf32>
    %122 = vector.broadcast %118 : vector<1x16xf32> to vector<2x16xf32>
    %123 = arith.addf %122, %121 : vector<2x16xf32>
    %c4_120 = arith.constant 4 : index
    %c0_121 = arith.constant 0 : index
    %c0_122 = arith.constant 0 : index
    %124 = vector.load %arg6[%c4_120, %c0_121, %c0_122] : memref<6x80x16xf32, #tpu.memory_space<vmem>>, vector<1x80x16xf32>
    %125 = vector.shape_cast %124 : vector<1x80x16xf32> to vector<80x16xf32>
    %cst_123 = arith.constant dense<0.000000e+00> : vector<2x16xf32>
    %126 = tpu.matmul %96, %125, %cst_123 {dimension_numbers = #tpu.dot_dimension_numbers<[1], [0], [0], [1], [0, 0, 1, 1], [], []>} : vector<2x80xf32>, vector<80x16xf32>, vector<2x16xf32> -> vector<2x16xf32>
    %127 = arith.addf %123, %126 : vector<2x16xf32>
    %c5_124 = arith.constant 5 : index
    %c0_125 = arith.constant 0 : index
    %c0_126 = arith.constant 0 : index
    %128 = vector.load %arg6[%c5_124, %c0_125, %c0_126] : memref<6x80x16xf32, #tpu.memory_space<vmem>>, vector<1x80x16xf32>
    %129 = vector.shape_cast %128 : vector<1x80x16xf32> to vector<80x16xf32>
    %cst_127 = arith.constant dense<0.000000e+00> : vector<2x16xf32>
    %130 = tpu.matmul %99, %129, %cst_127 {dimension_numbers = #tpu.dot_dimension_numbers<[1], [0], [0], [1], [0, 0, 1, 1], [], []>} : vector<2x80xf32>, vector<80x16xf32>, vector<2x16xf32> -> vector<2x16xf32>
    %131 = arith.addf %127, %130 : vector<2x16xf32>
    %cst_128 = arith.constant 0.000000e+00 : f32
    %132 = vector.broadcast %cst_128 : f32 to vector<2x16xf32>
    %133 = arith.maximumf %131, %132 : vector<2x16xf32>
    %134 = arith.maximumf %116, %133 : vector<2x16xf32>
    %c3_129 = arith.constant 3 : index
    %c0_130 = arith.constant 0 : index
    %c0_131 = arith.constant 0 : index
    %135 = vector.load %arg5[%c3_129, %c0_130, %c0_131] : memref<6x2x5xf32, #tpu.memory_space<vmem>>, vector<1x2x5xf32>
    %136 = vector.shape_cast %135 : vector<1x2x5xf32> to vector<2x5xf32>
    %cst_132 = arith.constant dense<0.000000e+00> : vector<2x80xf32>
    %137 = tpu.matmul %136, %90, %cst_132 {dimension_numbers = #tpu.dot_dimension_numbers<[1], [0], [0], [1], [0, 0, 1, 1], [], []>} : vector<2x5xf32>, vector<5x80xf32>, vector<2x80xf32> -> vector<2x80xf32>
    %c4_133 = arith.constant 4 : index
    %c0_134 = arith.constant 0 : index
    %c0_135 = arith.constant 0 : index
    %138 = vector.load %arg5[%c4_133, %c0_134, %c0_135] : memref<6x2x5xf32, #tpu.memory_space<vmem>>, vector<1x2x5xf32>
    %139 = vector.shape_cast %138 : vector<1x2x5xf32> to vector<2x5xf32>
    %cst_136 = arith.constant dense<0.000000e+00> : vector<2x80xf32>
    %140 = tpu.matmul %139, %90, %cst_136 {dimension_numbers = #tpu.dot_dimension_numbers<[1], [0], [0], [1], [0, 0, 1, 1], [], []>} : vector<2x5xf32>, vector<5x80xf32>, vector<2x80xf32> -> vector<2x80xf32>
    %c5_137 = arith.constant 5 : index
    %c0_138 = arith.constant 0 : index
    %c0_139 = arith.constant 0 : index
    %141 = vector.load %arg5[%c5_137, %c0_138, %c0_139] : memref<6x2x5xf32, #tpu.memory_space<vmem>>, vector<1x2x5xf32>
    %142 = vector.shape_cast %141 : vector<1x2x5xf32> to vector<2x5xf32>
    %cst_140 = arith.constant dense<0.000000e+00> : vector<2x80xf32>
    %143 = tpu.matmul %142, %90, %cst_140 {dimension_numbers = #tpu.dot_dimension_numbers<[1], [0], [0], [1], [0, 0, 1, 1], [], []>} : vector<2x5xf32>, vector<5x80xf32>, vector<2x80xf32> -> vector<2x80xf32>
    %c0_141 = arith.constant 0 : index
    %c0_142 = arith.constant 0 : index
    %c0_143 = arith.constant 0 : index
    %144 = vector.load %arg7[%c0_141, %c0_142, %c0_143] : memref<2x1x16xf32, #tpu.memory_space<vmem>>, vector<1x1x16xf32>
    %145 = vector.shape_cast %144 : vector<1x1x16xf32> to vector<1x16xf32>
    %c0_144 = arith.constant 0 : index
    %c0_145 = arith.constant 0 : index
    %c0_146 = arith.constant 0 : index
    %146 = vector.load %arg6[%c0_144, %c0_145, %c0_146] : memref<6x80x16xf32, #tpu.memory_space<vmem>>, vector<1x80x16xf32>
    %147 = vector.shape_cast %146 : vector<1x80x16xf32> to vector<80x16xf32>
    %cst_147 = arith.constant dense<0.000000e+00> : vector<2x16xf32>
    %148 = tpu.matmul %137, %147, %cst_147 {dimension_numbers = #tpu.dot_dimension_numbers<[1], [0], [0], [1], [0, 0, 1, 1], [], []>} : vector<2x80xf32>, vector<80x16xf32>, vector<2x16xf32> -> vector<2x16xf32>
    %149 = vector.broadcast %145 : vector<1x16xf32> to vector<2x16xf32>
    %150 = arith.addf %149, %148 : vector<2x16xf32>
    %c1_148 = arith.constant 1 : index
    %c0_149 = arith.constant 0 : index
    %c0_150 = arith.constant 0 : index
    %151 = vector.load %arg6[%c1_148, %c0_149, %c0_150] : memref<6x80x16xf32, #tpu.memory_space<vmem>>, vector<1x80x16xf32>
    %152 = vector.shape_cast %151 : vector<1x80x16xf32> to vector<80x16xf32>
    %cst_151 = arith.constant dense<0.000000e+00> : vector<2x16xf32>
    %153 = tpu.matmul %140, %152, %cst_151 {dimension_numbers = #tpu.dot_dimension_numbers<[1], [0], [0], [1], [0, 0, 1, 1], [], []>} : vector<2x80xf32>, vector<80x16xf32>, vector<2x16xf32> -> vector<2x16xf32>
    %154 = arith.addf %150, %153 : vector<2x16xf32>
    %c2_152 = arith.constant 2 : index
    %c0_153 = arith.constant 0 : index
    %c0_154 = arith.constant 0 : index
    %155 = vector.load %arg6[%c2_152, %c0_153, %c0_154] : memref<6x80x16xf32, #tpu.memory_space<vmem>>, vector<1x80x16xf32>
    %156 = vector.shape_cast %155 : vector<1x80x16xf32> to vector<80x16xf32>
    %cst_155 = arith.constant dense<0.000000e+00> : vector<2x16xf32>
    %157 = tpu.matmul %143, %156, %cst_155 {dimension_numbers = #tpu.dot_dimension_numbers<[1], [0], [0], [1], [0, 0, 1, 1], [], []>} : vector<2x80xf32>, vector<80x16xf32>, vector<2x16xf32> -> vector<2x16xf32>
    %158 = arith.addf %154, %157 : vector<2x16xf32>
    %cst_156 = arith.constant 0.000000e+00 : f32
    %159 = vector.broadcast %cst_156 : f32 to vector<2x16xf32>
    %160 = arith.maximumf %158, %159 : vector<2x16xf32>
    %161 = arith.maximumf %134, %160 : vector<2x16xf32>
    %c1_157 = arith.constant 1 : index
    %c0_158 = arith.constant 0 : index
    %c0_159 = arith.constant 0 : index
    %162 = vector.load %arg7[%c1_157, %c0_158, %c0_159] : memref<2x1x16xf32, #tpu.memory_space<vmem>>, vector<1x1x16xf32>
    %163 = vector.shape_cast %162 : vector<1x1x16xf32> to vector<1x16xf32>
    %c3_160 = arith.constant 3 : index
    %c0_161 = arith.constant 0 : index
    %c0_162 = arith.constant 0 : index
    %164 = vector.load %arg6[%c3_160, %c0_161, %c0_162] : memref<6x80x16xf32, #tpu.memory_space<vmem>>, vector<1x80x16xf32>
    %165 = vector.shape_cast %164 : vector<1x80x16xf32> to vector<80x16xf32>
    %cst_163 = arith.constant dense<0.000000e+00> : vector<2x16xf32>
    %166 = tpu.matmul %137, %165, %cst_163 {dimension_numbers = #tpu.dot_dimension_numbers<[1], [0], [0], [1], [0, 0, 1, 1], [], []>} : vector<2x80xf32>, vector<80x16xf32>, vector<2x16xf32> -> vector<2x16xf32>
    %167 = vector.broadcast %163 : vector<1x16xf32> to vector<2x16xf32>
    %168 = arith.addf %167, %166 : vector<2x16xf32>
    %c4_164 = arith.constant 4 : index
    %c0_165 = arith.constant 0 : index
    %c0_166 = arith.constant 0 : index
    %169 = vector.load %arg6[%c4_164, %c0_165, %c0_166] : memref<6x80x16xf32, #tpu.memory_space<vmem>>, vector<1x80x16xf32>
    %170 = vector.shape_cast %169 : vector<1x80x16xf32> to vector<80x16xf32>
    %cst_167 = arith.constant dense<0.000000e+00> : vector<2x16xf32>
    %171 = tpu.matmul %140, %170, %cst_167 {dimension_numbers = #tpu.dot_dimension_numbers<[1], [0], [0], [1], [0, 0, 1, 1], [], []>} : vector<2x80xf32>, vector<80x16xf32>, vector<2x16xf32> -> vector<2x16xf32>
    %172 = arith.addf %168, %171 : vector<2x16xf32>
    %c5_168 = arith.constant 5 : index
    %c0_169 = arith.constant 0 : index
    %c0_170 = arith.constant 0 : index
    %173 = vector.load %arg6[%c5_168, %c0_169, %c0_170] : memref<6x80x16xf32, #tpu.memory_space<vmem>>, vector<1x80x16xf32>
    %174 = vector.shape_cast %173 : vector<1x80x16xf32> to vector<80x16xf32>
    %cst_171 = arith.constant dense<0.000000e+00> : vector<2x16xf32>
    %175 = tpu.matmul %143, %174, %cst_171 {dimension_numbers = #tpu.dot_dimension_numbers<[1], [0], [0], [1], [0, 0, 1, 1], [], []>} : vector<2x80xf32>, vector<80x16xf32>, vector<2x16xf32> -> vector<2x16xf32>
    %176 = arith.addf %172, %175 : vector<2x16xf32>
    %cst_172 = arith.constant 0.000000e+00 : f32
    %177 = vector.broadcast %cst_172 : f32 to vector<2x16xf32>
    %178 = arith.maximumf %176, %177 : vector<2x16xf32>
    %179 = arith.maximumf %161, %178 : vector<2x16xf32>
    %c0_173 = arith.constant 0 : index
    %c0_174 = arith.constant 0 : index
    %180 = vector.load %arg10[%c0_173, %c0_174] : memref<1x80xf32, #tpu.memory_space<vmem>>, vector<1x80xf32>
    %c0_175 = arith.constant 0 : index
    %c0_176 = arith.constant 0 : index
    %c0_177 = arith.constant 0 : index
    %181 = vector.load %arg8[%c0_175, %c0_176, %c0_177] : memref<3x5x2xf32, #tpu.memory_space<vmem>>, vector<1x5x2xf32>
    %182 = vector.shape_cast %181 : vector<1x5x2xf32> to vector<5x2xf32>
    %cst_178 = arith.constant dense<0.000000e+00> : vector<5x16xf32>
    %183 = tpu.matmul %182, %179, %cst_178 {dimension_numbers = #tpu.dot_dimension_numbers<[1], [0], [0], [1], [0, 0, 1, 1], [], []>} : vector<5x2xf32>, vector<2x16xf32>, vector<5x16xf32> -> vector<5x16xf32>
    %c0_179 = arith.constant 0 : index
    %c0_180 = arith.constant 0 : index
    %c0_181 = arith.constant 0 : index
    %184 = vector.load %arg9[%c0_179, %c0_180, %c0_181] : memref<3x16x80xf32, #tpu.memory_space<vmem>>, vector<1x16x80xf32>
    %185 = vector.shape_cast %184 : vector<1x16x80xf32> to vector<16x80xf32>
    %cst_182 = arith.constant dense<0.000000e+00> : vector<5x80xf32>
    %186 = tpu.matmul %183, %185, %cst_182 {dimension_numbers = #tpu.dot_dimension_numbers<[1], [0], [0], [1], [0, 0, 1, 1], [], []>} : vector<5x16xf32>, vector<16x80xf32>, vector<5x80xf32> -> vector<5x80xf32>
    %187 = vector.broadcast %180 : vector<1x80xf32> to vector<5x80xf32>
    %188 = arith.addf %187, %186 : vector<5x80xf32>
    %c1_183 = arith.constant 1 : index
    %c0_184 = arith.constant 0 : index
    %c0_185 = arith.constant 0 : index
    %189 = vector.load %arg8[%c1_183, %c0_184, %c0_185] : memref<3x5x2xf32, #tpu.memory_space<vmem>>, vector<1x5x2xf32>
    %190 = vector.shape_cast %189 : vector<1x5x2xf32> to vector<5x2xf32>
    %cst_186 = arith.constant dense<0.000000e+00> : vector<5x16xf32>
    %191 = tpu.matmul %190, %179, %cst_186 {dimension_numbers = #tpu.dot_dimension_numbers<[1], [0], [0], [1], [0, 0, 1, 1], [], []>} : vector<5x2xf32>, vector<2x16xf32>, vector<5x16xf32> -> vector<5x16xf32>
    %c1_187 = arith.constant 1 : index
    %c0_188 = arith.constant 0 : index
    %c0_189 = arith.constant 0 : index
    %192 = vector.load %arg9[%c1_187, %c0_188, %c0_189] : memref<3x16x80xf32, #tpu.memory_space<vmem>>, vector<1x16x80xf32>
    %193 = vector.shape_cast %192 : vector<1x16x80xf32> to vector<16x80xf32>
    %cst_190 = arith.constant dense<0.000000e+00> : vector<5x80xf32>
    %194 = tpu.matmul %191, %193, %cst_190 {dimension_numbers = #tpu.dot_dimension_numbers<[1], [0], [0], [1], [0, 0, 1, 1], [], []>} : vector<5x16xf32>, vector<16x80xf32>, vector<5x80xf32> -> vector<5x80xf32>
    %195 = arith.addf %188, %194 : vector<5x80xf32>
    %c2_191 = arith.constant 2 : index
    %c0_192 = arith.constant 0 : index
    %c0_193 = arith.constant 0 : index
    %196 = vector.load %arg8[%c2_191, %c0_192, %c0_193] : memref<3x5x2xf32, #tpu.memory_space<vmem>>, vector<1x5x2xf32>
    %197 = vector.shape_cast %196 : vector<1x5x2xf32> to vector<5x2xf32>
    %cst_194 = arith.constant dense<0.000000e+00> : vector<5x16xf32>
    %198 = tpu.matmul %197, %179, %cst_194 {dimension_numbers = #tpu.dot_dimension_numbers<[1], [0], [0], [1], [0, 0, 1, 1], [], []>} : vector<5x2xf32>, vector<2x16xf32>, vector<5x16xf32> -> vector<5x16xf32>
    %c2_195 = arith.constant 2 : index
    %c0_196 = arith.constant 0 : index
    %c0_197 = arith.constant 0 : index
    %199 = vector.load %arg9[%c2_195, %c0_196, %c0_197] : memref<3x16x80xf32, #tpu.memory_space<vmem>>, vector<1x16x80xf32>
    %200 = vector.shape_cast %199 : vector<1x16x80xf32> to vector<16x80xf32>
    %cst_198 = arith.constant dense<0.000000e+00> : vector<5x80xf32>
    %201 = tpu.matmul %198, %200, %cst_198 {dimension_numbers = #tpu.dot_dimension_numbers<[1], [0], [0], [1], [0, 0, 1, 1], [], []>} : vector<5x16xf32>, vector<16x80xf32>, vector<5x80xf32> -> vector<5x80xf32>
    %202 = arith.addf %195, %201 : vector<5x80xf32>
    %cst_199 = arith.constant 0.000000e+00 : f32
    %203 = vector.broadcast %cst_199 : f32 to vector<5x80xf32>
    %204 = arith.maximumf %202, %203 : vector<5x80xf32>
    %c0_200 = arith.constant 0 : index
    %c0_201 = arith.constant 0 : index
    %205 = vector.load %arg13[%c0_200, %c0_201] : memref<1x120xf32, #tpu.memory_space<vmem>>, vector<1x120xf32>
    %c0_202 = arith.constant 0 : index
    %c0_203 = arith.constant 0 : index
    %c0_204 = arith.constant 0 : index
    %206 = vector.load %arg11[%c0_202, %c0_203, %c0_204] : memref<5x15x5xf32, #tpu.memory_space<vmem>>, vector<1x15x5xf32>
    %207 = vector.shape_cast %206 : vector<1x15x5xf32> to vector<15x5xf32>
    %cst_205 = arith.constant dense<0.000000e+00> : vector<15x80xf32>
    %208 = tpu.matmul %207, %204, %cst_205 {dimension_numbers = #tpu.dot_dimension_numbers<[1], [0], [0], [1], [0, 0, 1, 1], [], []>} : vector<15x5xf32>, vector<5x80xf32>, vector<15x80xf32> -> vector<15x80xf32>
    %c0_206 = arith.constant 0 : index
    %c0_207 = arith.constant 0 : index
    %c0_208 = arith.constant 0 : index
    %209 = vector.load %arg12[%c0_206, %c0_207, %c0_208] : memref<5x80x120xf32, #tpu.memory_space<vmem>>, vector<1x80x120xf32>
    %210 = vector.shape_cast %209 : vector<1x80x120xf32> to vector<80x120xf32>
    %cst_209 = arith.constant dense<0.000000e+00> : vector<15x120xf32>
    %211 = tpu.matmul %208, %210, %cst_209 {dimension_numbers = #tpu.dot_dimension_numbers<[1], [0], [0], [1], [0, 0, 1, 1], [], []>} : vector<15x80xf32>, vector<80x120xf32>, vector<15x120xf32> -> vector<15x120xf32>
    %212 = vector.broadcast %205 : vector<1x120xf32> to vector<15x120xf32>
    %213 = arith.addf %212, %211 : vector<15x120xf32>
    %c1_210 = arith.constant 1 : index
    %c0_211 = arith.constant 0 : index
    %c0_212 = arith.constant 0 : index
    %214 = vector.load %arg11[%c1_210, %c0_211, %c0_212] : memref<5x15x5xf32, #tpu.memory_space<vmem>>, vector<1x15x5xf32>
    %215 = vector.shape_cast %214 : vector<1x15x5xf32> to vector<15x5xf32>
    %cst_213 = arith.constant dense<0.000000e+00> : vector<15x80xf32>
    %216 = tpu.matmul %215, %204, %cst_213 {dimension_numbers = #tpu.dot_dimension_numbers<[1], [0], [0], [1], [0, 0, 1, 1], [], []>} : vector<15x5xf32>, vector<5x80xf32>, vector<15x80xf32> -> vector<15x80xf32>
    %c1_214 = arith.constant 1 : index
    %c0_215 = arith.constant 0 : index
    %c0_216 = arith.constant 0 : index
    %217 = vector.load %arg12[%c1_214, %c0_215, %c0_216] : memref<5x80x120xf32, #tpu.memory_space<vmem>>, vector<1x80x120xf32>
    %218 = vector.shape_cast %217 : vector<1x80x120xf32> to vector<80x120xf32>
    %cst_217 = arith.constant dense<0.000000e+00> : vector<15x120xf32>
    %219 = tpu.matmul %216, %218, %cst_217 {dimension_numbers = #tpu.dot_dimension_numbers<[1], [0], [0], [1], [0, 0, 1, 1], [], []>} : vector<15x80xf32>, vector<80x120xf32>, vector<15x120xf32> -> vector<15x120xf32>
    %220 = arith.addf %213, %219 : vector<15x120xf32>
    %c2_218 = arith.constant 2 : index
    %c0_219 = arith.constant 0 : index
    %c0_220 = arith.constant 0 : index
    %221 = vector.load %arg11[%c2_218, %c0_219, %c0_220] : memref<5x15x5xf32, #tpu.memory_space<vmem>>, vector<1x15x5xf32>
    %222 = vector.shape_cast %221 : vector<1x15x5xf32> to vector<15x5xf32>
    %cst_221 = arith.constant dense<0.000000e+00> : vector<15x80xf32>
    %223 = tpu.matmul %222, %204, %cst_221 {dimension_numbers = #tpu.dot_dimension_numbers<[1], [0], [0], [1], [0, 0, 1, 1], [], []>} : vector<15x5xf32>, vector<5x80xf32>, vector<15x80xf32> -> vector<15x80xf32>
    %c2_222 = arith.constant 2 : index
    %c0_223 = arith.constant 0 : index
    %c0_224 = arith.constant 0 : index
    %224 = vector.load %arg12[%c2_222, %c0_223, %c0_224] : memref<5x80x120xf32, #tpu.memory_space<vmem>>, vector<1x80x120xf32>
    %225 = vector.shape_cast %224 : vector<1x80x120xf32> to vector<80x120xf32>
    %cst_225 = arith.constant dense<0.000000e+00> : vector<15x120xf32>
    %226 = tpu.matmul %223, %225, %cst_225 {dimension_numbers = #tpu.dot_dimension_numbers<[1], [0], [0], [1], [0, 0, 1, 1], [], []>} : vector<15x80xf32>, vector<80x120xf32>, vector<15x120xf32> -> vector<15x120xf32>
    %227 = arith.addf %220, %226 : vector<15x120xf32>
    %c3_226 = arith.constant 3 : index
    %c0_227 = arith.constant 0 : index
    %c0_228 = arith.constant 0 : index
    %228 = vector.load %arg11[%c3_226, %c0_227, %c0_228] : memref<5x15x5xf32, #tpu.memory_space<vmem>>, vector<1x15x5xf32>
    %229 = vector.shape_cast %228 : vector<1x15x5xf32> to vector<15x5xf32>
    %cst_229 = arith.constant dense<0.000000e+00> : vector<15x80xf32>
    %230 = tpu.matmul %229, %204, %cst_229 {dimension_numbers = #tpu.dot_dimension_numbers<[1], [0], [0], [1], [0, 0, 1, 1], [], []>} : vector<15x5xf32>, vector<5x80xf32>, vector<15x80xf32> -> vector<15x80xf32>
    %c3_230 = arith.constant 3 : index
    %c0_231 = arith.constant 0 : index
    %c0_232 = arith.constant 0 : index
    %231 = vector.load %arg12[%c3_230, %c0_231, %c0_232] : memref<5x80x120xf32, #tpu.memory_space<vmem>>, vector<1x80x120xf32>
    %232 = vector.shape_cast %231 : vector<1x80x120xf32> to vector<80x120xf32>
    %cst_233 = arith.constant dense<0.000000e+00> : vector<15x120xf32>
    %233 = tpu.matmul %230, %232, %cst_233 {dimension_numbers = #tpu.dot_dimension_numbers<[1], [0], [0], [1], [0, 0, 1, 1], [], []>} : vector<15x80xf32>, vector<80x120xf32>, vector<15x120xf32> -> vector<15x120xf32>
    %234 = arith.addf %227, %233 : vector<15x120xf32>
    %c4_234 = arith.constant 4 : index
    %c0_235 = arith.constant 0 : index
    %c0_236 = arith.constant 0 : index
    %235 = vector.load %arg11[%c4_234, %c0_235, %c0_236] : memref<5x15x5xf32, #tpu.memory_space<vmem>>, vector<1x15x5xf32>
    %236 = vector.shape_cast %235 : vector<1x15x5xf32> to vector<15x5xf32>
    %cst_237 = arith.constant dense<0.000000e+00> : vector<15x80xf32>
    %237 = tpu.matmul %236, %204, %cst_237 {dimension_numbers = #tpu.dot_dimension_numbers<[1], [0], [0], [1], [0, 0, 1, 1], [], []>} : vector<15x5xf32>, vector<5x80xf32>, vector<15x80xf32> -> vector<15x80xf32>
    %c4_238 = arith.constant 4 : index
    %c0_239 = arith.constant 0 : index
    %c0_240 = arith.constant 0 : index
    %238 = vector.load %arg12[%c4_238, %c0_239, %c0_240] : memref<5x80x120xf32, #tpu.memory_space<vmem>>, vector<1x80x120xf32>
    %239 = vector.shape_cast %238 : vector<1x80x120xf32> to vector<80x120xf32>
    %cst_241 = arith.constant dense<0.000000e+00> : vector<15x120xf32>
    %240 = tpu.matmul %237, %239, %cst_241 {dimension_numbers = #tpu.dot_dimension_numbers<[1], [0], [0], [1], [0, 0, 1, 1], [], []>} : vector<15x80xf32>, vector<80x120xf32>, vector<15x120xf32> -> vector<15x120xf32>
    %241 = arith.addf %234, %240 : vector<15x120xf32>
    %cst_242 = arith.constant 0.000000e+00 : f32
    %242 = vector.broadcast %cst_242 : f32 to vector<15x120xf32>
    %243 = arith.maximumf %241, %242 : vector<15x120xf32>
    %c0_243 = arith.constant 0 : index
    %c0_244 = arith.constant 0 : index
    %244 = vector.load %arg16[%c0_243, %c0_244] : memref<1x28xf32, #tpu.memory_space<vmem>>, vector<1x28xf32>
    %c0_245 = arith.constant 0 : index
    %c0_246 = arith.constant 0 : index
    %c0_247 = arith.constant 0 : index
    %245 = vector.load %arg14[%c0_245, %c0_246, %c0_247] : memref<2x28x15xf32, #tpu.memory_space<vmem>>, vector<1x28x15xf32>
    %246 = vector.shape_cast %245 : vector<1x28x15xf32> to vector<28x15xf32>
    %cst_248 = arith.constant dense<0.000000e+00> : vector<28x120xf32>
    %247 = tpu.matmul %246, %243, %cst_248 {dimension_numbers = #tpu.dot_dimension_numbers<[1], [0], [0], [1], [0, 0, 1, 1], [], []>} : vector<28x15xf32>, vector<15x120xf32>, vector<28x120xf32> -> vector<28x120xf32>
    %c0_249 = arith.constant 0 : index
    %c0_250 = arith.constant 0 : index
    %c0_251 = arith.constant 0 : index
    %248 = vector.load %arg15[%c0_249, %c0_250, %c0_251] : memref<2x120x28xf32, #tpu.memory_space<vmem>>, vector<1x120x28xf32>
    %249 = vector.shape_cast %248 : vector<1x120x28xf32> to vector<120x28xf32>
    %cst_252 = arith.constant dense<0.000000e+00> : vector<28x28xf32>
    %250 = tpu.matmul %247, %249, %cst_252 {dimension_numbers = #tpu.dot_dimension_numbers<[1], [0], [0], [1], [0, 0, 1, 1], [], []>} : vector<28x120xf32>, vector<120x28xf32>, vector<28x28xf32> -> vector<28x28xf32>
    %251 = vector.broadcast %244 : vector<1x28xf32> to vector<28x28xf32>
    %252 = arith.addf %251, %250 : vector<28x28xf32>
    %c1_253 = arith.constant 1 : index
    %c0_254 = arith.constant 0 : index
    %c0_255 = arith.constant 0 : index
    %253 = vector.load %arg14[%c1_253, %c0_254, %c0_255] : memref<2x28x15xf32, #tpu.memory_space<vmem>>, vector<1x28x15xf32>
    %254 = vector.shape_cast %253 : vector<1x28x15xf32> to vector<28x15xf32>
    %cst_256 = arith.constant dense<0.000000e+00> : vector<28x120xf32>
    %255 = tpu.matmul %254, %243, %cst_256 {dimension_numbers = #tpu.dot_dimension_numbers<[1], [0], [0], [1], [0, 0, 1, 1], [], []>} : vector<28x15xf32>, vector<15x120xf32>, vector<28x120xf32> -> vector<28x120xf32>
    %c1_257 = arith.constant 1 : index
    %c0_258 = arith.constant 0 : index
    %c0_259 = arith.constant 0 : index
    %256 = vector.load %arg15[%c1_257, %c0_258, %c0_259] : memref<2x120x28xf32, #tpu.memory_space<vmem>>, vector<1x120x28xf32>
    %257 = vector.shape_cast %256 : vector<1x120x28xf32> to vector<120x28xf32>
    %cst_260 = arith.constant dense<0.000000e+00> : vector<28x28xf32>
    %258 = tpu.matmul %255, %257, %cst_260 {dimension_numbers = #tpu.dot_dimension_numbers<[1], [0], [0], [1], [0, 0, 1, 1], [], []>} : vector<28x120xf32>, vector<120x28xf32>, vector<28x28xf32> -> vector<28x28xf32>
    %259 = arith.addf %252, %258 : vector<28x28xf32>
    %260 = math.tanh %259 : vector<28x28xf32>
    %c0_261 = arith.constant 0 : index
    %c0_262 = arith.constant 0 : index
    %c0_263 = arith.constant 0 : index
    %c0_264 = arith.constant 0 : index
    %261 = vector.load %arg17[%c0_261, %c0_262, %c0_263, %c0_264] : memref<1x1x28x28xf32, #tpu.memory_space<vmem>>, vector<1x1x28x28xf32>
    %262 = vector.shape_cast %261 : vector<1x1x28x28xf32> to vector<28x28xf32>
    %263 = vector.shape_cast %260 : vector<28x28xf32> to vector<1x1x28x28xf32>
    tpu.vector_store %arg17[%c0_261, %c0_262, %c0_263, %c0_264], %263 {strides = array<i32>} : memref<1x1x28x28xf32, #tpu.memory_space<vmem>>, vector<1x1x28x28xf32>,
    return
  }
  func.func @transform_0(%arg0: i32) -> (i32, i32, i32, i32) {
    %c0_i32 = arith.constant 0 : i32
    %c0_i32_0 = arith.constant 0 : i32
    %c0_i32_1 = arith.constant 0 : i32
    %c0_i32_2 = arith.constant 0 : i32
    return %arg0, %c0_i32, %c0_i32_0, %c0_i32_1 : i32, i32, i32, i32
  }
  func.func @transform_1(%arg0: i32) -> (i32, i32, i32) {
    %c0_i32 = arith.constant 0 : i32
    %c0_i32_0 = arith.constant 0 : i32
    %c0_i32_1 = arith.constant 0 : i32
    %c0_i32_2 = arith.constant 0 : i32
    return %c0_i32, %c0_i32_0, %c0_i32_1 : i32, i32, i32
  }
  func.func @transform_2(%arg0: i32) -> (i32, i32, i32) {
    %c0_i32 = arith.constant 0 : i32
    %c0_i32_0 = arith.constant 0 : i32
    %c0_i32_1 = arith.constant 0 : i32
    %c0_i32_2 = arith.constant 0 : i32
    return %c0_i32, %c0_i32_0, %c0_i32_1 : i32, i32, i32
  }
  func.func @transform_3(%arg0: i32) -> (i32, i32, i32) {
    %c0_i32 = arith.constant 0 : i32
    %c0_i32_0 = arith.constant 0 : i32
    %c0_i32_1 = arith.constant 0 : i32
    %c0_i32_2 = arith.constant 0 : i32
    return %c0_i32, %c0_i32_0, %c0_i32_1 : i32, i32, i32
  }
  func.func @transform_4(%arg0: i32) -> (i32, i32, i32) {
    %c0_i32 = arith.constant 0 : i32
    %c0_i32_0 = arith.constant 0 : i32
    %c0_i32_1 = arith.constant 0 : i32
    %c0_i32_2 = arith.constant 0 : i32
    return %c0_i32, %c0_i32_0, %c0_i32_1 : i32, i32, i32
  }
  func.func @transform_5(%arg0: i32) -> (i32, i32, i32) {
    %c0_i32 = arith.constant 0 : i32
    %c0_i32_0 = arith.constant 0 : i32
    %c0_i32_1 = arith.constant 0 : i32
    %c0_i32_2 = arith.constant 0 : i32
    return %c0_i32, %c0_i32_0, %c0_i32_1 : i32, i32, i32
  }
  func.func @transform_6(%arg0: i32) -> (i32, i32, i32) {
    %c0_i32 = arith.constant 0 : i32
    %c0_i32_0 = arith.constant 0 : i32
    %c0_i32_1 = arith.constant 0 : i32
    %c0_i32_2 = arith.constant 0 : i32
    return %c0_i32, %c0_i32_0, %c0_i32_1 : i32, i32, i32
  }
  func.func @transform_7(%arg0: i32) -> (i32, i32, i32) {
    %c0_i32 = arith.constant 0 : i32
    %c0_i32_0 = arith.constant 0 : i32
    %c0_i32_1 = arith.constant 0 : i32
    %c0_i32_2 = arith.constant 0 : i32
    return %c0_i32, %c0_i32_0, %c0_i32_1 : i32, i32, i32
  }
  func.func @transform_8(%arg0: i32) -> (i32, i32, i32) {
    %c0_i32 = arith.constant 0 : i32
    %c0_i32_0 = arith.constant 0 : i32
    %c0_i32_1 = arith.constant 0 : i32
    %c0_i32_2 = arith.constant 0 : i32
    return %c0_i32, %c0_i32_0, %c0_i32_1 : i32, i32, i32
  }
  func.func @transform_9(%arg0: i32) -> (i32, i32) {
    %c0_i32 = arith.constant 0 : i32
    %c0_i32_0 = arith.constant 0 : i32
    %c0_i32_1 = arith.constant 0 : i32
    return %c0_i32, %c0_i32_0 : i32, i32
  }
  func.func @transform_10(%arg0: i32) -> (i32, i32, i32) {
    %c0_i32 = arith.constant 0 : i32
    %c0_i32_0 = arith.constant 0 : i32
    %c0_i32_1 = arith.constant 0 : i32
    %c0_i32_2 = arith.constant 0 : i32
    return %c0_i32, %c0_i32_0, %c0_i32_1 : i32, i32, i32
  }
  func.func @transform_11(%arg0: i32) -> (i32, i32, i32) {
    %c0_i32 = arith.constant 0 : i32
    %c0_i32_0 = arith.constant 0 : i32
    %c0_i32_1 = arith.constant 0 : i32
    %c0_i32_2 = arith.constant 0 : i32
    return %c0_i32, %c0_i32_0, %c0_i32_1 : i32, i32, i32
  }
  func.func @transform_12(%arg0: i32) -> (i32, i32) {
    %c0_i32 = arith.constant 0 : i32
    %c0_i32_0 = arith.constant 0 : i32
    %c0_i32_1 = arith.constant 0 : i32
    return %c0_i32, %c0_i32_0 : i32, i32
  }
  func.func @transform_13(%arg0: i32) -> (i32, i32, i32) {
    %c0_i32 = arith.constant 0 : i32
    %c0_i32_0 = arith.constant 0 : i32
    %c0_i32_1 = arith.constant 0 : i32
    %c0_i32_2 = arith.constant 0 : i32
    return %c0_i32, %c0_i32_0, %c0_i32_1 : i32, i32, i32
  }
  func.func @transform_14(%arg0: i32) -> (i32, i32, i32) {
    %c0_i32 = arith.constant 0 : i32
    %c0_i32_0 = arith.constant 0 : i32
    %c0_i32_1 = arith.constant 0 : i32
    %c0_i32_2 = arith.constant 0 : i32
    return %c0_i32, %c0_i32_0, %c0_i32_1 : i32, i32, i32
  }
  func.func @transform_15(%arg0: i32) -> (i32, i32) {
    %c0_i32 = arith.constant 0 : i32
    %c0_i32_0 = arith.constant 0 : i32
    %c0_i32_1 = arith.constant 0 : i32
    return %c0_i32, %c0_i32_0 : i32, i32
  }
  func.func @transform_16(%arg0: i32) -> (i32, i32, i32, i32) {
    %c0_i32 = arith.constant 0 : i32
    %c0_i32_0 = arith.constant 0 : i32
    %c0_i32_1 = arith.constant 0 : i32
    %c0_i32_2 = arith.constant 0 : i32
    return %arg0, %c0_i32, %c0_i32_0, %c0_i32_1 : i32, i32, i32, i32
  }
}

</mosaic_0001>

<llo_original>
// kernel: autoencoder_forward.1
$region0: #{autoencoder_forward.1}
  #allocation0 [shape = 'u32[]', space=smem, size = 0x4, offset = 0x4, fixed_abs, tag = 'smem constant byte address 0x4 - core index']
  #allocation1 [shape = 'u32[144,128]{1,0:T(1,128)}', space=vmem, size = 0x12000, scoped, tag = 'internal scratch']
  %s0 = inlined_call_operand.vmem [shape: f32[2,1,28,28], index: 0, kind: input, shape index: {}]
  %s1 = inlined_call_operand.vmem [shape: f32[6,5,28], index: 1, kind: input, shape index: {}]
  %s2 = inlined_call_operand.vmem [shape: f32[6,28,80], index: 2, kind: input, shape index: {}]
  %s3 = inlined_call_operand.vmem [shape: f32[2,1,80], index: 3, kind: input, shape index: {}]
  %s4 = inlined_call_operand.vmem [shape: f32[6,2,5], index: 4, kind: input, shape index: {}]
  %s5 = inlined_call_operand.vmem [shape: f32[6,80,16], index: 5, kind: input, shape index: {}]
  %s6 = inlined_call_operand.vmem [shape: f32[2,1,16], index: 6, kind: input, shape index: {}]
  %s7 = inlined_call_operand.vmem [shape: f32[3,5,2], index: 7, kind: input, shape index: {}]
  %s8 = inlined_call_operand.vmem [shape: f32[3,16,80], index: 8, kind: input, shape index: {}]
  %s9 = inlined_call_operand.vmem [shape: f32[1,80], index: 9, kind: input, shape index: {}]
  %s10 = inlined_call_operand.vmem [shape: f32[5,15,5], index: 10, kind: input, shape index: {}]
  %s11 = inlined_call_operand.vmem [shape: f32[5,80,120], index: 11, kind: input, shape index: {}]
  %s12 = inlined_call_operand.vmem [shape: f32[1,120], index: 12, kind: input, shape index: {}]
  %s13 = inlined_call_operand.vmem [shape: f32[2,28,15], index: 13, kind: input, shape index: {}]
  %s14 = inlined_call_operand.vmem [shape: f32[2,120,28], index: 14, kind: input, shape index: {}]
  %s15 = inlined_call_operand.vmem [shape: f32[1,28], index: 15, kind: input, shape index: {}]
  %s16 = inlined_call_operand.vmem [shape: f32[2,1,28,28], index: 16, kind: output, shape index: {}]
  %s17 = sld [smem:[#allocation0]]
  $region97: #{autoencoder_forward.1} parent=0
    _
  %s19 = ssub.s32 1, %s17
  %s20 = scalar_select 0, %s19, %s17
  loop: start=0, step=1, limit=4
  $region2: #{autoencoder_forward.1} parent=0 // loop_pre_header
    _
  $region3: #{autoencoder_forward.1} parent=0 // loop_header
    %s22 = sphi 0, %s26
    %p23 = scmp.ge.s32.totalorder %s22, 4
    %s32 = sphi 0, %s34
    %s35 = sphi 0, %s32
    %s36 = sphi 0, %s35
    %s52 = sphi 0, %s36
    %s56 = sphi 0, %s56
    %s58 = sphi 0, %s56
    %s59 = sphi 0, %s58
    %s73 = sphi 0, %s59
    %s77 = sphi 0, %s77
    %s79 = sphi 0, %s77
    %s80 = sphi 0, %s79
    %s94 = sphi 0, %s80
    %s98 = sphi 0, %s98
    %s100 = sphi 0, %s98
    %s101 = sphi 0, %s100
    %s115 = sphi 0, %s101
    %s119 = sphi 0, %s119
    %s121 = sphi 0, %s119
    %s122 = sphi 0, %s121
    %s136 = sphi 0, %s122
    %s140 = sphi 0, %s140
    %s142 = sphi 0, %s140
    %s143 = sphi 0, %s142
    %s157 = sphi 0, %s143
    %s161 = sphi 0, %s161
    %s163 = sphi 0, %s161
    %s164 = sphi 0, %s163
    %s178 = sphi 0, %s164
    %s182 = sphi 0, %s182
    %s184 = sphi 0, %s182
    %s185 = sphi 0, %s184
    %s199 = sphi 0, %s185
    %s203 = sphi 0, %s203
    %s205 = sphi 0, %s203
    %s206 = sphi 0, %s205
    %s220 = sphi 0, %s206
    %s224 = sphi 0, %s224
    %s226 = sphi 0, %s224
    %s227 = sphi 0, %s226
    %s241 = sphi 0, %s227
    %s245 = sphi 0, %s245
    %s247 = sphi 0, %s245
    %s248 = sphi 0, %s247
    %s262 = sphi 0, %s248
    %s266 = sphi 0, %s266
    %s268 = sphi 0, %s266
    %s269 = sphi 0, %s268
    %s283 = sphi 0, %s269
    %s287 = sphi 0, %s287
    %s289 = sphi 0, %s287
    %s290 = sphi 0, %s289
    %s304 = sphi 0, %s290
    %s308 = sphi 0, %s308
    %s310 = sphi 0, %s308
    %s311 = sphi 0, %s310
    %s325 = sphi 0, %s311
    %s329 = sphi 0, %s329
    %s331 = sphi 0, %s329
    %s332 = sphi 0, %s331
    %s346 = sphi 0, %s332
    %s350 = sphi 0, %s350
    %s352 = sphi 0, %s350
    %s353 = sphi 0, %s352
    %s367 = sphi 0, %s353
    %s373 = sphi 0, %s375
    %s376 = sphi 0, %s373
    %s377 = sphi 0, %s376
    %s393 = sphi 0, %s377
  $region4: #{autoencoder_forward.1} parent=0 // loop_header_branch
    %25 = sbr.rel (%p23) target = $region8
  $region5: #{autoencoder_forward.1} parent=0 // loop_body
    %s27 = ssub.s32 %s22, 1
    %s28 = ssub.s32 %s22, 2
    %s29 = sadd.s32 %s22, 1
    %s30 = ssub.s32 %s22, %s29
    %p31 = scmp.eq.s32.totalorder %s30, 0
    %s33 = sadd.s32 %s32, 1
    %s34 = scalar_select %p31, %s32, %s33
    %p37 = pneg %p31
    %p38 = scmp.eq.s32.totalorder %s22, 1
    %p39 = por %p37, %p38
    %p40 = scmp.ne.s32.totalorder %s32, %s35
    %p41 = scmp.eq.s32.totalorder %s22, 0
    %p42 = por %p40, %p41
    %p43 = scmp.ne.s32.totalorder %s32, %s35
    %p44 = scmp.eq.s32.totalorder %s27, 1
    %p45 = por %p43, %p44
    %p46 = scmp.ne.s32.totalorder %s35, %s36
    %p47 = scmp.eq.s32.totalorder %s27, 0
    %p48 = por %p46, %p47
    %p49 = scmp.ne.s32.totalorder %s35, %s36
    %p50 = scmp.eq.s32.totalorder %s28, 1
    %p51 = por %p49, %p50
    %p53 = scmp.ne.s32.totalorder %s36, %s52
    %p54 = scmp.eq.s32.totalorder %s28, 0
    %p55 = por %p53, %p54
    %s57 = sadd.s32 %s56, 1
    %p60 = scmp.eq.s32.totalorder %s22, 1
    %p61 = scmp.ne.s32.totalorder %s56, %s58
    %p62 = scmp.eq.s32.totalorder %s22, 0
    %p63 = por %p61, %p62
    %p64 = scmp.ne.s32.totalorder %s56, %s58
    %p65 = scmp.eq.s32.totalorder %s27, 1
    %p66 = por %p64, %p65
    %p67 = scmp.ne.s32.totalorder %s58, %s59
    %p68 = scmp.eq.s32.totalorder %s27, 0
    %p69 = por %p67, %p68
    %p70 = scmp.ne.s32.totalorder %s58, %s59
    %p71 = scmp.eq.s32.totalorder %s28, 1
    %p72 = por %p70, %p71
    %p74 = scmp.ne.s32.totalorder %s59, %s73
    %p75 = scmp.eq.s32.totalorder %s28, 0
    %p76 = por %p74, %p75
    %s78 = sadd.s32 %s77, 1
    %p81 = scmp.eq.s32.totalorder %s22, 1
    %p82 = scmp.ne.s32.totalorder %s77, %s79
    %p83 = scmp.eq.s32.totalorder %s22, 0
    %p84 = por %p82, %p83
    %p85 = scmp.ne.s32.totalorder %s77, %s79
    %p86 = scmp.eq.s32.totalorder %s27, 1
    %p87 = por %p85, %p86
    %p88 = scmp.ne.s32.totalorder %s79, %s80
    %p89 = scmp.eq.s32.totalorder %s27, 0
    %p90 = por %p88, %p89
    %p91 = scmp.ne.s32.totalorder %s79, %s80
    %p92 = scmp.eq.s32.totalorder %s28, 1
    %p93 = por %p91, %p92
    %p95 = scmp.ne.s32.totalorder %s80, %s94
    %p96 = scmp.eq.s32.totalorder %s28, 0
    %p97 = por %p95, %p96
    %s99 = sadd.s32 %s98, 1
    %p102 = scmp.eq.s32.totalorder %s22, 1
    %p103 = scmp.ne.s32.totalorder %s98, %s100
    %p104 = scmp.eq.s32.totalorder %s22, 0
    %p105 = por %p103, %p104
    %p106 = scmp.ne.s32.totalorder %s98, %s100
    %p107 = scmp.eq.s32.totalorder %s27, 1
    %p108 = por %p106, %p107
    %p109 = scmp.ne.s32.totalorder %s100, %s101
    %p110 = scmp.eq.s32.totalorder %s27, 0
    %p111 = por %p109, %p110
    %p112 = scmp.ne.s32.totalorder %s100, %s101
    %p113 = scmp.eq.s32.totalorder %s28, 1
    %p114 = por %p112, %p113
    %p116 = scmp.ne.s32.totalorder %s101, %s115
    %p117 = scmp.eq.s32.totalorder %s28, 0
    %p118 = por %p116, %p117
    %s120 = sadd.s32 %s119, 1
    %p123 = scmp.eq.s32.totalorder %s22, 1
    %p124 = scmp.ne.s32.totalorder %s119, %s121
    %p125 = scmp.eq.s32.totalorder %s22, 0
    %p126 = por %p124, %p125
    %p127 = scmp.ne.s32.totalorder %s119, %s121
    %p128 = scmp.eq.s32.totalorder %s27, 1
    %p129 = por %p127, %p128
    %p130 = scmp.ne.s32.totalorder %s121, %s122
    %p131 = scmp.eq.s32.totalorder %s27, 0
    %p132 = por %p130, %p131
    %p133 = scmp.ne.s32.totalorder %s121, %s122
    %p134 = scmp.eq.s32.totalorder %s28, 1
    %p135 = por %p133, %p134
    %p137 = scmp.ne.s32.totalorder %s122, %s136
    %p138 = scmp.eq.s32.totalorder %s28, 0
    %p139 = por %p137, %p138
    %s141 = sadd.s32 %s140, 1
    %p144 = scmp.eq.s32.totalorder %s22, 1
    %p145 = scmp.ne.s32.totalorder %s140, %s142
    %p146 = scmp.eq.s32.totalorder %s22, 0
    %p147 = por %p145, %p146
    %p148 = scmp.ne.s32.totalorder %s140, %s142
    %p149 = scmp.eq.s32.totalorder %s27, 1
    %p150 = por %p148, %p149
    %p151 = scmp.ne.s32.totalorder %s142, %s143
    %p152 = scmp.eq.s32.totalorder %s27, 0
    %p153 = por %p151, %p152
    %p154 = scmp.ne.s32.totalorder %s142, %s143
    %p155 = scmp.eq.s32.totalorder %s28, 1
    %p156 = por %p154, %p155
    %p158 = scmp.ne.s32.totalorder %s143, %s157
    %p159 = scmp.eq.s32.totalorder %s28, 0
    %p160 = por %p158, %p159
    %s162 = sadd.s32 %s161, 1
    %p165 = scmp.eq.s32.totalorder %s22, 1
    %p166 = scmp.ne.s32.totalorder %s161, %s163
    %p167 = scmp.eq.s32.totalorder %s22, 0
    %p168 = por %p166, %p167
    %p169 = scmp.ne.s32.totalorder %s161, %s163
    %p170 = scmp.eq.s32.totalorder %s27, 1
    %p171 = por %p169, %p170
    %p172 = scmp.ne.s32.totalorder %s163, %s164
    %p173 = scmp.eq.s32.totalorder %s27, 0
    %p174 = por %p172, %p173
    %p175 = scmp.ne.s32.totalorder %s163, %s164
    %p176 = scmp.eq.s32.totalorder %s28, 1
    %p177 = por %p175, %p176
    %p179 = scmp.ne.s32.totalorder %s164, %s178
    %p180 = scmp.eq.s32.totalorder %s28, 0
    %p181 = por %p179, %p180
    %s183 = sadd.s32 %s182, 1
    %p186 = scmp.eq.s32.totalorder %s22, 1
    %p187 = scmp.ne.s32.totalorder %s182, %s184
    %p188 = scmp.eq.s32.totalorder %s22, 0
    %p189 = por %p187, %p188
    %p190 = scmp.ne.s32.totalorder %s182, %s184
    %p191 = scmp.eq.s32.totalorder %s27, 1
    %p192 = por %p190, %p191
    %p193 = scmp.ne.s32.totalorder %s184, %s185
    %p194 = scmp.eq.s32.totalorder %s27, 0
    %p195 = por %p193, %p194
    %p196 = scmp.ne.s32.totalorder %s184, %s185
    %p197 = scmp.eq.s32.totalorder %s28, 1
    %p198 = por %p196, %p197
    %p200 = scmp.ne.s32.totalorder %s185, %s199
    %p201 = scmp.eq.s32.totalorder %s28, 0
    %p202 = por %p200, %p201
    %s204 = sadd.s32 %s203, 1
    %p207 = scmp.eq.s32.totalorder %s22, 1
    %p208 = scmp.ne.s32.totalorder %s203, %s205
    %p209 = scmp.eq.s32.totalorder %s22, 0
    %p210 = por %p208, %p209
    %p211 = scmp.ne.s32.totalorder %s203, %s205
    %p212 = scmp.eq.s32.totalorder %s27, 1
    %p213 = por %p211, %p212
    %p214 = scmp.ne.s32.totalorder %s205, %s206
    %p215 = scmp.eq.s32.totalorder %s27, 0
    %p216 = por %p214, %p215
    %p217 = scmp.ne.s32.totalorder %s205, %s206
    %p218 = scmp.eq.s32.totalorder %s28, 1
    %p219 = por %p217, %p218
    %p221 = scmp.ne.s32.totalorder %s206, %s220
    %p222 = scmp.eq.s32.totalorder %s28, 0
    %p223 = por %p221, %p222
    %s225 = sadd.s32 %s224, 1
    %p228 = scmp.eq.s32.totalorder %s22, 1
    %p229 = scmp.ne.s32.totalorder %s224, %s226
    %p230 = scmp.eq.s32.totalorder %s22, 0
    %p231 = por %p229, %p230
    %p232 = scmp.ne.s32.totalorder %s224, %s226
    %p233 = scmp.eq.s32.totalorder %s27, 1
    %p234 = por %p232, %p233
    %p235 = scmp.ne.s32.totalorder %s226, %s227
    %p236 = scmp.eq.s32.totalorder %s27, 0
    %p237 = por %p235, %p236
    %p238 = scmp.ne.s32.totalorder %s226, %s227
    %p239 = scmp.eq.s32.totalorder %s28, 1
    %p240 = por %p238, %p239
    %p242 = scmp.ne.s32.totalorder %s227, %s241
    %p243 = scmp.eq.s32.totalorder %s28, 0
    %p244 = por %p242, %p243
    %s246 = sadd.s32 %s245, 1
    %p249 = scmp.eq.s32.totalorder %s22, 1
    %p250 = scmp.ne.s32.totalorder %s245, %s247
    %p251 = scmp.eq.s32.totalorder %s22, 0
    %p252 = por %p250, %p251
    %p253 = scmp.ne.s32.totalorder %s245, %s247
    %p254 = scmp.eq.s32.totalorder %s27, 1
    %p255 = por %p253, %p254
    %p256 = scmp.ne.s32.totalorder %s247, %s248
    %p257 = scmp.eq.s32.totalorder %s27, 0
    %p258 = por %p256, %p257
    %p259 = scmp.ne.s32.totalorder %s247, %s248
    %p260 = scmp.eq.s32.totalorder %s28, 1
    %p261 = por %p259, %p260
    %p263 = scmp.ne.s32.totalorder %s248, %s262
    %p264 = scmp.eq.s32.totalorder %s28, 0
    %p265 = por %p263, %p264
    %s267 = sadd.s32 %s266, 1
    %p270 = scmp.eq.s32.totalorder %s22, 1
    %p271 = scmp.ne.s32.totalorder %s266, %s268
    %p272 = scmp.eq.s32.totalorder %s22, 0
    %p273 = por %p271, %p272
    %p274 = scmp.ne.s32.totalorder %s266, %s268
    %p275 = scmp.eq.s32.totalorder %s27, 1
    %p276 = por %p274, %p275
    %p277 = scmp.ne.s32.totalorder %s268, %s269
    %p278 = scmp.eq.s32.totalorder %s27, 0
    %p279 = por %p277, %p278
    %p280 = scmp.ne.s32.totalorder %s268, %s269
    %p281 = scmp.eq.s32.totalorder %s28, 1
    %p282 = por %p280, %p281
    %p284 = scmp.ne.s32.totalorder %s269, %s283
    %p285 = scmp.eq.s32.totalorder %s28, 0
    %p286 = por %p284, %p285
    %s288 = sadd.s32 %s287, 1
    %p291 = scmp.eq.s32.totalorder %s22, 1
    %p292 = scmp.ne.s32.totalorder %s287, %s289
    %p293 = scmp.eq.s32.totalorder %s22, 0
    %p294 = por %p292, %p293
    %p295 = scmp.ne.s32.totalorder %s287, %s289
    %p296 = scmp.eq.s32.totalorder %s27, 1
    %p297 = por %p295, %p296
    %p298 = scmp.ne.s32.totalorder %s289, %s290
    %p299 = scmp.eq.s32.totalorder %s27, 0
    %p300 = por %p298, %p299
    %p301 = scmp.ne.s32.totalorder %s289, %s290
    %p302 = scmp.eq.s32.totalorder %s28, 1
    %p303 = por %p301, %p302
    %p305 = scmp.ne.s32.totalorder %s290, %s304
    %p306 = scmp.eq.s32.totalorder %s28, 0
    %p307 = por %p305, %p306
    %s309 = sadd.s32 %s308, 1
    %p312 = scmp.eq.s32.totalorder %s22, 1
    %p313 = scmp.ne.s32.totalorder %s308, %s310
    %p314 = scmp.eq.s32.totalorder %s22, 0
    %p315 = por %p313, %p314
    %p316 = scmp.ne.s32.totalorder %s308, %s310
    %p317 = scmp.eq.s32.totalorder %s27, 1
    %p318 = por %p316, %p317
    %p319 = scmp.ne.s32.totalorder %s310, %s311
    %p320 = scmp.eq.s32.totalorder %s27, 0
    %p321 = por %p319, %p320
    %p322 = scmp.ne.s32.totalorder %s310, %s311
    %p323 = scmp.eq.s32.totalorder %s28, 1
    %p324 = por %p322, %p323
    %p326 = scmp.ne.s32.totalorder %s311, %s325
    %p327 = scmp.eq.s32.totalorder %s28, 0
    %p328 = por %p326, %p327
    %s330 = sadd.s32 %s329, 1
    %p333 = scmp.eq.s32.totalorder %s22, 1
    %p334 = scmp.ne.s32.totalorder %s329, %s331
    %p335 = scmp.eq.s32.totalorder %s22, 0
    %p336 = por %p334, %p335
    %p337 = scmp.ne.s32.totalorder %s329, %s331
    %p338 = scmp.eq.s32.totalorder %s27, 1
    %p339 = por %p337, %p338
    %p340 = scmp.ne.s32.totalorder %s331, %s332
    %p341 = scmp.eq.s32.totalorder %s27, 0
    %p342 = por %p340, %p341
    %p343 = scmp.ne.s32.totalorder %s331, %s332
    %p344 = scmp.eq.s32.totalorder %s28, 1
    %p345 = por %p343, %p344
    %p347 = scmp.ne.s32.totalorder %s332, %s346
    %p348 = scmp.eq.s32.totalorder %s28, 0
    %p349 = por %p347, %p348
    %s351 = sadd.s32 %s350, 1
    %p354 = scmp.eq.s32.totalorder %s22, 1
    %p355 = scmp.ne.s32.totalorder %s350, %s352
    %p356 = scmp.eq.s32.totalorder %s22, 0
    %p357 = por %p355, %p356
    %p358 = scmp.ne.s32.totalorder %s350, %s352
    %p359 = scmp.eq.s32.totalorder %s27, 1
    %p360 = por %p358, %p359
    %p361 = scmp.ne.s32.totalorder %s352, %s353
    %p362 = scmp.eq.s32.totalorder %s27, 0
    %p363 = por %p361, %p362
    %p364 = scmp.ne.s32.totalorder %s352, %s353
    %p365 = scmp.eq.s32.totalorder %s28, 1
    %p366 = por %p364, %p365
    %p368 = scmp.ne.s32.totalorder %s353, %s367
    %p369 = scmp.eq.s32.totalorder %s28, 0
    %p370 = por %p368, %p369
    %s371 = ssub.s32 %s22, %s29
    %p372 = scmp.eq.s32.totalorder %s371, 0
    %s374 = sadd.s32 %s373, 1
    %s375 = scalar_select %p372, %s373, %s374
    %p378 = pneg %p372
    %p379 = scmp.eq.s32.totalorder %s22, 1
    %p380 = por %p378, %p379
    %p381 = scmp.ne.s32.totalorder %s373, %s376
    %p382 = scmp.eq.s32.totalorder %s22, 0
    %p383 = por %p381, %p382
    %p384 = scmp.ne.s32.totalorder %s373, %s376
    %p385 = scmp.eq.s32.totalorder %s27, 1
    %p386 = por %p384, %p385
    %p387 = scmp.ne.s32.totalorder %s376, %s377
    %p388 = scmp.eq.s32.totalorder %s27, 0
    %p389 = por %p387, %p388
    %p390 = scmp.ne.s32.totalorder %s376, %s377
    %p391 = scmp.eq.s32.totalorder %s28, 1
    %p392 = por %p390, %p391
    %p394 = scmp.ne.s32.totalorder %s377, %s393
    %p395 = scmp.eq.s32.totalorder %s28, 0
    %p396 = por %p394, %p395
    %p397 = scmp.le.s32.totalorder 1, %s22
    %p398 = scmp.lt.s32.totalorder %s22, 3
    %p399 = pnand %p397, %p398
    %p400 = pneg %p399
    // Predicated region
    $region9: #{autoencoder_forward.1} parent=5 // pred_check
      _
    $region10: #{autoencoder_forward.1} parent=5 // pred_check_branch
      %402 = sbr.rel (%p399) target = $region12
    $region11: #{autoencoder_forward.1} parent=5 // pred_region
      %s403 = ssub.s32 %s22, 1
      // Predicated region
      $region13: #{autoencoder_forward.1} parent=11 // pred_check
        %p404 = pneg %p69
      $region14: #{autoencoder_forward.1} parent=11 // pred_check_branch
        %406 = sbr.rel (%p404) target = $region16
      $region15: #{autoencoder_forward.1} parent=11 // pred_region
        _
      $region16: #{autoencoder_forward.1} parent=11 // pred_fallthru
        _
      // Predicated region
      $region17: #{autoencoder_forward.1} parent=11 // pred_check
        %p407 = pneg %p90
      $region18: #{autoencoder_forward.1} parent=11 // pred_check_branch
        %409 = sbr.rel (%p407) target = $region20
      $region19: #{autoencoder_forward.1} parent=11 // pred_region
        _
      $region20: #{autoencoder_forward.1} parent=11 // pred_fallthru
        _
      // Predicated region
      $region21: #{autoencoder_forward.1} parent=11 // pred_check
        %p410 = pneg %p111
      $region22: #{autoencoder_forward.1} parent=11 // pred_check_branch
        %412 = sbr.rel (%p410) target = $region24
      $region23: #{autoencoder_forward.1} parent=11 // pred_region
        _
      $region24: #{autoencoder_forward.1} parent=11 // pred_fallthru
        _
      // Predicated region
      $region25: #{autoencoder_forward.1} parent=11 // pred_check
        %p413 = pneg %p132
      $region26: #{autoencoder_forward.1} parent=11 // pred_check_branch
        %415 = sbr.rel (%p413) target = $region28
      $region27: #{autoencoder_forward.1} parent=11 // pred_region
        _
      $region28: #{autoencoder_forward.1} parent=11 // pred_fallthru
        _
      // Predicated region
      $region29: #{autoencoder_forward.1} parent=11 // pred_check
        %p416 = pneg %p153
      $region30: #{autoencoder_forward.1} parent=11 // pred_check_branch
        %418 = sbr.rel (%p416) target = $region32
      $region31: #{autoencoder_forward.1} parent=11 // pred_region
        _
      $region32: #{autoencoder_forward.1} parent=11 // pred_fallthru
        _
      // Predicated region
      $region33: #{autoencoder_forward.1} parent=11 // pred_check
        %p419 = pneg %p174
      $region34: #{autoencoder_forward.1} parent=11 // pred_check_branch
        %421 = sbr.rel (%p419) target = $region36
      $region35: #{autoencoder_forward.1} parent=11 // pred_region
        _
      $region36: #{autoencoder_forward.1} parent=11 // pred_fallthru
        _
      // Predicated region
      $region37: #{autoencoder_forward.1} parent=11 // pred_check
        %p422 = pneg %p195
      $region38: #{autoencoder_forward.1} parent=11 // pred_check_branch
        %424 = sbr.rel (%p422) target = $region40
      $region39: #{autoencoder_forward.1} parent=11 // pred_region
        _
      $region40: #{autoencoder_forward.1} parent=11 // pred_fallthru
        _
      // Predicated region
      $region41: #{autoencoder_forward.1} parent=11 // pred_check
        %p425 = pneg %p216
      $region42: #{autoencoder_forward.1} parent=11 // pred_check_branch
        %427 = sbr.rel (%p425) target = $region44
      $region43: #{autoencoder_forward.1} parent=11 // pred_region
        _
      $region44: #{autoencoder_forward.1} parent=11 // pred_fallthru
        _
      // Predicated region
      $region45: #{autoencoder_forward.1} parent=11 // pred_check
        %p428 = pneg %p237
      $region46: #{autoencoder_forward.1} parent=11 // pred_check_branch
        %430 = sbr.rel (%p428) target = $region48
      $region47: #{autoencoder_forward.1} parent=11 // pred_region
        _
      $region48: #{autoencoder_forward.1} parent=11 // pred_fallthru
        _
      // Predicated region
      $region49: #{autoencoder_forward.1} parent=11 // pred_check
        %p431 = pneg %p258
      $region50: #{autoencoder_forward.1} parent=11 // pred_check_branch
        %433 = sbr.rel (%p431) target = $region52
      $region51: #{autoencoder_forward.1} parent=11 // pred_region
        _
      $region52: #{autoencoder_forward.1} parent=11 // pred_fallthru
        _
      // Predicated region
      $region53: #{autoencoder_forward.1} parent=11 // pred_check
        %p434 = pneg %p279
      $region54: #{autoencoder_forward.1} parent=11 // pred_check_branch
        %436 = sbr.rel (%p434) target = $region56
      $region55: #{autoencoder_forward.1} parent=11 // pred_region
        _
      $region56: #{autoencoder_forward.1} parent=11 // pred_fallthru
        _
      // Predicated region
      $region57: #{autoencoder_forward.1} parent=11 // pred_check
        %p437 = pneg %p300
      $region58: #{autoencoder_forward.1} parent=11 // pred_check_branch
        %439 = sbr.rel (%p437) target = $region60
      $region59: #{autoencoder_forward.1} parent=11 // pred_region
        _
      $region60: #{autoencoder_forward.1} parent=11 // pred_fallthru
        _
      // Predicated region
      $region61: #{autoencoder_forward.1} parent=11 // pred_check
        %p440 = pneg %p321
      $region62: #{autoencoder_forward.1} parent=11 // pred_check_branch
        %442 = sbr.rel (%p440) target = $region64
      $region63: #{autoencoder_forward.1} parent=11 // pred_region
        _
      $region64: #{autoencoder_forward.1} parent=11 // pred_fallthru
        _
      // Predicated region
      $region65: #{autoencoder_forward.1} parent=11 // pred_check
        %p443 = pneg %p342
      $region66: #{autoencoder_forward.1} parent=11 // pred_check_branch
        %445 = sbr.rel (%p443) target = $region68
      $region67: #{autoencoder_forward.1} parent=11 // pred_region
        _
      $region68: #{autoencoder_forward.1} parent=11 // pred_fallthru
        _
      // Predicated region
      $region69: #{autoencoder_forward.1} parent=11 // pred_check
        %p446 = pneg %p363
      $region70: #{autoencoder_forward.1} parent=11 // pred_check_branch
        %448 = sbr.rel (%p446) target = $region72
      $region71: #{autoencoder_forward.1} parent=11 // pred_region
        _
      $region72: #{autoencoder_forward.1} parent=11 // pred_fallthru
        _
    $region12: #{autoencoder_forward.1} parent=5 // pred_fallthru
      _
    %p449 = scmp.lt.s32.totalorder %s22, 2
    // Predicated region
    $region73: #{autoencoder_forward.1} parent=5 // pred_check
      %p450 = pneg %p449
    $region74: #{autoencoder_forward.1} parent=5 // pred_check_branch
      %452 = sbr.rel (%p450) target = $region76
    $region75: #{autoencoder_forward.1} parent=5 // pred_region
      // Predicated region
      $region77: #{autoencoder_forward.1} parent=75 // pred_check
        %p453 = pneg %p42
      $region78: #{autoencoder_forward.1} parent=75 // pred_check_branch
        %455 = sbr.rel (%p453) target = $region80
      $region79: #{autoencoder_forward.1} parent=75 // pred_region
        %p456 = scmp.lt.s32.totalorder %s22, 1
        %s457 = scalar_select %p456, %s22, 1
        %s458 = smul.addr %s457, 4
        %s459 = smul.addr %s458, 8
        %s460 = scalar_lea.vmem %s0, %s459
      $region80: #{autoencoder_forward.1} parent=75 // pred_fallthru
        _
    $region76: #{autoencoder_forward.1} parent=5 // pred_fallthru
      _
    %p461 = scmp.le.s32.totalorder 1, %s22
    %p462 = scmp.lt.s32.totalorder %s22, 3
    %p463 = pnand %p461, %p462
    %p464 = pneg %p463
    // Predicated region
    $region81: #{autoencoder_forward.1} parent=5 // pred_check
      _
    $region82: #{autoencoder_forward.1} parent=5 // pred_check_branch
      %466 = sbr.rel (%p463) target = $region84
    $region83: #{autoencoder_forward.1} parent=5 // pred_region
      %s467 = ssub.s32 %s22, 1
      %p468 = scmp.lt.s32.totalorder %s27, 1
      %s469 = scalar_select %p468, %s27, 1
      %s470 = smul.addr %s469, 4
      %s471 = smul.addr %s470, 8
      %s472 = scalar_lea.vmem %s0, %s471
      %p473 = pneg %p48
      %p474 = pneg %p45
      %p475 = pneg %p69
      %p476 = pneg %p66
      %p477 = pneg %p90
      %p478 = pneg %p87
      %p479 = pneg %p111
      %p480 = pneg %p108
      %p481 = pneg %p132
      %p482 = pneg %p129
      %p483 = pneg %p153
      %p484 = pneg %p150
      %p485 = pneg %p174
      %p486 = pneg %p171
      %p487 = pneg %p195
      %p488 = pneg %p192
      %p489 = pneg %p216
      %p490 = pneg %p213
      %p491 = pneg %p237
      %p492 = pneg %p234
      %p493 = pneg %p258
      %p494 = pneg %p255
      %p495 = pneg %p279
      %p496 = pneg %p276
      %p497 = pneg %p300
      %p498 = pneg %p297
      %p499 = pneg %p321
      %p500 = pneg %p318
      %p501 = pneg %p342
      %p502 = pneg %p339
      %p503 = pneg %p363
      %p504 = pneg %p360
      %p505 = pneg %p389
      %p506 = pneg %p386
      %p507 = scmp.lt.s32.totalorder %s27, 1
      %s508 = scalar_select %p507, %s27, 1
      %s509 = smul.addr %s508, 4
      %s510 = smul.addr %s509, 8
      %s511 = scalar_lea.vmem %s16, %s510
      %p512 = scmp.lt.s32.totalorder %s27, 1
      %s513 = scalar_select %p512, %s27, 1
      %s514 = smul.addr %s513, 4
      %s515 = smul.addr %s514, 8
      %s516 = scalar_lea.vmem %s0, %s515
      %p517 = scmp.lt.s32.totalorder %s27, 1
      %s518 = scalar_select %p517, %s27, 1
      %s519 = smul.addr %s518, 4
      %s520 = smul.addr %s519, 8
      %s521 = scalar_lea.vmem %s16, %s520
      %v522 = vld [vmem:[%s516] sm:$0xff]
      %v523 = vld [vmem:[%s516 + $0x8] sm:$0xff]
      %v524 = vld [vmem:[%s516 + $0x10] sm:$0xff]
      %v525 = vld [vmem:[%s516 + $0x18] sm:$0xf]
      %v526 = vld [vmem:[%s1] sm:$0x1f]
      %vm527 = vcmask 228352
      %v529 = vsel %vm527, %v526, 0
      %vm531 = vcmask 1043456
      %v533 = vsel %vm531, %v525, 0
      %535 = vmatprep.subr.mxu0 0.0
      %536 = vmatpush1.msra.mxu0 %v522
      %537 = vmatprep.subr.mxu0 0.0
      %538 = vmatpush1.msra.mxu0 %v523
      %539 = vmatprep.subr.mxu0 0.0
      %540 = vmatpush1.msra.mxu0 %v524
      %541 = vmatprep.subr.mxu0 0.0
      %542 = vmatpush1.msra.mxu0 %v533
      %543 = vmatprep.subr.mxu0 0.0
      %544 = vmatpush1.msra.mxu0 0.0
      %545 = vmatprep.subr.mxu0 0.0
      %546 = vmatpush1.msra.mxu0 0.0
      %547 = vmatprep.subr.mxu0 0.0
      %548 = vmatpush1.msra.mxu0 0.0
      %549 = vmatprep.subr.mxu0 0.0
      %550 = vmatpush1.msra.mxu0 0.0
      %551 = vmatprep.subr.mxu0 0.0
      %552 = vmatpush1.msra.mxu0 0.0
      %553 = vmatprep.subr.mxu0 0.0
      %554 = vmatpush1.msra.mxu0 0.0
      %555 = vmatprep.subr.mxu0 0.0
      %556 = vmatpush1.msra.mxu0 0.0
      %557 = vmatprep.subr.mxu0 0.0
      %558 = vmatpush1.msra.mxu0 0.0
      %559 = vmatprep.subr.mxu0 0.0
      %560 = vmatpush1.msra.mxu0 0.0
      %561 = vmatprep.subr.mxu0 0.0
      %562 = vmatpush1.msra.mxu0 0.0
      %563 = vmatprep.subr.mxu0 0.0
      %564 = vmatpush1.msra.mxu0 0.0
      %565 = vmatprep.subr.mxu0 0.0
      %566 = vmatpush1.msra.mxu0 0.0
      %567 = vmatprep.subr.mxu0 0.0
      %568 = vmatpush1.msra.mxu0 0.0
      %569 = vmatprep.subr.mxu0 0.0
      %570 = vmatpush1.msra.mxu0 0.0
      %571 = vmatprep.subr.mxu0 0.0
      %572 = vmatpush1.msra.mxu0 0.0
      %573 = vmatprep.subr.mxu0 0.0
      %574 = vmatpush1.msra.mxu0 0.0
      %575 = vmatprep.subr.mxu0 0.0
      %576 = vmatpush1.msra.mxu0 0.0
      %577 = vmatprep.subr.mxu0 0.0
      %578 = vmatpush1.msra.mxu0 0.0
      %579 = vmatprep.subr.mxu0 0.0
      %580 = vmatpush1.msra.mxu0 0.0
      %581 = vmatprep.subr.mxu0 0.0
      %582 = vmatpush1.msra.mxu0 0.0
      %583 = vmatprep.subr.mxu0 0.0
      %584 = vmatpush1.msra.mxu0 0.0
      %585 = vmatprep.subr.mxu0 0.0
      %586 = vmatpush1.msra.mxu0 0.0
      %587 = vmatprep.subr.mxu0 0.0
      %588 = vmatpush1.msra.mxu0 0.0
      %589 = vmatprep.subr.mxu0 0.0
      %590 = vmatpush1.msra.mxu0 0.0
      %591 = vmatprep.subr.mxu0 0.0
      %592 = vmatpush1.msra.mxu0 0.0
      %593 = vmatprep.subr.mxu0 0.0
      %594 = vmatpush1.msra.mxu0 0.0
      %595 = vmatprep.subr.mxu0 0.0
      %596 = vmatpush1.msra.mxu0 0.0
      %597 = vmatprep.subr.mxu0 0.0
      %598 = vmatpush1.msra.mxu0 0.0
      %599 = vmatprep.mubr.f32.mxu0 0.0
      %600 = vmatmul.mubr.f32.gmra.mrb[0].mxu0 %v529
      %v601 = vpop.f32.mrb[0].mxu0
      %v602 = vadd.f32 0.0, %v601
      %v603 = vpop.f32.mrb[0].mxu0
      %604 = vdwg.mxu0
      %s605 = scalar_lea.vmem %s1, 8
      %v606 = vld [vmem:[%s605] sm:$0x1f]
      %v608 = vsel %vm527, %v606, 0
      %610 = vmatprep.subr.mxu0 0.0
      %611 = vmatpush1.msra.mxu0 %v522
      %612 = vmatprep.subr.mxu0 0.0
      %613 = vmatpush1.msra.mxu0 %v523
      %614 = vmatprep.subr.mxu0 0.0
      %615 = vmatpush1.msra.mxu0 %v524
      %616 = vmatprep.subr.mxu0 0.0
      %617 = vmatpush1.msra.mxu0 %v533
      %618 = vmatprep.subr.mxu0 0.0
      %619 = vmatpush1.msra.mxu0 0.0
      %620 = vmatprep.subr.mxu0 0.0
      %621 = vmatpush1.msra.mxu0 0.0
      %622 = vmatprep.subr.mxu0 0.0
      %623 = vmatpush1.msra.mxu0 0.0
      %624 = vmatprep.subr.mxu0 0.0
      %625 = vmatpush1.msra.mxu0 0.0
      %626 = vmatprep.subr.mxu0 0.0
      %627 = vmatpush1.msra.mxu0 0.0
      %628 = vmatprep.subr.mxu0 0.0
      %629 = vmatpush1.msra.mxu0 0.0
      %630 = vmatprep.subr.mxu0 0.0
      %631 = vmatpush1.msra.mxu0 0.0
      %632 = vmatprep.subr.mxu0 0.0
      %633 = vmatpush1.msra.mxu0 0.0
      %634 = vmatprep.subr.mxu0 0.0
      %635 = vmatpush1.msra.mxu0 0.0
      %636 = vmatprep.subr.mxu0 0.0
      %637 = vmatpush1.msra.mxu0 0.0
      %638 = vmatprep.subr.mxu0 0.0
      %639 = vmatpush1.msra.mxu0 0.0
      %640 = vmatprep.subr.mxu0 0.0
      %641 = vmatpush1.msra.mxu0 0.0
      %642 = vmatprep.subr.mxu0 0.0
      %643 = vmatpush1.msra.mxu0 0.0
      %644 = vmatprep.subr.mxu0 0.0
      %645 = vmatpush1.msra.mxu0 0.0
      %646 = vmatprep.subr.mxu0 0.0
      %647 = vmatpush1.msra.mxu0 0.0
      %648 = vmatprep.subr.mxu0 0.0
      %649 = vmatpush1.msra.mxu0 0.0
      %650 = vmatprep.subr.mxu0 0.0
      %651 = vmatpush1.msra.mxu0 0.0
      %652 = vmatprep.subr.mxu0 0.0
      %653 = vmatpush1.msra.mxu0 0.0
      %654 = vmatprep.subr.mxu0 0.0
      %655 = vmatpush1.msra.mxu0 0.0
      %656 = vmatprep.subr.mxu0 0.0
      %657 = vmatpush1.msra.mxu0 0.0
      %658 = vmatprep.subr.mxu0 0.0
      %659 = vmatpush1.msra.mxu0 0.0
      %660 = vmatprep.subr.mxu0 0.0
      %661 = vmatpush1.msra.mxu0 0.0
      %662 = vmatprep.subr.mxu0 0.0
      %663 = vmatpush1.msra.mxu0 0.0
      %664 = vmatprep.subr.mxu0 0.0
      %665 = vmatpush1.msra.mxu0 0.0
      %666 = vmatprep.subr.mxu0 0.0
      %667 = vmatpush1.msra.mxu0 0.0
      %668 = vmatprep.subr.mxu0 0.0
      %669 = vmatpush1.msra.mxu0 0.0
      %670 = vmatprep.subr.mxu0 0.0
      %671 = vmatpush1.msra.mxu0 0.0
      %672 = vmatprep.subr.mxu0 0.0
      %673 = vmatpush1.msra.mxu0 0.0
      %674 = vmatprep.mubr.f32.mxu0 0.0
      %675 = vmatmul.mubr.f32.gmra.mrb[0].mxu0 %v608
      %v676 = vpop.f32.mrb[0].mxu0
      %v677 = vadd.f32 0.0, %v676
      %v678 = vpop.f32.mrb[0].mxu0
      %679 = vdwg.mxu0
      %s680 = scalar_lea.vmem %s1, 16
      %v681 = vld [vmem:[%s680] sm:$0x1f]
      %v683 = vsel %vm527, %v681, 0
      %685 = vmatprep.subr.mxu0 0.0
      %686 = vmatpush1.msra.mxu0 %v522
      %687 = vmatprep.subr.mxu0 0.0
      %688 = vmatpush1.msra.mxu0 %v523
      %689 = vmatprep.subr.mxu0 0.0
      %690 = vmatpush1.msra.mxu0 %v524
      %691 = vmatprep.subr.mxu0 0.0
      %692 = vmatpush1.msra.mxu0 %v533
      %693 = vmatprep.subr.mxu0 0.0
      %694 = vmatpush1.msra.mxu0 0.0
      %695 = vmatprep.subr.mxu0 0.0
      %696 = vmatpush1.msra.mxu0 0.0
      %697 = vmatprep.subr.mxu0 0.0
      %698 = vmatpush1.msra.mxu0 0.0
      %699 = vmatprep.subr.mxu0 0.0
      %700 = vmatpush1.msra.mxu0 0.0
      %701 = vmatprep.subr.mxu0 0.0
      %702 = vmatpush1.msra.mxu0 0.0
      %703 = vmatprep.subr.mxu0 0.0
      %704 = vmatpush1.msra.mxu0 0.0
      %705 = vmatprep.subr.mxu0 0.0
      %706 = vmatpush1.msra.mxu0 0.0
      %707 = vmatprep.subr.mxu0 0.0
      %708 = vmatpush1.msra.mxu0 0.0
      %709 = vmatprep.subr.mxu0 0.0
      %710 = vmatpush1.msra.mxu0 0.0
      %711 = vmatprep.subr.mxu0 0.0
      %712 = vmatpush1.msra.mxu0 0.0
      %713 = vmatprep.subr.mxu0 0.0
      %714 = vmatpush1.msra.mxu0 0.0
      %715 = vmatprep.subr.mxu0 0.0
      %716 = vmatpush1.msra.mxu0 0.0
      %717 = vmatprep.subr.mxu0 0.0
      %718 = vmatpush1.msra.mxu0 0.0
      %719 = vmatprep.subr.mxu0 0.0
      %720 = vmatpush1.msra.mxu0 0.0
      %721 = vmatprep.subr.mxu0 0.0
      %722 = vmatpush1.msra.mxu0 0.0
      %723 = vmatprep.subr.mxu0 0.0
      %724 = vmatpush1.msra.mxu0 0.0
      %725 = vmatprep.subr.mxu0 0.0
      %726 = vmatpush1.msra.mxu0 0.0
      %727 = vmatprep.subr.mxu0 0.0
      %728 = vmatpush1.msra.mxu0 0.0
      %729 = vmatprep.subr.mxu0 0.0
      %730 = vmatpush1.msra.mxu0 0.0
      %731 = vmatprep.subr.mxu0 0.0
      %732 = vmatpush1.msra.mxu0 0.0
      %733 = vmatprep.subr.mxu0 0.0
      %734 = vmatpush1.msra.mxu0 0.0
      %735 = vmatprep.subr.mxu0 0.0
      %736 = vmatpush1.msra.mxu0 0.0
      %737 = vmatprep.subr.mxu0 0.0
      %738 = vmatpush1.msra.mxu0 0.0
      %739 = vmatprep.subr.mxu0 0.0
      %740 = vmatpush1.msra.mxu0 0.0
      %741 = vmatprep.subr.mxu0 0.0
      %742 = vmatpush1.msra.mxu0 0.0
      %743 = vmatprep.subr.mxu0 0.0
      %744 = vmatpush1.msra.mxu0 0.0
      %745 = vmatprep.subr.mxu0 0.0
      %746 = vmatpush1.msra.mxu0 0.0
      %747 = vmatprep.subr.mxu0 0.0
      %748 = vmatpush1.msra.mxu0 0.0
      %749 = vmatprep.mubr.f32.mxu0 0.0
      %750 = vmatmul.mubr.f32.gmra.mrb[0].mxu0 %v683
      %v751 = vpop.f32.mrb[0].mxu0
      %v752 = vadd.f32 0.0, %v751
      %v753 = vpop.f32.mrb[0].mxu0
      %754 = vdwg.mxu0
      %v755 = vld [vmem:[%s3] sm:$0x1]
      %v756 = vld [vmem:[%s2] sm:$0xff]
      %v757 = vld [vmem:[%s2 + $0x8] sm:$0xff]
      %v758 = vld [vmem:[%s2 + $0x10] sm:$0xff]
      %v759 = vld [vmem:[%s2 + $0x18] sm:$0xf]
      %v761 = vsel %vm527, %v602, 0
      %v764 = vsel %vm531, %v759, 0
      %766 = vmatprep.subr.mxu0 0.0
      %767 = vmatpush1.msra.mxu0 %v756
      %768 = vmatprep.subr.mxu0 0.0
      %769 = vmatpush1.msra.mxu0 %v757
      %770 = vmatprep.subr.mxu0 0.0
      %771 = vmatpush1.msra.mxu0 %v758
      %772 = vmatprep.subr.mxu0 0.0
      %773 = vmatpush1.msra.mxu0 %v764
      %774 = vmatprep.subr.mxu0 0.0
      %775 = vmatpush1.msra.mxu0 0.0
      %776 = vmatprep.subr.mxu0 0.0
      %777 = vmatpush1.msra.mxu0 0.0
      %778 = vmatprep.subr.mxu0 0.0
      %779 = vmatpush1.msra.mxu0 0.0
      %780 = vmatprep.subr.mxu0 0.0
      %781 = vmatpush1.msra.mxu0 0.0
      %782 = vmatprep.subr.mxu0 0.0
      %783 = vmatpush1.msra.mxu0 0.0
      %784 = vmatprep.subr.mxu0 0.0
      %785 = vmatpush1.msra.mxu0 0.0
      %786 = vmatprep.subr.mxu0 0.0
      %787 = vmatpush1.msra.mxu0 0.0
      %788 = vmatprep.subr.mxu0 0.0
      %789 = vmatpush1.msra.mxu0 0.0
      %790 = vmatprep.subr.mxu0 0.0
      %791 = vmatpush1.msra.mxu0 0.0
      %792 = vmatprep.subr.mxu0 0.0
      %793 = vmatpush1.msra.mxu0 0.0
      %794 = vmatprep.subr.mxu0 0.0
      %795 = vmatpush1.msra.mxu0 0.0
      %796 = vmatprep.subr.mxu0 0.0
      %797 = vmatpush1.msra.mxu0 0.0
      %798 = vmatprep.subr.mxu0 0.0
      %799 = vmatpush1.msra.mxu0 0.0
      %800 = vmatprep.subr.mxu0 0.0
      %801 = vmatpush1.msra.mxu0 0.0
      %802 = vmatprep.subr.mxu0 0.0
      %803 = vmatpush1.msra.mxu0 0.0
      %804 = vmatprep.subr.mxu0 0.0
      %805 = vmatpush1.msra.mxu0 0.0
      %806 = vmatprep.subr.mxu0 0.0
      %807 = vmatpush1.msra.mxu0 0.0
      %808 = vmatprep.subr.mxu0 0.0
      %809 = vmatpush1.msra.mxu0 0.0
      %810 = vmatprep.subr.mxu0 0.0
      %811 = vmatpush1.msra.mxu0 0.0
      %812 = vmatprep.subr.mxu0 0.0
      %813 = vmatpush1.msra.mxu0 0.0
      %814 = vmatprep.subr.mxu0 0.0
      %815 = vmatpush1.msra.mxu0 0.0
      %816 = vmatprep.subr.mxu0 0.0
      %817 = vmatpush1.msra.mxu0 0.0
      %818 = vmatprep.subr.mxu0 0.0
      %819 = vmatpush1.msra.mxu0 0.0
      %820 = vmatprep.subr.mxu0 0.0
      %821 = vmatpush1.msra.mxu0 0.0
      %822 = vmatprep.subr.mxu0 0.0
      %823 = vmatpush1.msra.mxu0 0.0
      %824 = vmatprep.subr.mxu0 0.0
      %825 = vmatpush1.msra.mxu0 0.0
      %826 = vmatprep.subr.mxu0 0.0
      %827 = vmatpush1.msra.mxu0 0.0
      %828 = vmatprep.subr.mxu0 0.0
      %829 = vmatpush1.msra.mxu0 0.0
      %830 = vmatprep.mubr.f32.mxu0 0.0
      %831 = vmatmul.mubr.f32.gmra.mrb[0].mxu0 %v761
      %v832 = vpop.f32.mrb[0].mxu0
      %v833 = vadd.f32 0.0, %v832
      %v834 = vpop.f32.mrb[0].mxu0
      %835 = vdwg.mxu0
      %v837 = vlaneseq
      %v838 = vshrl.u32 %v837, 7
      %v839 = vsub.s32 0, %v838
      %v840 = vrot.slane %v755, %v839
      %v842 = vadd.f32 %v840, %v833
      %s843 = scalar_lea.vmem %s2, 32
      %v844 = vld [vmem:[%s843] sm:$0xff]
      %v845 = vld [vmem:[%s843 + $0x8] sm:$0xff]
      %v846 = vld [vmem:[%s843 + $0x10] sm:$0xff]
      %v847 = vld [vmem:[%s843 + $0x18] sm:$0xf]
      %v849 = vsel %vm527, %v677, 0
      %v852 = vsel %vm531, %v847, 0
      %854 = vmatprep.subr.mxu0 0.0
      %855 = vmatpush1.msra.mxu0 %v844
      %856 = vmatprep.subr.mxu0 0.0
      %857 = vmatpush1.msra.mxu0 %v845
      %858 = vmatprep.subr.mxu0 0.0
      %859 = vmatpush1.msra.mxu0 %v846
      %860 = vmatprep.subr.mxu0 0.0
      %861 = vmatpush1.msra.mxu0 %v852
      %862 = vmatprep.subr.mxu0 0.0
      %863 = vmatpush1.msra.mxu0 0.0
      %864 = vmatprep.subr.mxu0 0.0
      %865 = vmatpush1.msra.mxu0 0.0
      %866 = vmatprep.subr.mxu0 0.0
      %867 = vmatpush1.msra.mxu0 0.0
      %868 = vmatprep.subr.mxu0 0.0
      %869 = vmatpush1.msra.mxu0 0.0
      %870 = vmatprep.subr.mxu0 0.0
      %871 = vmatpush1.msra.mxu0 0.0
      %872 = vmatprep.subr.mxu0 0.0
      %873 = vmatpush1.msra.mxu0 0.0
      %874 = vmatprep.subr.mxu0 0.0
      %875 = vmatpush1.msra.mxu0 0.0
      %876 = vmatprep.subr.mxu0 0.0
      %877 = vmatpush1.msra.mxu0 0.0
      %878 = vmatprep.subr.mxu0 0.0
      %879 = vmatpush1.msra.mxu0 0.0
      %880 = vmatprep.subr.mxu0 0.0
      %881 = vmatpush1.msra.mxu0 0.0
      %882 = vmatprep.subr.mxu0 0.0
      %883 = vmatpush1.msra.mxu0 0.0
      %884 = vmatprep.subr.mxu0 0.0
      %885 = vmatpush1.msra.mxu0 0.0
      %886 = vmatprep.subr.mxu0 0.0
      %887 = vmatpush1.msra.mxu0 0.0
      %888 = vmatprep.subr.mxu0 0.0
      %889 = vmatpush1.msra.mxu0 0.0
      %890 = vmatprep.subr.mxu0 0.0
      %891 = vmatpush1.msra.mxu0 0.0
      %892 = vmatprep.subr.mxu0 0.0
      %893 = vmatpush1.msra.mxu0 0.0
      %894 = vmatprep.subr.mxu0 0.0
      %895 = vmatpush1.msra.mxu0 0.0
      %896 = vmatprep.subr.mxu0 0.0
      %897 = vmatpush1.msra.mxu0 0.0
      %898 = vmatprep.subr.mxu0 0.0
      %899 = vmatpush1.msra.mxu0 0.0
      %900 = vmatprep.subr.mxu0 0.0
      %901 = vmatpush1.msra.mxu0 0.0
      %902 = vmatprep.subr.mxu0 0.0
      %903 = vmatpush1.msra.mxu0 0.0
      %904 = vmatprep.subr.mxu0 0.0
      %905 = vmatpush1.msra.mxu0 0.0
      %906 = vmatprep.subr.mxu0 0.0
      %907 = vmatpush1.msra.mxu0 0.0
      %908 = vmatprep.subr.mxu0 0.0
      %909 = vmatpush1.msra.mxu0 0.0
      %910 = vmatprep.subr.mxu0 0.0
      %911 = vmatpush1.msra.mxu0 0.0
      %912 = vmatprep.subr.mxu0 0.0
      %913 = vmatpush1.msra.mxu0 0.0
      %914 = vmatprep.subr.mxu0 0.0
      %915 = vmatpush1.msra.mxu0 0.0
      %916 = vmatprep.subr.mxu0 0.0
      %917 = vmatpush1.msra.mxu0 0.0
      %918 = vmatprep.mubr.f32.mxu0 0.0
      %919 = vmatmul.mubr.f32.gmra.mrb[0].mxu0 %v849
      %v920 = vpop.f32.mrb[0].mxu0
      %v921 = vadd.f32 0.0, %v920
      %v922 = vpop.f32.mrb[0].mxu0
      %923 = vdwg.mxu0
      %v924 = vadd.f32 %v842, %v921
      %s925 = scalar_lea.vmem %s2, 64
      %v926 = vld [vmem:[%s925] sm:$0xff]
      %v927 = vld [vmem:[%s925 + $0x8] sm:$0xff]
      %v928 = vld [vmem:[%s925 + $0x10] sm:$0xff]
      %v929 = vld [vmem:[%s925 + $0x18] sm:$0xf]
      %v931 = vsel %vm527, %v752, 0
      %v934 = vsel %vm531, %v929, 0
      %936 = vmatprep.subr.mxu0 0.0
      %937 = vmatpush1.msra.mxu0 %v926
      %938 = vmatprep.subr.mxu0 0.0
      %939 = vmatpush1.msra.mxu0 %v927
      %940 = vmatprep.subr.mxu0 0.0
      %941 = vmatpush1.msra.mxu0 %v928
      %942 = vmatprep.subr.mxu0 0.0
      %943 = vmatpush1.msra.mxu0 %v934
      %944 = vmatprep.subr.mxu0 0.0
      %945 = vmatpush1.msra.mxu0 0.0
      %946 = vmatprep.subr.mxu0 0.0
      %947 = vmatpush1.msra.mxu0 0.0
      %948 = vmatprep.subr.mxu0 0.0
      %949 = vmatpush1.msra.mxu0 0.0
      %950 = vmatprep.subr.mxu0 0.0
      %951 = vmatpush1.msra.mxu0 0.0
      %952 = vmatprep.subr.mxu0 0.0
      %953 = vmatpush1.msra.mxu0 0.0
      %954 = vmatprep.subr.mxu0 0.0
      %955 = vmatpush1.msra.mxu0 0.0
      %956 = vmatprep.subr.mxu0 0.0
      %957 = vmatpush1.msra.mxu0 0.0
      %958 = vmatprep.subr.mxu0 0.0
      %959 = vmatpush1.msra.mxu0 0.0
      %960 = vmatprep.subr.mxu0 0.0
      %961 = vmatpush1.msra.mxu0 0.0
      %962 = vmatprep.subr.mxu0 0.0
      %963 = vmatpush1.msra.mxu0 0.0
      %964 = vmatprep.subr.mxu0 0.0
      %965 = vmatpush1.msra.mxu0 0.0
      %966 = vmatprep.subr.mxu0 0.0
      %967 = vmatpush1.msra.mxu0 0.0
      %968 = vmatprep.subr.mxu0 0.0
      %969 = vmatpush1.msra.mxu0 0.0
      %970 = vmatprep.subr.mxu0 0.0
      %971 = vmatpush1.msra.mxu0 0.0
      %972 = vmatprep.subr.mxu0 0.0
      %973 = vmatpush1.msra.mxu0 0.0
      %974 = vmatprep.subr.mxu0 0.0
      %975 = vmatpush1.msra.mxu0 0.0
      %976 = vmatprep.subr.mxu0 0.0
      %977 = vmatpush1.msra.mxu0 0.0
      %978 = vmatprep.subr.mxu0 0.0
      %979 = vmatpush1.msra.mxu0 0.0
      %980 = vmatprep.subr.mxu0 0.0
      %981 = vmatpush1.msra.mxu0 0.0
      %982 = vmatprep.subr.mxu0 0.0
      %983 = vmatpush1.msra.mxu0 0.0
      %984 = vmatprep.subr.mxu0 0.0
      %985 = vmatpush1.msra.mxu0 0.0
      %986 = vmatprep.subr.mxu0 0.0
      %987 = vmatpush1.msra.mxu0 0.0
      %988 = vmatprep.subr.mxu0 0.0
      %989 = vmatpush1.msra.mxu0 0.0
      %990 = vmatprep.subr.mxu0 0.0
      %991 = vmatpush1.msra.mxu0 0.0
      %992 = vmatprep.subr.mxu0 0.0
      %993 = vmatpush1.msra.mxu0 0.0
      %994 = vmatprep.subr.mxu0 0.0
      %995 = vmatpush1.msra.mxu0 0.0
      %996 = vmatprep.subr.mxu0 0.0
      %997 = vmatpush1.msra.mxu0 0.0
      %998 = vmatprep.subr.mxu0 0.0
      %999 = vmatpush1.msra.mxu0 0.0
      %1000 = vmatprep.mubr.f32.mxu0 0.0
      %1001 = vmatmul.mubr.f32.gmra.mrb[0].mxu0 %v931
      %v1002 = vpop.f32.mrb[0].mxu0
      %v1003 = vadd.f32 0.0, %v1002
      %v1004 = vpop.f32.mrb[0].mxu0
      %1005 = vdwg.mxu0
      %v1006 = vadd.f32 %v924, %v1003
      %v1007 = vmax.f32 %v1006, 0.0
      %s1008 = scalar_lea.vmem %s3, 1
      %v1009 = vld [vmem:[%s1008] sm:$0x1]
      %s1010 = scalar_lea.vmem %s2, 96
      %v1011 = vld [vmem:[%s1010] sm:$0xff]
      %v1012 = vld [vmem:[%s1010 + $0x8] sm:$0xff]
      %v1013 = vld [vmem:[%s1010 + $0x10] sm:$0xff]
      %v1014 = vld [vmem:[%s1010 + $0x18] sm:$0xf]
      %v1016 = vsel %vm531, %v1014, 0
      %1018 = vmatprep.subr.mxu0 0.0
      %1019 = vmatpush1.msra.mxu0 %v1011
      %1020 = vmatprep.subr.mxu0 0.0
      %1021 = vmatpush1.msra.mxu0 %v1012
      %1022 = vmatprep.subr.mxu0 0.0
      %1023 = vmatpush1.msra.mxu0 %v1013
      %1024 = vmatprep.subr.mxu0 0.0
      %1025 = vmatpush1.msra.mxu0 %v1016
      %1026 = vmatprep.subr.mxu0 0.0
      %1027 = vmatpush1.msra.mxu0 0.0
      %1028 = vmatprep.subr.mxu0 0.0
      %1029 = vmatpush1.msra.mxu0 0.0
      %1030 = vmatprep.subr.mxu0 0.0
      %1031 = vmatpush1.msra.mxu0 0.0
      %1032 = vmatprep.subr.mxu0 0.0
      %1033 = vmatpush1.msra.mxu0 0.0
      %1034 = vmatprep.subr.mxu0 0.0
      %1035 = vmatpush1.msra.mxu0 0.0
      %1036 = vmatprep.subr.mxu0 0.0
      %1037 = vmatpush1.msra.mxu0 0.0
      %1038 = vmatprep.subr.mxu0 0.0
      %1039 = vmatpush1.msra.mxu0 0.0
      %1040 = vmatprep.subr.mxu0 0.0
      %1041 = vmatpush1.msra.mxu0 0.0
      %1042 = vmatprep.subr.mxu0 0.0
      %1043 = vmatpush1.msra.mxu0 0.0
      %1044 = vmatprep.subr.mxu0 0.0
      %1045 = vmatpush1.msra.mxu0 0.0
      %1046 = vmatprep.subr.mxu0 0.0
      %1047 = vmatpush1.msra.mxu0 0.0
      %1048 = vmatprep.subr.mxu0 0.0
      %1049 = vmatpush1.msra.mxu0 0.0
      %1050 = vmatprep.subr.mxu0 0.0
      %1051 = vmatpush1.msra.mxu0 0.0
      %1052 = vmatprep.subr.mxu0 0.0
      %1053 = vmatpush1.msra.mxu0 0.0
      %1054 = vmatprep.subr.mxu0 0.0
      %1055 = vmatpush1.msra.mxu0 0.0
      %1056 = vmatprep.subr.mxu0 0.0
      %1057 = vmatpush1.msra.mxu0 0.0
      %1058 = vmatprep.subr.mxu0 0.0
      %1059 = vmatpush1.msra.mxu0 0.0
      %1060 = vmatprep.subr.mxu0 0.0
      %1061 = vmatpush1.msra.mxu0 0.0
      %1062 = vmatprep.subr.mxu0 0.0
      %1063 = vmatpush1.msra.mxu0 0.0
      %1064 = vmatprep.subr.mxu0 0.0
      %1065 = vmatpush1.msra.mxu0 0.0
      %1066 = vmatprep.subr.mxu0 0.0
      %1067 = vmatpush1.msra.mxu0 0.0
      %1068 = vmatprep.subr.mxu0 0.0
      %1069 = vmatpush1.msra.mxu0 0.0
      %1070 = vmatprep.subr.mxu0 0.0
      %1071 = vmatpush1.msra.mxu0 0.0
      %1072 = vmatprep.subr.mxu0 0.0
      %1073 = vmatpush1.msra.mxu0 0.0
      %1074 = vmatprep.subr.mxu0 0.0
      %1075 = vmatpush1.msra.mxu0 0.0
      %1076 = vmatprep.subr.mxu0 0.0
      %1077 = vmatpush1.msra.mxu0 0.0
      %1078 = vmatprep.subr.mxu0 0.0
      %1079 = vmatpush1.msra.mxu0 0.0
      %1080 = vmatprep.subr.mxu0 0.0
      %1081 = vmatpush1.msra.mxu0 0.0
      %1082 = vmatprep.mubr.f32.mxu0 0.0
      %1083 = vmatmul.mubr.f32.gmra.mrb[0].mxu0 %v761
      %v1084 = vpop.f32.mrb[0].mxu0
      %v1085 = vadd.f32 0.0, %v1084
      %v1086 = vpop.f32.mrb[0].mxu0
      %1087 = vdwg.mxu0
      %v1089 = vlaneseq
      %v1090 = vshrl.u32 %v1089, 7
      %v1091 = vsub.s32 0, %v1090
      %v1092 = vrot.slane %v1009, %v1091
      %v1094 = vadd.f32 %v1092, %v1085
      %s1095 = scalar_lea.vmem %s2, 128
      %v1096 = vld [vmem:[%s1095] sm:$0xff]
      %v1097 = vld [vmem:[%s1095 + $0x8] sm:$0xff]
      %v1098 = vld [vmem:[%s1095 + $0x10] sm:$0xff]
      %v1099 = vld [vmem:[%s1095 + $0x18] sm:$0xf]
      %v1101 = vsel %vm531, %v1099, 0
      %1103 = vmatprep.subr.mxu0 0.0
      %1104 = vmatpush1.msra.mxu0 %v1096
      %1105 = vmatprep.subr.mxu0 0.0
      %1106 = vmatpush1.msra.mxu0 %v1097
      %1107 = vmatprep.subr.mxu0 0.0
      %1108 = vmatpush1.msra.mxu0 %v1098
      %1109 = vmatprep.subr.mxu0 0.0
      %1110 = vmatpush1.msra.mxu0 %v1101
      %1111 = vmatprep.subr.mxu0 0.0
      %1112 = vmatpush1.msra.mxu0 0.0
      %1113 = vmatprep.subr.mxu0 0.0
      %1114 = vmatpush1.msra.mxu0 0.0
      %1115 = vmatprep.subr.mxu0 0.0
      %1116 = vmatpush1.msra.mxu0 0.0
      %1117 = vmatprep.subr.mxu0 0.0
      %1118 = vmatpush1.msra.mxu0 0.0
      %1119 = vmatprep.subr.mxu0 0.0
      %1120 = vmatpush1.msra.mxu0 0.0
      %1121 = vmatprep.subr.mxu0 0.0
      %1122 = vmatpush1.msra.mxu0 0.0
      %1123 = vmatprep.subr.mxu0 0.0
      %1124 = vmatpush1.msra.mxu0 0.0
      %1125 = vmatprep.subr.mxu0 0.0
      %1126 = vmatpush1.msra.mxu0 0.0
      %1127 = vmatprep.subr.mxu0 0.0
      %1128 = vmatpush1.msra.mxu0 0.0
      %1129 = vmatprep.subr.mxu0 0.0
      %1130 = vmatpush1.msra.mxu0 0.0
      %1131 = vmatprep.subr.mxu0 0.0
      %1132 = vmatpush1.msra.mxu0 0.0
      %1133 = vmatprep.subr.mxu0 0.0
      %1134 = vmatpush1.msra.mxu0 0.0
      %1135 = vmatprep.subr.mxu0 0.0
      %1136 = vmatpush1.msra.mxu0 0.0
      %1137 = vmatprep.subr.mxu0 0.0
      %1138 = vmatpush1.msra.mxu0 0.0
      %1139 = vmatprep.subr.mxu0 0.0
      %1140 = vmatpush1.msra.mxu0 0.0
      %1141 = vmatprep.subr.mxu0 0.0
      %1142 = vmatpush1.msra.mxu0 0.0
      %1143 = vmatprep.subr.mxu0 0.0
      %1144 = vmatpush1.msra.mxu0 0.0
      %1145 = vmatprep.subr.mxu0 0.0
      %1146 = vmatpush1.msra.mxu0 0.0
      %1147 = vmatprep.subr.mxu0 0.0
      %1148 = vmatpush1.msra.mxu0 0.0
      %1149 = vmatprep.subr.mxu0 0.0
      %1150 = vmatpush1.msra.mxu0 0.0
      %1151 = vmatprep.subr.mxu0 0.0
      %1152 = vmatpush1.msra.mxu0 0.0
      %1153 = vmatprep.subr.mxu0 0.0
      %1154 = vmatpush1.msra.mxu0 0.0
      %1155 = vmatprep.subr.mxu0 0.0
      %1156 = vmatpush1.msra.mxu0 0.0
      %1157 = vmatprep.subr.mxu0 0.0
      %1158 = vmatpush1.msra.mxu0 0.0
      %1159 = vmatprep.subr.mxu0 0.0
      %1160 = vmatpush1.msra.mxu0 0.0
      %1161 = vmatprep.subr.mxu0 0.0
      %1162 = vmatpush1.msra.mxu0 0.0
      %1163 = vmatprep.subr.mxu0 0.0
      %1164 = vmatpush1.msra.mxu0 0.0
      %1165 = vmatprep.subr.mxu0 0.0
      %1166 = vmatpush1.msra.mxu0 0.0
      %1167 = vmatprep.mubr.f32.mxu0 0.0
      %1168 = vmatmul.mubr.f32.gmra.mrb[0].mxu0 %v849
      %v1169 = vpop.f32.mrb[0].mxu0
      %v1170 = vadd.f32 0.0, %v1169
      %v1171 = vpop.f32.mrb[0].mxu0
      %1172 = vdwg.mxu0
      %v1173 = vadd.f32 %v1094, %v1170
      %s1174 = scalar_lea.vmem %s2, 160
      %v1175 = vld [vmem:[%s1174] sm:$0xff]
      %v1176 = vld [vmem:[%s1174 + $0x8] sm:$0xff]
      %v1177 = vld [vmem:[%s1174 + $0x10] sm:$0xff]
      %v1178 = vld [vmem:[%s1174 + $0x18] sm:$0xf]
      %v1180 = vsel %vm531, %v1178, 0
      %1182 = vmatprep.subr.mxu0 0.0
      %1183 = vmatpush1.msra.mxu0 %v1175
      %1184 = vmatprep.subr.mxu0 0.0
      %1185 = vmatpush1.msra.mxu0 %v1176
      %1186 = vmatprep.subr.mxu0 0.0
      %1187 = vmatpush1.msra.mxu0 %v1177
      %1188 = vmatprep.subr.mxu0 0.0
      %1189 = vmatpush1.msra.mxu0 %v1180
      %1190 = vmatprep.subr.mxu0 0.0
      %1191 = vmatpush1.msra.mxu0 0.0
      %1192 = vmatprep.subr.mxu0 0.0
      %1193 = vmatpush1.msra.mxu0 0.0
      %1194 = vmatprep.subr.mxu0 0.0
      %1195 = vmatpush1.msra.mxu0 0.0
      %1196 = vmatprep.subr.mxu0 0.0
      %1197 = vmatpush1.msra.mxu0 0.0
      %1198 = vmatprep.subr.mxu0 0.0
      %1199 = vmatpush1.msra.mxu0 0.0
      %1200 = vmatprep.subr.mxu0 0.0
      %1201 = vmatpush1.msra.mxu0 0.0
      %1202 = vmatprep.subr.mxu0 0.0
      %1203 = vmatpush1.msra.mxu0 0.0
      %1204 = vmatprep.subr.mxu0 0.0
      %1205 = vmatpush1.msra.mxu0 0.0
      %1206 = vmatprep.subr.mxu0 0.0
      %1207 = vmatpush1.msra.mxu0 0.0
      %1208 = vmatprep.subr.mxu0 0.0
      %1209 = vmatpush1.msra.mxu0 0.0
      %1210 = vmatprep.subr.mxu0 0.0
      %1211 = vmatpush1.msra.mxu0 0.0
      %1212 = vmatprep.subr.mxu0 0.0
      %1213 = vmatpush1.msra.mxu0 0.0
      %1214 = vmatprep.subr.mxu0 0.0
      %1215 = vmatpush1.msra.mxu0 0.0
      %1216 = vmatprep.subr.mxu0 0.0
      %1217 = vmatpush1.msra.mxu0 0.0
      %1218 = vmatprep.subr.mxu0 0.0
      %1219 = vmatpush1.msra.mxu0 0.0
      %1220 = vmatprep.subr.mxu0 0.0
      %1221 = vmatpush1.msra.mxu0 0.0
      %1222 = vmatprep.subr.mxu0 0.0
      %1223 = vmatpush1.msra.mxu0 0.0
      %1224 = vmatprep.subr.mxu0 0.0
      %1225 = vmatpush1.msra.mxu0 0.0
      %1226 = vmatprep.subr.mxu0 0.0
      %1227 = vmatpush1.msra.mxu0 0.0
      %1228 = vmatprep.subr.mxu0 0.0
      %1229 = vmatpush1.msra.mxu0 0.0
      %1230 = vmatprep.subr.mxu0 0.0
      %1231 = vmatpush1.msra.mxu0 0.0
      %1232 = vmatprep.subr.mxu0 0.0
      %1233 = vmatpush1.msra.mxu0 0.0
      %1234 = vmatprep.subr.mxu0 0.0
      %1235 = vmatpush1.msra.mxu0 0.0
      %1236 = vmatprep.subr.mxu0 0.0
      %1237 = vmatpush1.msra.mxu0 0.0
      %1238 = vmatprep.subr.mxu0 0.0
      %1239 = vmatpush1.msra.mxu0 0.0
      %1240 = vmatprep.subr.mxu0 0.0
      %1241 = vmatpush1.msra.mxu0 0.0
      %1242 = vmatprep.subr.mxu0 0.0
      %1243 = vmatpush1.msra.mxu0 0.0
      %1244 = vmatprep.subr.mxu0 0.0
      %1245 = vmatpush1.msra.mxu0 0.0
      %1246 = vmatprep.mubr.f32.mxu0 0.0
      %1247 = vmatmul.mubr.f32.gmra.mrb[0].mxu0 %v931
      %v1248 = vpop.f32.mrb[0].mxu0
      %v1249 = vadd.f32 0.0, %v1248
      %v1250 = vpop.f32.mrb[0].mxu0
      %1251 = vdwg.mxu0
      %v1252 = vadd.f32 %v1173, %v1249
      %v1253 = vmax.f32 %v1252, 0.0
      %v1254 = vmax.f32 %v1007, %v1253
      %s1255 = scalar_lea.vmem %s1, 24
      %v1256 = vld [vmem:[%s1255] sm:$0x1f]
      %v1258 = vsel %vm527, %v1256, 0
      %1260 = vmatprep.subr.mxu0 0.0
      %1261 = vmatpush1.msra.mxu0 %v522
      %1262 = vmatprep.subr.mxu0 0.0
      %1263 = vmatpush1.msra.mxu0 %v523
      %1264 = vmatprep.subr.mxu0 0.0
      %1265 = vmatpush1.msra.mxu0 %v524
      %1266 = vmatprep.subr.mxu0 0.0
      %1267 = vmatpush1.msra.mxu0 %v533
      %1268 = vmatprep.subr.mxu0 0.0
      %1269 = vmatpush1.msra.mxu0 0.0
      %1270 = vmatprep.subr.mxu0 0.0
      %1271 = vmatpush1.msra.mxu0 0.0
      %1272 = vmatprep.subr.mxu0 0.0
      %1273 = vmatpush1.msra.mxu0 0.0
      %1274 = vmatprep.subr.mxu0 0.0
      %1275 = vmatpush1.msra.mxu0 0.0
      %1276 = vmatprep.subr.mxu0 0.0
      %1277 = vmatpush1.msra.mxu0 0.0
      %1278 = vmatprep.subr.mxu0 0.0
      %1279 = vmatpush1.msra.mxu0 0.0
      %1280 = vmatprep.subr.mxu0 0.0
      %1281 = vmatpush1.msra.mxu0 0.0
      %1282 = vmatprep.subr.mxu0 0.0
      %1283 = vmatpush1.msra.mxu0 0.0
      %1284 = vmatprep.subr.mxu0 0.0
      %1285 = vmatpush1.msra.mxu0 0.0
      %1286 = vmatprep.subr.mxu0 0.0
      %1287 = vmatpush1.msra.mxu0 0.0
      %1288 = vmatprep.subr.mxu0 0.0
      %1289 = vmatpush1.msra.mxu0 0.0
      %1290 = vmatprep.subr.mxu0 0.0
      %1291 = vmatpush1.msra.mxu0 0.0
      %1292 = vmatprep.subr.mxu0 0.0
      %1293 = vmatpush1.msra.mxu0 0.0
      %1294 = vmatprep.subr.mxu0 0.0
      %1295 = vmatpush1.msra.mxu0 0.0
      %1296 = vmatprep.subr.mxu0 0.0
      %1297 = vmatpush1.msra.mxu0 0.0
      %1298 = vmatprep.subr.mxu0 0.0
      %1299 = vmatpush1.msra.mxu0 0.0
      %1300 = vmatprep.subr.mxu0 0.0
      %1301 = vmatpush1.msra.mxu0 0.0
      %1302 = vmatprep.subr.mxu0 0.0
      %1303 = vmatpush1.msra.mxu0 0.0
      %1304 = vmatprep.subr.mxu0 0.0
      %1305 = vmatpush1.msra.mxu0 0.0
      %1306 = vmatprep.subr.mxu0 0.0
      %1307 = vmatpush1.msra.mxu0 0.0
      %1308 = vmatprep.subr.mxu0 0.0
      %1309 = vmatpush1.msra.mxu0 0.0
      %1310 = vmatprep.subr.mxu0 0.0
      %1311 = vmatpush1.msra.mxu0 0.0
      %1312 = vmatprep.subr.mxu0 0.0
      %1313 = vmatpush1.msra.mxu0 0.0
      %1314 = vmatprep.subr.mxu0 0.0
      %1315 = vmatpush1.msra.mxu0 0.0
      %1316 = vmatprep.subr.mxu0 0.0
      %1317 = vmatpush1.msra.mxu0 0.0
      %1318 = vmatprep.subr.mxu0 0.0
      %1319 = vmatpush1.msra.mxu0 0.0
      %1320 = vmatprep.subr.mxu0 0.0
      %1321 = vmatpush1.msra.mxu0 0.0
      %1322 = vmatprep.subr.mxu0 0.0
      %1323 = vmatpush1.msra.mxu0 0.0
      %1324 = vmatprep.mubr.f32.mxu0 0.0
      %1325 = vmatmul.mubr.f32.gmra.mrb[0].mxu0 %v1258
      %v1326 = vpop.f32.mrb[0].mxu0
      %v1327 = vadd.f32 0.0, %v1326
      %v1328 = vpop.f32.mrb[0].mxu0
      %1329 = vdwg.mxu0
      %s1330 = scalar_lea.vmem %s1, 32
      %v1331 = vld [vmem:[%s1330] sm:$0x1f]
      %v1333 = vsel %vm527, %v1331, 0
      %1335 = vmatprep.subr.mxu0 0.0
      %1336 = vmatpush1.msra.mxu0 %v522
      %1337 = vmatprep.subr.mxu0 0.0
      %1338 = vmatpush1.msra.mxu0 %v523
      %1339 = vmatprep.subr.mxu0 0.0
      %1340 = vmatpush1.msra.mxu0 %v524
      %1341 = vmatprep.subr.mxu0 0.0
      %1342 = vmatpush1.msra.mxu0 %v533
      %1343 = vmatprep.subr.mxu0 0.0
      %1344 = vmatpush1.msra.mxu0 0.0
      %1345 = vmatprep.subr.mxu0 0.0
      %1346 = vmatpush1.msra.mxu0 0.0
      %1347 = vmatprep.subr.mxu0 0.0
      %1348 = vmatpush1.msra.mxu0 0.0
      %1349 = vmatprep.subr.mxu0 0.0
      %1350 = vmatpush1.msra.mxu0 0.0
      %1351 = vmatprep.subr.mxu0 0.0
      %1352 = vmatpush1.msra.mxu0 0.0
      %1353 = vmatprep.subr.mxu0 0.0
      %1354 = vmatpush1.msra.mxu0 0.0
      %1355 = vmatprep.subr.mxu0 0.0
      %1356 = vmatpush1.msra.mxu0 0.0
      %1357 = vmatprep.subr.mxu0 0.0
      %1358 = vmatpush1.msra.mxu0 0.0
      %1359 = vmatprep.subr.mxu0 0.0
      %1360 = vmatpush1.msra.mxu0 0.0
      %1361 = vmatprep.subr.mxu0 0.0
      %1362 = vmatpush1.msra.mxu0 0.0
      %1363 = vmatprep.subr.mxu0 0.0
      %1364 = vmatpush1.msra.mxu0 0.0
      %1365 = vmatprep.subr.mxu0 0.0
      %1366 = vmatpush1.msra.mxu0 0.0
      %1367 = vmatprep.subr.mxu0 0.0
      %1368 = vmatpush1.msra.mxu0 0.0
      %1369 = vmatprep.subr.mxu0 0.0
      %1370 = vmatpush1.msra.mxu0 0.0
      %1371 = vmatprep.subr.mxu0 0.0
      %1372 = vmatpush1.msra.mxu0 0.0
      %1373 = vmatprep.subr.mxu0 0.0
      %1374 = vmatpush1.msra.mxu0 0.0
      %1375 = vmatprep.subr.mxu0 0.0
      %1376 = vmatpush1.msra.mxu0 0.0
      %1377 = vmatprep.subr.mxu0 0.0
      %1378 = vmatpush1.msra.mxu0 0.0
      %1379 = vmatprep.subr.mxu0 0.0
      %1380 = vmatpush1.msra.mxu0 0.0
      %1381 = vmatprep.subr.mxu0 0.0
      %1382 = vmatpush1.msra.mxu0 0.0
      %1383 = vmatprep.subr.mxu0 0.0
      %1384 = vmatpush1.msra.mxu0 0.0
      %1385 = vmatprep.subr.mxu0 0.0
      %1386 = vmatpush1.msra.mxu0 0.0
      %1387 = vmatprep.subr.mxu0 0.0
      %1388 = vmatpush1.msra.mxu0 0.0
      %1389 = vmatprep.subr.mxu0 0.0
      %1390 = vmatpush1.msra.mxu0 0.0
      %1391 = vmatprep.subr.mxu0 0.0
      %1392 = vmatpush1.msra.mxu0 0.0
      %1393 = vmatprep.subr.mxu0 0.0
      %1394 = vmatpush1.msra.mxu0 0.0
      %1395 = vmatprep.subr.mxu0 0.0
      %1396 = vmatpush1.msra.mxu0 0.0
      %1397 = vmatprep.subr.mxu0 0.0
      %1398 = vmatpush1.msra.mxu0 0.0
      %1399 = vmatprep.mubr.f32.mxu0 0.0
      %1400 = vmatmul.mubr.f32.gmra.mrb[0].mxu0 %v1333
      %v1401 = vpop.f32.mrb[0].mxu0
      %v1402 = vadd.f32 0.0, %v1401
      %v1403 = vpop.f32.mrb[0].mxu0
      %1404 = vdwg.mxu0
      %s1405 = scalar_lea.vmem %s1, 40
      %v1406 = vld [vmem:[%s1405] sm:$0x1f]
      %v1408 = vsel %vm527, %v1406, 0
      %1410 = vmatprep.subr.mxu0 0.0
      %1411 = vmatpush1.msra.mxu0 %v522
      %1412 = vmatprep.subr.mxu0 0.0
      %1413 = vmatpush1.msra.mxu0 %v523
      %1414 = vmatprep.subr.mxu0 0.0
      %1415 = vmatpush1.msra.mxu0 %v524
      %1416 = vmatprep.subr.mxu0 0.0
      %1417 = vmatpush1.msra.mxu0 %v533
      %1418 = vmatprep.subr.mxu0 0.0
      %1419 = vmatpush1.msra.mxu0 0.0
      %1420 = vmatprep.subr.mxu0 0.0
      %1421 = vmatpush1.msra.mxu0 0.0
      %1422 = vmatprep.subr.mxu0 0.0
      %1423 = vmatpush1.msra.mxu0 0.0
      %1424 = vmatprep.subr.mxu0 0.0
      %1425 = vmatpush1.msra.mxu0 0.0
      %1426 = vmatprep.subr.mxu0 0.0
      %1427 = vmatpush1.msra.mxu0 0.0
      %1428 = vmatprep.subr.mxu0 0.0
      %1429 = vmatpush1.msra.mxu0 0.0
      %1430 = vmatprep.subr.mxu0 0.0
      %1431 = vmatpush1.msra.mxu0 0.0
      %1432 = vmatprep.subr.mxu0 0.0
      %1433 = vmatpush1.msra.mxu0 0.0
      %1434 = vmatprep.subr.mxu0 0.0
      %1435 = vmatpush1.msra.mxu0 0.0
      %1436 = vmatprep.subr.mxu0 0.0
      %1437 = vmatpush1.msra.mxu0 0.0
      %1438 = vmatprep.subr.mxu0 0.0
      %1439 = vmatpush1.msra.mxu0 0.0
      %1440 = vmatprep.subr.mxu0 0.0
      %1441 = vmatpush1.msra.mxu0 0.0
      %1442 = vmatprep.subr.mxu0 0.0
      %1443 = vmatpush1.msra.mxu0 0.0
      %1444 = vmatprep.subr.mxu0 0.0
      %1445 = vmatpush1.msra.mxu0 0.0
      %1446 = vmatprep.subr.mxu0 0.0
      %1447 = vmatpush1.msra.mxu0 0.0
      %1448 = vmatprep.subr.mxu0 0.0
      %1449 = vmatpush1.msra.mxu0 0.0
      %1450 = vmatprep.subr.mxu0 0.0
      %1451 = vmatpush1.msra.mxu0 0.0
      %1452 = vmatprep.subr.mxu0 0.0
      %1453 = vmatpush1.msra.mxu0 0.0
      %1454 = vmatprep.subr.mxu0 0.0
      %1455 = vmatpush1.msra.mxu0 0.0
      %1456 = vmatprep.subr.mxu0 0.0
      %1457 = vmatpush1.msra.mxu0 0.0
      %1458 = vmatprep.subr.mxu0 0.0
      %1459 = vmatpush1.msra.mxu0 0.0
      %1460 = vmatprep.subr.mxu0 0.0
      %1461 = vmatpush1.msra.mxu0 0.0
      %1462 = vmatprep.subr.mxu0 0.0
      %1463 = vmatpush1.msra.mxu0 0.0
      %1464 = vmatprep.subr.mxu0 0.0
      %1465 = vmatpush1.msra.mxu0 0.0
      %1466 = vmatprep.subr.mxu0 0.0
      %1467 = vmatpush1.msra.mxu0 0.0
      %1468 = vmatprep.subr.mxu0 0.0
      %1469 = vmatpush1.msra.mxu0 0.0
      %1470 = vmatprep.subr.mxu0 0.0
      %1471 = vmatpush1.msra.mxu0 0.0
      %1472 = vmatprep.subr.mxu0 0.0
      %1473 = vmatpush1.msra.mxu0 0.0
      %1474 = vmatprep.mubr.f32.mxu0 0.0
      %1475 = vmatmul.mubr.f32.gmra.mrb[0].mxu0 %v1408
      %v1476 = vpop.f32.mrb[0].mxu0
      %v1477 = vadd.f32 0.0, %v1476
      %v1478 = vpop.f32.mrb[0].mxu0
      %1479 = vdwg.mxu0
      %v1481 = vsel %vm527, %v1327, 0
      %1483 = vmatprep.subr.mxu0 0.0
      %1484 = vmatpush1.msra.mxu0 %v756
      %1485 = vmatprep.subr.mxu0 0.0
      %1486 = vmatpush1.msra.mxu0 %v757
      %1487 = vmatprep.subr.mxu0 0.0
      %1488 = vmatpush1.msra.mxu0 %v758
      %1489 = vmatprep.subr.mxu0 0.0
      %1490 = vmatpush1.msra.mxu0 %v764
      %1491 = vmatprep.subr.mxu0 0.0
      %1492 = vmatpush1.msra.mxu0 0.0
      %1493 = vmatprep.subr.mxu0 0.0
      %1494 = vmatpush1.msra.mxu0 0.0
      %1495 = vmatprep.subr.mxu0 0.0
      %1496 = vmatpush1.msra.mxu0 0.0
      %1497 = vmatprep.subr.mxu0 0.0
      %1498 = vmatpush1.msra.mxu0 0.0
      %1499 = vmatprep.subr.mxu0 0.0
      %1500 = vmatpush1.msra.mxu0 0.0
      %1501 = vmatprep.subr.mxu0 0.0
      %1502 = vmatpush1.msra.mxu0 0.0
      %1503 = vmatprep.subr.mxu0 0.0
      %1504 = vmatpush1.msra.mxu0 0.0
      %1505 = vmatprep.subr.mxu0 0.0
      %1506 = vmatpush1.msra.mxu0 0.0
      %1507 = vmatprep.subr.mxu0 0.0
      %1508 = vmatpush1.msra.mxu0 0.0
      %1509 = vmatprep.subr.mxu0 0.0
      %1510 = vmatpush1.msra.mxu0 0.0
      %1511 = vmatprep.subr.mxu0 0.0
      %1512 = vmatpush1.msra.mxu0 0.0
      %1513 = vmatprep.subr.mxu0 0.0
      %1514 = vmatpush1.msra.mxu0 0.0
      %1515 = vmatprep.subr.mxu0 0.0
      %1516 = vmatpush1.msra.mxu0 0.0
      %1517 = vmatprep.subr.mxu0 0.0
      %1518 = vmatpush1.msra.mxu0 0.0
      %1519 = vmatprep.subr.mxu0 0.0
      %1520 = vmatpush1.msra.mxu0 0.0
      %1521 = vmatprep.subr.mxu0 0.0
      %1522 = vmatpush1.msra.mxu0 0.0
      %1523 = vmatprep.subr.mxu0 0.0
      %1524 = vmatpush1.msra.mxu0 0.0
      %1525 = vmatprep.subr.mxu0 0.0
      %1526 = vmatpush1.msra.mxu0 0.0
      %1527 = vmatprep.subr.mxu0 0.0
      %1528 = vmatpush1.msra.mxu0 0.0
      %1529 = vmatprep.subr.mxu0 0.0
      %1530 = vmatpush1.msra.mxu0 0.0
      %1531 = vmatprep.subr.mxu0 0.0
      %1532 = vmatpush1.msra.mxu0 0.0
      %1533 = vmatprep.subr.mxu0 0.0
      %1534 = vmatpush1.msra.mxu0 0.0
      %1535 = vmatprep.subr.mxu0 0.0
      %1536 = vmatpush1.msra.mxu0 0.0
      %1537 = vmatprep.subr.mxu0 0.0
      %1538 = vmatpush1.msra.mxu0 0.0
      %1539 = vmatprep.subr.mxu0 0.0
      %1540 = vmatpush1.msra.mxu0 0.0
      %1541 = vmatprep.subr.mxu0 0.0
      %1542 = vmatpush1.msra.mxu0 0.0
      %1543 = vmatprep.subr.mxu0 0.0
      %1544 = vmatpush1.msra.mxu0 0.0
      %1545 = vmatprep.subr.mxu0 0.0
      %1546 = vmatpush1.msra.mxu0 0.0
      %1547 = vmatprep.mubr.f32.mxu0 0.0
      %1548 = vmatmul.mubr.f32.gmra.mrb[0].mxu0 %v1481
      %v1549 = vpop.f32.mrb[0].mxu0
      %v1550 = vadd.f32 0.0, %v1549
      %v1551 = vpop.f32.mrb[0].mxu0
      %1552 = vdwg.mxu0
      %v1553 = vadd.f32 %v840, %v1550
      %v1555 = vsel %vm527, %v1402, 0
      %1557 = vmatprep.subr.mxu0 0.0
      %1558 = vmatpush1.msra.mxu0 %v844
      %1559 = vmatprep.subr.mxu0 0.0
      %1560 = vmatpush1.msra.mxu0 %v845
      %1561 = vmatprep.subr.mxu0 0.0
      %1562 = vmatpush1.msra.mxu0 %v846
      %1563 = vmatprep.subr.mxu0 0.0
      %1564 = vmatpush1.msra.mxu0 %v852
      %1565 = vmatprep.subr.mxu0 0.0
      %1566 = vmatpush1.msra.mxu0 0.0
      %1567 = vmatprep.subr.mxu0 0.0
      %1568 = vmatpush1.msra.mxu0 0.0
      %1569 = vmatprep.subr.mxu0 0.0
      %1570 = vmatpush1.msra.mxu0 0.0
      %1571 = vmatprep.subr.mxu0 0.0
      %1572 = vmatpush1.msra.mxu0 0.0
      %1573 = vmatprep.subr.mxu0 0.0
      %1574 = vmatpush1.msra.mxu0 0.0
      %1575 = vmatprep.subr.mxu0 0.0
      %1576 = vmatpush1.msra.mxu0 0.0
      %1577 = vmatprep.subr.mxu0 0.0
      %1578 = vmatpush1.msra.mxu0 0.0
      %1579 = vmatprep.subr.mxu0 0.0
      %1580 = vmatpush1.msra.mxu0 0.0
      %1581 = vmatprep.subr.mxu0 0.0
      %1582 = vmatpush1.msra.mxu0 0.0
      %1583 = vmatprep.subr.mxu0 0.0
      %1584 = vmatpush1.msra.mxu0 0.0
      %1585 = vmatprep.subr.mxu0 0.0
      %1586 = vmatpush1.msra.mxu0 0.0
      %1587 = vmatprep.subr.mxu0 0.0
      %1588 = vmatpush1.msra.mxu0 0.0
      %1589 = vmatprep.subr.mxu0 0.0
      %1590 = vmatpush1.msra.mxu0 0.0
      %1591 = vmatprep.subr.mxu0 0.0
      %1592 = vmatpush1.msra.mxu0 0.0
      %1593 = vmatprep.subr.mxu0 0.0
      %1594 = vmatpush1.msra.mxu0 0.0
      %1595 = vmatprep.subr.mxu0 0.0
      %1596 = vmatpush1.msra.mxu0 0.0
      %1597 = vmatprep.subr.mxu0 0.0
      %1598 = vmatpush1.msra.mxu0 0.0
      %1599 = vmatprep.subr.mxu0 0.0
      %1600 = vmatpush1.msra.mxu0 0.0
      %1601 = vmatprep.subr.mxu0 0.0
      %1602 = vmatpush1.msra.mxu0 0.0
      %1603 = vmatprep.subr.mxu0 0.0
      %1604 = vmatpush1.msra.mxu0 0.0
      %1605 = vmatprep.subr.mxu0 0.0
      %1606 = vmatpush1.msra.mxu0 0.0
      %1607 = vmatprep.subr.mxu0 0.0
      %1608 = vmatpush1.msra.mxu0 0.0
      %1609 = vmatprep.subr.mxu0 0.0
      %1610 = vmatpush1.msra.mxu0 0.0
      %1611 = vmatprep.subr.mxu0 0.0
      %1612 = vmatpush1.msra.mxu0 0.0
      %1613 = vmatprep.subr.mxu0 0.0
      %1614 = vmatpush1.msra.mxu0 0.0
      %1615 = vmatprep.subr.mxu0 0.0
      %1616 = vmatpush1.msra.mxu0 0.0
      %1617 = vmatprep.subr.mxu0 0.0
      %1618 = vmatpush1.msra.mxu0 0.0
      %1619 = vmatprep.subr.mxu0 0.0
      %1620 = vmatpush1.msra.mxu0 0.0
      %1621 = vmatprep.mubr.f32.mxu0 0.0
      %1622 = vmatmul.mubr.f32.gmra.mrb[0].mxu0 %v1555
      %v1623 = vpop.f32.mrb[0].mxu0
      %v1624 = vadd.f32 0.0, %v1623
      %v1625 = vpop.f32.mrb[0].mxu0
      %1626 = vdwg.mxu0
      %v1627 = vadd.f32 %v1553, %v1624
      %v1629 = vsel %vm527, %v1477, 0
      %1631 = vmatprep.subr.mxu0 0.0
      %1632 = vmatpush1.msra.mxu0 %v926
      %1633 = vmatprep.subr.mxu0 0.0
      %1634 = vmatpush1.msra.mxu0 %v927
      %1635 = vmatprep.subr.mxu0 0.0
      %1636 = vmatpush1.msra.mxu0 %v928
      %1637 = vmatprep.subr.mxu0 0.0
      %1638 = vmatpush1.msra.mxu0 %v934
      %1639 = vmatprep.subr.mxu0 0.0
      %1640 = vmatpush1.msra.mxu0 0.0
      %1641 = vmatprep.subr.mxu0 0.0
      %1642 = vmatpush1.msra.mxu0 0.0
      %1643 = vmatprep.subr.mxu0 0.0
      %1644 = vmatpush1.msra.mxu0 0.0
      %1645 = vmatprep.subr.mxu0 0.0
      %1646 = vmatpush1.msra.mxu0 0.0
      %1647 = vmatprep.subr.mxu0 0.0
      %1648 = vmatpush1.msra.mxu0 0.0
      %1649 = vmatprep.subr.mxu0 0.0
      %1650 = vmatpush1.msra.mxu0 0.0
      %1651 = vmatprep.subr.mxu0 0.0
      %1652 = vmatpush1.msra.mxu0 0.0
      %1653 = vmatprep.subr.mxu0 0.0
      %1654 = vmatpush1.msra.mxu0 0.0
      %1655 = vmatprep.subr.mxu0 0.0
      %1656 = vmatpush1.msra.mxu0 0.0
      %1657 = vmatprep.subr.mxu0 0.0
      %1658 = vmatpush1.msra.mxu0 0.0
      %1659 = vmatprep.subr.mxu0 0.0
      %1660 = vmatpush1.msra.mxu0 0.0
      %1661 = vmatprep.subr.mxu0 0.0
      %1662 = vmatpush1.msra.mxu0 0.0
      %1663 = vmatprep.subr.mxu0 0.0
      %1664 = vmatpush1.msra.mxu0 0.0
      %1665 = vmatprep.subr.mxu0 0.0
      %1666 = vmatpush1.msra.mxu0 0.0
      %1667 = vmatprep.subr.mxu0 0.0
      %1668 = vmatpush1.msra.mxu0 0.0
      %1669 = vmatprep.subr.mxu0 0.0
      %1670 = vmatpush1.msra.mxu0 0.0
      %1671 = vmatprep.subr.mxu0 0.0
      %1672 = vmatpush1.msra.mxu0 0.0
      %1673 = vmatprep.subr.mxu0 0.0
      %1674 = vmatpush1.msra.mxu0 0.0
      %1675 = vmatprep.subr.mxu0 0.0
      %1676 = vmatpush1.msra.mxu0 0.0
      %1677 = vmatprep.subr.mxu0 0.0
      %1678 = vmatpush1.msra.mxu0 0.0
      %1679 = vmatprep.subr.mxu0 0.0
      %1680 = vmatpush1.msra.mxu0 0.0
      %1681 = vmatprep.subr.mxu0 0.0
      %1682 = vmatpush1.msra.mxu0 0.0
      %1683 = vmatprep.subr.mxu0 0.0
      %1684 = vmatpush1.msra.mxu0 0.0
      %1685 = vmatprep.subr.mxu0 0.0
      %1686 = vmatpush1.msra.mxu0 0.0
      %1687 = vmatprep.subr.mxu0 0.0
      %1688 = vmatpush1.msra.mxu0 0.0
      %1689 = vmatprep.subr.mxu0 0.0
      %1690 = vmatpush1.msra.mxu0 0.0
      %1691 = vmatprep.subr.mxu0 0.0
      %1692 = vmatpush1.msra.mxu0 0.0
      %1693 = vmatprep.subr.mxu0 0.0
      %1694 = vmatpush1.msra.mxu0 0.0
      %1695 = vmatprep.mubr.f32.mxu0 0.0
      %1696 = vmatmul.mubr.f32.gmra.mrb[0].mxu0 %v1629
      %v1697 = vpop.f32.mrb[0].mxu0
      %v1698 = vadd.f32 0.0, %v1697
      %v1699 = vpop.f32.mrb[0].mxu0
      %1700 = vdwg.mxu0
      %v1701 = vadd.f32 %v1627, %v1698
      %v1702 = vmax.f32 %v1701, 0.0
      %v1703 = vmax.f32 %v1254, %v1702
      %1704 = vmatprep.subr.mxu0 0.0
      %1705 = vmatpush1.msra.mxu0 %v1011
      %1706 = vmatprep.subr.mxu0 0.0
      %1707 = vmatpush1.msra.mxu0 %v1012
      %1708 = vmatprep.subr.mxu0 0.0
      %1709 = vmatpush1.msra.mxu0 %v1013
      %1710 = vmatprep.subr.mxu0 0.0
      %1711 = vmatpush1.msra.mxu0 %v1016
      %1712 = vmatprep.subr.mxu0 0.0
      %1713 = vmatpush1.msra.mxu0 0.0
      %1714 = vmatprep.subr.mxu0 0.0
      %1715 = vmatpush1.msra.mxu0 0.0
      %1716 = vmatprep.subr.mxu0 0.0
      %1717 = vmatpush1.msra.mxu0 0.0
      %1718 = vmatprep.subr.mxu0 0.0
      %1719 = vmatpush1.msra.mxu0 0.0
      %1720 = vmatprep.subr.mxu0 0.0
      %1721 = vmatpush1.msra.mxu0 0.0
      %1722 = vmatprep.subr.mxu0 0.0
      %1723 = vmatpush1.msra.mxu0 0.0
      %1724 = vmatprep.subr.mxu0 0.0
      %1725 = vmatpush1.msra.mxu0 0.0
      %1726 = vmatprep.subr.mxu0 0.0
      %1727 = vmatpush1.msra.mxu0 0.0
      %1728 = vmatprep.subr.mxu0 0.0
      %1729 = vmatpush1.msra.mxu0 0.0
      %1730 = vmatprep.subr.mxu0 0.0
      %1731 = vmatpush1.msra.mxu0 0.0
      %1732 = vmatprep.subr.mxu0 0.0
      %1733 = vmatpush1.msra.mxu0 0.0
      %1734 = vmatprep.subr.mxu0 0.0
      %1735 = vmatpush1.msra.mxu0 0.0
      %1736 = vmatprep.subr.mxu0 0.0
      %1737 = vmatpush1.msra.mxu0 0.0
      %1738 = vmatprep.subr.mxu0 0.0
      %1739 = vmatpush1.msra.mxu0 0.0
      %1740 = vmatprep.subr.mxu0 0.0
      %1741 = vmatpush1.msra.mxu0 0.0
      %1742 = vmatprep.subr.mxu0 0.0
      %1743 = vmatpush1.msra.mxu0 0.0
      %1744 = vmatprep.subr.mxu0 0.0
      %1745 = vmatpush1.msra.mxu0 0.0
      %1746 = vmatprep.subr.mxu0 0.0
      %1747 = vmatpush1.msra.mxu0 0.0
      %1748 = vmatprep.subr.mxu0 0.0
      %1749 = vmatpush1.msra.mxu0 0.0
      %1750 = vmatprep.subr.mxu0 0.0
      %1751 = vmatpush1.msra.mxu0 0.0
      %1752 = vmatprep.subr.mxu0 0.0
      %1753 = vmatpush1.msra.mxu0 0.0
      %1754 = vmatprep.subr.mxu0 0.0
      %1755 = vmatpush1.msra.mxu0 0.0
      %1756 = vmatprep.subr.mxu0 0.0
      %1757 = vmatpush1.msra.mxu0 0.0
      %1758 = vmatprep.subr.mxu0 0.0
      %1759 = vmatpush1.msra.mxu0 0.0
      %1760 = vmatprep.subr.mxu0 0.0
      %1761 = vmatpush1.msra.mxu0 0.0
      %1762 = vmatprep.subr.mxu0 0.0
      %1763 = vmatpush1.msra.mxu0 0.0
      %1764 = vmatprep.subr.mxu0 0.0
      %1765 = vmatpush1.msra.mxu0 0.0
      %1766 = vmatprep.subr.mxu0 0.0
      %1767 = vmatpush1.msra.mxu0 0.0
      %1768 = vmatprep.mubr.f32.mxu0 0.0
      %1769 = vmatmul.mubr.f32.gmra.mrb[0].mxu0 %v1481
      %v1770 = vpop.f32.mrb[0].mxu0
      %v1771 = vadd.f32 0.0, %v1770
      %v1772 = vpop.f32.mrb[0].mxu0
      %1773 = vdwg.mxu0
      %v1774 = vadd.f32 %v1092, %v1771
      %1775 = vmatprep.subr.mxu0 0.0
      %1776 = vmatpush1.msra.mxu0 %v1096
      %1777 = vmatprep.subr.mxu0 0.0
      %1778 = vmatpush1.msra.mxu0 %v1097
      %1779 = vmatprep.subr.mxu0 0.0
      %1780 = vmatpush1.msra.mxu0 %v1098
      %1781 = vmatprep.subr.mxu0 0.0
      %1782 = vmatpush1.msra.mxu0 %v1101
      %1783 = vmatprep.subr.mxu0 0.0
      %1784 = vmatpush1.msra.mxu0 0.0
      %1785 = vmatprep.subr.mxu0 0.0
      %1786 = vmatpush1.msra.mxu0 0.0
      %1787 = vmatprep.subr.mxu0 0.0
      %1788 = vmatpush1.msra.mxu0 0.0
      %1789 = vmatprep.subr.mxu0 0.0
      %1790 = vmatpush1.msra.mxu0 0.0
      %1791 = vmatprep.subr.mxu0 0.0
      %1792 = vmatpush1.msra.mxu0 0.0
      %1793 = vmatprep.subr.mxu0 0.0
      %1794 = vmatpush1.msra.mxu0 0.0
      %1795 = vmatprep.subr.mxu0 0.0
      %1796 = vmatpush1.msra.mxu0 0.0
      %1797 = vmatprep.subr.mxu0 0.0
      %1798 = vmatpush1.msra.mxu0 0.0
      %1799 = vmatprep.subr.mxu0 0.0
      %1800 = vmatpush1.msra.mxu0 0.0
      %1801 = vmatprep.subr.mxu0 0.0
      %1802 = vmatpush1.msra.mxu0 0.0
      %1803 = vmatprep.subr.mxu0 0.0
      %1804 = vmatpush1.msra.mxu0 0.0
      %1805 = vmatprep.subr.mxu0 0.0
      %1806 = vmatpush1.msra.mxu0 0.0
      %1807 = vmatprep.subr.mxu0 0.0
      %1808 = vmatpush1.msra.mxu0 0.0
      %1809 = vmatprep.subr.mxu0 0.0
      %1810 = vmatpush1.msra.mxu0 0.0
      %1811 = vmatprep.subr.mxu0 0.0
      %1812 = vmatpush1.msra.mxu0 0.0
      %1813 = vmatprep.subr.mxu0 0.0
      %1814 = vmatpush1.msra.mxu0 0.0
      %1815 = vmatprep.subr.mxu0 0.0
      %1816 = vmatpush1.msra.mxu0 0.0
      %1817 = vmatprep.subr.mxu0 0.0
      %1818 = vmatpush1.msra.mxu0 0.0
      %1819 = vmatprep.subr.mxu0 0.0
      %1820 = vmatpush1.msra.mxu0 0.0
      %1821 = vmatprep.subr.mxu0 0.0
      %1822 = vmatpush1.msra.mxu0 0.0
      %1823 = vmatprep.subr.mxu0 0.0
      %1824 = vmatpush1.msra.mxu0 0.0
      %1825 = vmatprep.subr.mxu0 0.0
      %1826 = vmatpush1.msra.mxu0 0.0
      %1827 = vmatprep.subr.mxu0 0.0
      %1828 = vmatpush1.msra.mxu0 0.0
      %1829 = vmatprep.subr.mxu0 0.0
      %1830 = vmatpush1.msra.mxu0 0.0
      %1831 = vmatprep.subr.mxu0 0.0
      %1832 = vmatpush1.msra.mxu0 0.0
      %1833 = vmatprep.subr.mxu0 0.0
      %1834 = vmatpush1.msra.mxu0 0.0
      %1835 = vmatprep.subr.mxu0 0.0
      %1836 = vmatpush1.msra.mxu0 0.0
      %1837 = vmatprep.subr.mxu0 0.0
      %1838 = vmatpush1.msra.mxu0 0.0
      %1839 = vmatprep.mubr.f32.mxu0 0.0
      %1840 = vmatmul.mubr.f32.gmra.mrb[0].mxu0 %v1555
      %v1841 = vpop.f32.mrb[0].mxu0
      %v1842 = vadd.f32 0.0, %v1841
      %v1843 = vpop.f32.mrb[0].mxu0
      %1844 = vdwg.mxu0
      %v1845 = vadd.f32 %v1774, %v1842
      %1846 = vmatprep.subr.mxu0 0.0
      %1847 = vmatpush1.msra.mxu0 %v1175
      %1848 = vmatprep.subr.mxu0 0.0
      %1849 = vmatpush1.msra.mxu0 %v1176
      %1850 = vmatprep.subr.mxu0 0.0
      %1851 = vmatpush1.msra.mxu0 %v1177
      %1852 = vmatprep.subr.mxu0 0.0
      %1853 = vmatpush1.msra.mxu0 %v1180
      %1854 = vmatprep.subr.mxu0 0.0
      %1855 = vmatpush1.msra.mxu0 0.0
      %1856 = vmatprep.subr.mxu0 0.0
      %1857 = vmatpush1.msra.mxu0 0.0
      %1858 = vmatprep.subr.mxu0 0.0
      %1859 = vmatpush1.msra.mxu0 0.0
      %1860 = vmatprep.subr.mxu0 0.0
      %1861 = vmatpush1.msra.mxu0 0.0
      %1862 = vmatprep.subr.mxu0 0.0
      %1863 = vmatpush1.msra.mxu0 0.0
      %1864 = vmatprep.subr.mxu0 0.0
      %1865 = vmatpush1.msra.mxu0 0.0
      %1866 = vmatprep.subr.mxu0 0.0
      %1867 = vmatpush1.msra.mxu0 0.0
      %1868 = vmatprep.subr.mxu0 0.0
      %1869 = vmatpush1.msra.mxu0 0.0
      %1870 = vmatprep.subr.mxu0 0.0
      %1871 = vmatpush1.msra.mxu0 0.0
      %1872 = vmatprep.subr.mxu0 0.0
      %1873 = vmatpush1.msra.mxu0 0.0
      %1874 = vmatprep.subr.mxu0 0.0
      %1875 = vmatpush1.msra.mxu0 0.0
      %1876 = vmatprep.subr.mxu0 0.0
      %1877 = vmatpush1.msra.mxu0 0.0
      %1878 = vmatprep.subr.mxu0 0.0
      %1879 = vmatpush1.msra.mxu0 0.0
      %1880 = vmatprep.subr.mxu0 0.0
      %1881 = vmatpush1.msra.mxu0 0.0
      %1882 = vmatprep.subr.mxu0 0.0
      %1883 = vmatpush1.msra.mxu0 0.0
      %1884 = vmatprep.subr.mxu0 0.0
      %1885 = vmatpush1.msra.mxu0 0.0
      %1886 = vmatprep.subr.mxu0 0.0
      %1887 = vmatpush1.msra.mxu0 0.0
      %1888 = vmatprep.subr.mxu0 0.0
      %1889 = vmatpush1.msra.mxu0 0.0
      %1890 = vmatprep.subr.mxu0 0.0
      %1891 = vmatpush1.msra.mxu0 0.0
      %1892 = vmatprep.subr.mxu0 0.0
      %1893 = vmatpush1.msra.mxu0 0.0
      %1894 = vmatprep.subr.mxu0 0.0
      %1895 = vmatpush1.msra.mxu0 0.0
      %1896 = vmatprep.subr.mxu0 0.0
      %1897 = vmatpush1.msra.mxu0 0.0
      %1898 = vmatprep.subr.mxu0 0.0
      %1899 = vmatpush1.msra.mxu0 0.0
      %1900 = vmatprep.subr.mxu0 0.0
      %1901 = vmatpush1.msra.mxu0 0.0
      %1902 = vmatprep.subr.mxu0 0.0
      %1903 = vmatpush1.msra.mxu0 0.0
      %1904 = vmatprep.subr.mxu0 0.0
      %1905 = vmatpush1.msra.mxu0 0.0
      %1906 = vmatprep.subr.mxu0 0.0
      %1907 = vmatpush1.msra.mxu0 0.0
      %1908 = vmatprep.subr.mxu0 0.0
      %1909 = vmatpush1.msra.mxu0 0.0
      %1910 = vmatprep.mubr.f32.mxu0 0.0
      %1911 = vmatmul.mubr.f32.gmra.mrb[0].mxu0 %v1629
      %v1912 = vpop.f32.mrb[0].mxu0
      %v1913 = vadd.f32 0.0, %v1912
      %v1914 = vpop.f32.mrb[0].mxu0
      %1915 = vdwg.mxu0
      %v1916 = vadd.f32 %v1845, %v1913
      %v1917 = vmax.f32 %v1916, 0.0
      %v1918 = vmax.f32 %v1703, %v1917
      %v1919 = vld [vmem:[%s4] sm:$0x3]
      %vm1920 = vcmask 39936
      %v1922 = vsel %vm1920, %v1919, 0
      %vm1924 = vcmask 1044480
      %v1926 = vsel %vm1924, %v1918, 0
      %1928 = vmatprep.subr.mxu0 0.0
      %1929 = vmatpush1.msra.mxu0 %v1926
      %1930 = vmatprep.subr.mxu0 0.0
      %1931 = vmatpush1.msra.mxu0 0.0
      %1932 = vmatprep.subr.mxu0 0.0
      %1933 = vmatpush1.msra.mxu0 0.0
      %1934 = vmatprep.subr.mxu0 0.0
      %1935 = vmatpush1.msra.mxu0 0.0
      %1936 = vmatprep.subr.mxu0 0.0
      %1937 = vmatpush1.msra.mxu0 0.0
      %1938 = vmatprep.subr.mxu0 0.0
      %1939 = vmatpush1.msra.mxu0 0.0
      %1940 = vmatprep.subr.mxu0 0.0
      %1941 = vmatpush1.msra.mxu0 0.0
      %1942 = vmatprep.subr.mxu0 0.0
      %1943 = vmatpush1.msra.mxu0 0.0
      %1944 = vmatprep.subr.mxu0 0.0
      %1945 = vmatpush1.msra.mxu0 0.0
      %1946 = vmatprep.subr.mxu0 0.0
      %1947 = vmatpush1.msra.mxu0 0.0
      %1948 = vmatprep.subr.mxu0 0.0
      %1949 = vmatpush1.msra.mxu0 0.0
      %1950 = vmatprep.subr.mxu0 0.0
      %1951 = vmatpush1.msra.mxu0 0.0
      %1952 = vmatprep.subr.mxu0 0.0
      %1953 = vmatpush1.msra.mxu0 0.0
      %1954 = vmatprep.subr.mxu0 0.0
      %1955 = vmatpush1.msra.mxu0 0.0
      %1956 = vmatprep.subr.mxu0 0.0
      %1957 = vmatpush1.msra.mxu0 0.0
      %1958 = vmatprep.subr.mxu0 0.0
      %1959 = vmatpush1.msra.mxu0 0.0
      %1960 = vmatprep.subr.mxu0 0.0
      %1961 = vmatpush1.msra.mxu0 0.0
      %1962 = vmatprep.subr.mxu0 0.0
      %1963 = vmatpush1.msra.mxu0 0.0
      %1964 = vmatprep.subr.mxu0 0.0
      %1965 = vmatpush1.msra.mxu0 0.0
      %1966 = vmatprep.subr.mxu0 0.0
      %1967 = vmatpush1.msra.mxu0 0.0
      %1968 = vmatprep.subr.mxu0 0.0
      %1969 = vmatpush1.msra.mxu0 0.0
      %1970 = vmatprep.subr.mxu0 0.0
      %1971 = vmatpush1.msra.mxu0 0.0
      %1972 = vmatprep.subr.mxu0 0.0
      %1973 = vmatpush1.msra.mxu0 0.0
      %1974 = vmatprep.subr.mxu0 0.0
      %1975 = vmatpush1.msra.mxu0 0.0
      %1976 = vmatprep.subr.mxu0 0.0
      %1977 = vmatpush1.msra.mxu0 0.0
      %1978 = vmatprep.subr.mxu0 0.0
      %1979 = vmatpush1.msra.mxu0 0.0
      %1980 = vmatprep.subr.mxu0 0.0
      %1981 = vmatpush1.msra.mxu0 0.0
      %1982 = vmatprep.subr.mxu0 0.0
      %1983 = vmatpush1.msra.mxu0 0.0
      %1984 = vmatprep.subr.mxu0 0.0
      %1985 = vmatpush1.msra.mxu0 0.0
      %1986 = vmatprep.subr.mxu0 0.0
      %1987 = vmatpush1.msra.mxu0 0.0
      %1988 = vmatprep.subr.mxu0 0.0
      %1989 = vmatpush1.msra.mxu0 0.0
      %1990 = vmatprep.subr.mxu0 0.0
      %1991 = vmatpush1.msra.mxu0 0.0
      %1992 = vmatprep.mubr.f32.mxu0 0.0
      %1993 = vmatmul.mubr.f32.gmra.mrb[0].mxu0 %v1922
      %v1994 = vpop.f32.mrb[0].mxu0
      %v1995 = vadd.f32 0.0, %v1994
      %v1996 = vpop.f32.mrb[0].mxu0
      %1997 = vdwg.mxu0
      %s1998 = scalar_lea.vmem %s4, 2
      %v1999 = vld [vmem:[%s1998] sm:$0x3]
      %v2001 = vsel %vm1920, %v1999, 0
      %2003 = vmatprep.subr.mxu0 0.0
      %2004 = vmatpush1.msra.mxu0 %v1926
      %2005 = vmatprep.subr.mxu0 0.0
      %2006 = vmatpush1.msra.mxu0 0.0
      %2007 = vmatprep.subr.mxu0 0.0
      %2008 = vmatpush1.msra.mxu0 0.0
      %2009 = vmatprep.subr.mxu0 0.0
      %2010 = vmatpush1.msra.mxu0 0.0
      %2011 = vmatprep.subr.mxu0 0.0
      %2012 = vmatpush1.msra.mxu0 0.0
      %2013 = vmatprep.subr.mxu0 0.0
      %2014 = vmatpush1.msra.mxu0 0.0
      %2015 = vmatprep.subr.mxu0 0.0
      %2016 = vmatpush1.msra.mxu0 0.0
      %2017 = vmatprep.subr.mxu0 0.0
      %2018 = vmatpush1.msra.mxu0 0.0
      %2019 = vmatprep.subr.mxu0 0.0
      %2020 = vmatpush1.msra.mxu0 0.0
      %2021 = vmatprep.subr.mxu0 0.0
      %2022 = vmatpush1.msra.mxu0 0.0
      %2023 = vmatprep.subr.mxu0 0.0
      %2024 = vmatpush1.msra.mxu0 0.0
      %2025 = vmatprep.subr.mxu0 0.0
      %2026 = vmatpush1.msra.mxu0 0.0
      %2027 = vmatprep.subr.mxu0 0.0
      %2028 = vmatpush1.msra.mxu0 0.0
      %2029 = vmatprep.subr.mxu0 0.0
      %2030 = vmatpush1.msra.mxu0 0.0
      %2031 = vmatprep.subr.mxu0 0.0
      %2032 = vmatpush1.msra.mxu0 0.0
      %2033 = vmatprep.subr.mxu0 0.0
      %2034 = vmatpush1.msra.mxu0 0.0
      %2035 = vmatprep.subr.mxu0 0.0
      %2036 = vmatpush1.msra.mxu0 0.0
      %2037 = vmatprep.subr.mxu0 0.0
      %2038 = vmatpush1.msra.mxu0 0.0
      %2039 = vmatprep.subr.mxu0 0.0
      %2040 = vmatpush1.msra.mxu0 0.0
      %2041 = vmatprep.subr.mxu0 0.0
      %2042 = vmatpush1.msra.mxu0 0.0
      %2043 = vmatprep.subr.mxu0 0.0
      %2044 = vmatpush1.msra.mxu0 0.0
      %2045 = vmatprep.subr.mxu0 0.0
      %2046 = vmatpush1.msra.mxu0 0.0
      %2047 = vmatprep.subr.mxu0 0.0
      %2048 = vmatpush1.msra.mxu0 0.0
      %2049 = vmatprep.subr.mxu0 0.0
      %2050 = vmatpush1.msra.mxu0 0.0
      %2051 = vmatprep.subr.mxu0 0.0
      %2052 = vmatpush1.msra.mxu0 0.0
      %2053 = vmatprep.subr.mxu0 0.0
      %2054 = vmatpush1.msra.mxu0 0.0
      %2055 = vmatprep.subr.mxu0 0.0
      %2056 = vmatpush1.msra.mxu0 0.0
      %2057 = vmatprep.subr.mxu0 0.0
      %2058 = vmatpush1.msra.mxu0 0.0
      %2059 = vmatprep.subr.mxu0 0.0
      %2060 = vmatpush1.msra.mxu0 0.0
      %2061 = vmatprep.subr.mxu0 0.0
      %2062 = vmatpush1.msra.mxu0 0.0
      %2063 = vmatprep.subr.mxu0 0.0
      %2064 = vmatpush1.msra.mxu0 0.0
      %2065 = vmatprep.subr.mxu0 0.0
      %2066 = vmatpush1.msra.mxu0 0.0
      %2067 = vmatprep.mubr.f32.mxu0 0.0
      %2068 = vmatmul.mubr.f32.gmra.mrb[0].mxu0 %v2001
      %v2069 = vpop.f32.mrb[0].mxu0
      %v2070 = vadd.f32 0.0, %v2069
      %v2071 = vpop.f32.mrb[0].mxu0
      %2072 = vdwg.mxu0
      %s2073 = scalar_lea.vmem %s4, 4
      %v2074 = vld [vmem:[%s2073] sm:$0x3]
      %v2076 = vsel %vm1920, %v2074, 0
      %2078 = vmatprep.subr.mxu0 0.0
      %2079 = vmatpush1.msra.mxu0 %v1926
      %2080 = vmatprep.subr.mxu0 0.0
      %2081 = vmatpush1.msra.mxu0 0.0
      %2082 = vmatprep.subr.mxu0 0.0
      %2083 = vmatpush1.msra.mxu0 0.0
      %2084 = vmatprep.subr.mxu0 0.0
      %2085 = vmatpush1.msra.mxu0 0.0
      %2086 = vmatprep.subr.mxu0 0.0
      %2087 = vmatpush1.msra.mxu0 0.0
      %2088 = vmatprep.subr.mxu0 0.0
      %2089 = vmatpush1.msra.mxu0 0.0
      %2090 = vmatprep.subr.mxu0 0.0
      %2091 = vmatpush1.msra.mxu0 0.0
      %2092 = vmatprep.subr.mxu0 0.0
      %2093 = vmatpush1.msra.mxu0 0.0
      %2094 = vmatprep.subr.mxu0 0.0
      %2095 = vmatpush1.msra.mxu0 0.0
      %2096 = vmatprep.subr.mxu0 0.0
      %2097 = vmatpush1.msra.mxu0 0.0
      %2098 = vmatprep.subr.mxu0 0.0
      %2099 = vmatpush1.msra.mxu0 0.0
      %2100 = vmatprep.subr.mxu0 0.0
      %2101 = vmatpush1.msra.mxu0 0.0
      %2102 = vmatprep.subr.mxu0 0.0
      %2103 = vmatpush1.msra.mxu0 0.0
      %2104 = vmatprep.subr.mxu0 0.0
      %2105 = vmatpush1.msra.mxu0 0.0
      %2106 = vmatprep.subr.mxu0 0.0
      %2107 = vmatpush1.msra.mxu0 0.0
      %2108 = vmatprep.subr.mxu0 0.0
      %2109 = vmatpush1.msra.mxu0 0.0
      %2110 = vmatprep.subr.mxu0 0.0
      %2111 = vmatpush1.msra.mxu0 0.0
      %2112 = vmatprep.subr.mxu0 0.0
      %2113 = vmatpush1.msra.mxu0 0.0
      %2114 = vmatprep.subr.mxu0 0.0
      %2115 = vmatpush1.msra.mxu0 0.0
      %2116 = vmatprep.subr.mxu0 0.0
      %2117 = vmatpush1.msra.mxu0 0.0
      %2118 = vmatprep.subr.mxu0 0.0
      %2119 = vmatpush1.msra.mxu0 0.0
      %2120 = vmatprep.subr.mxu0 0.0
      %2121 = vmatpush1.msra.mxu0 0.0
      %2122 = vmatprep.subr.mxu0 0.0
      %2123 = vmatpush1.msra.mxu0 0.0
      %2124 = vmatprep.subr.mxu0 0.0
      %2125 = vmatpush1.msra.mxu0 0.0
      %2126 = vmatprep.subr.mxu0 0.0
      %2127 = vmatpush1.msra.mxu0 0.0
      %2128 = vmatprep.subr.mxu0 0.0
      %2129 = vmatpush1.msra.mxu0 0.0
      %2130 = vmatprep.subr.mxu0 0.0
      %2131 = vmatpush1.msra.mxu0 0.0
      %2132 = vmatprep.subr.mxu0 0.0
      %2133 = vmatpush1.msra.mxu0 0.0
      %2134 = vmatprep.subr.mxu0 0.0
      %2135 = vmatpush1.msra.mxu0 0.0
      %2136 = vmatprep.subr.mxu0 0.0
      %2137 = vmatpush1.msra.mxu0 0.0
      %2138 = vmatprep.subr.mxu0 0.0
      %2139 = vmatpush1.msra.mxu0 0.0
      %2140 = vmatprep.subr.mxu0 0.0
      %2141 = vmatpush1.msra.mxu0 0.0
      %2142 = vmatprep.mubr.f32.mxu0 0.0
      %2143 = vmatmul.mubr.f32.gmra.mrb[0].mxu0 %v2076
      %v2144 = vpop.f32.mrb[0].mxu0
      %v2145 = vadd.f32 0.0, %v2144
      %v2146 = vpop.f32.mrb[0].mxu0
      %2147 = vdwg.mxu0
      %v2148 = vld [vmem:[%s6] sm:$0x1]
      %v2149 = vld [vmem:[%s5] sm:$0xff]
      %v2150 = vld [vmem:[%s5 + $0x8] sm:$0xff]
      %v2151 = vld [vmem:[%s5 + $0x10] sm:$0xff]
      %v2152 = vld [vmem:[%s5 + $0x18] sm:$0xff]
      %v2153 = vld [vmem:[%s5 + $0x20] sm:$0xff]
      %v2154 = vld [vmem:[%s5 + $0x28] sm:$0xff]
      %v2155 = vld [vmem:[%s5 + $0x30] sm:$0xff]
      %v2156 = vld [vmem:[%s5 + $0x38] sm:$0xff]
      %v2157 = vld [vmem:[%s5 + $0x40] sm:$0xff]
      %v2158 = vld [vmem:[%s5 + $0x48] sm:$0xff]
      %vm2159 = vcmask 654336
      %v2161 = vsel %vm2159, %v1995, 0
      %2163 = vmatprep.subr.mxu0 0.0
      %2164 = vmatpush1.msra.mxu0 %v2149
      %2165 = vmatprep.subr.mxu0 0.0
      %2166 = vmatpush1.msra.mxu0 %v2150
      %2167 = vmatprep.subr.mxu0 0.0
      %2168 = vmatpush1.msra.mxu0 %v2151
      %2169 = vmatprep.subr.mxu0 0.0
      %2170 = vmatpush1.msra.mxu0 %v2152
      %2171 = vmatprep.subr.mxu0 0.0
      %2172 = vmatpush1.msra.mxu0 %v2153
      %2173 = vmatprep.subr.mxu0 0.0
      %2174 = vmatpush1.msra.mxu0 %v2154
      %2175 = vmatprep.subr.mxu0 0.0
      %2176 = vmatpush1.msra.mxu0 %v2155
      %2177 = vmatprep.subr.mxu0 0.0
      %2178 = vmatpush1.msra.mxu0 %v2156
      %2179 = vmatprep.subr.mxu0 0.0
      %2180 = vmatpush1.msra.mxu0 %v2157
      %2181 = vmatprep.subr.mxu0 0.0
      %2182 = vmatpush1.msra.mxu0 %v2158
      %2183 = vmatprep.subr.mxu0 0.0
      %2184 = vmatpush1.msra.mxu0 0.0
      %2185 = vmatprep.subr.mxu0 0.0
      %2186 = vmatpush1.msra.mxu0 0.0
      %2187 = vmatprep.subr.mxu0 0.0
      %2188 = vmatpush1.msra.mxu0 0.0
      %2189 = vmatprep.subr.mxu0 0.0
      %2190 = vmatpush1.msra.mxu0 0.0
      %2191 = vmatprep.subr.mxu0 0.0
      %2192 = vmatpush1.msra.mxu0 0.0
      %2193 = vmatprep.subr.mxu0 0.0
      %2194 = vmatpush1.msra.mxu0 0.0
      %2195 = vmatprep.subr.mxu0 0.0
      %2196 = vmatpush1.msra.mxu0 0.0
      %2197 = vmatprep.subr.mxu0 0.0
      %2198 = vmatpush1.msra.mxu0 0.0
      %2199 = vmatprep.subr.mxu0 0.0
      %2200 = vmatpush1.msra.mxu0 0.0
      %2201 = vmatprep.subr.mxu0 0.0
      %2202 = vmatpush1.msra.mxu0 0.0
      %2203 = vmatprep.subr.mxu0 0.0
      %2204 = vmatpush1.msra.mxu0 0.0
      %2205 = vmatprep.subr.mxu0 0.0
      %2206 = vmatpush1.msra.mxu0 0.0
      %2207 = vmatprep.subr.mxu0 0.0
      %2208 = vmatpush1.msra.mxu0 0.0
      %2209 = vmatprep.subr.mxu0 0.0
      %2210 = vmatpush1.msra.mxu0 0.0
      %2211 = vmatprep.subr.mxu0 0.0
      %2212 = vmatpush1.msra.mxu0 0.0
      %2213 = vmatprep.subr.mxu0 0.0
      %2214 = vmatpush1.msra.mxu0 0.0
      %2215 = vmatprep.subr.mxu0 0.0
      %2216 = vmatpush1.msra.mxu0 0.0
      %2217 = vmatprep.subr.mxu0 0.0
      %2218 = vmatpush1.msra.mxu0 0.0
      %2219 = vmatprep.subr.mxu0 0.0
      %2220 = vmatpush1.msra.mxu0 0.0
      %2221 = vmatprep.subr.mxu0 0.0
      %2222 = vmatpush1.msra.mxu0 0.0
      %2223 = vmatprep.subr.mxu0 0.0
      %2224 = vmatpush1.msra.mxu0 0.0
      %2225 = vmatprep.subr.mxu0 0.0
      %2226 = vmatpush1.msra.mxu0 0.0
      %2227 = vmatprep.mubr.f32.mxu0 0.0
      %2228 = vmatmul.mubr.f32.gmra.mrb[0].mxu0 %v2161
      %v2229 = vpop.f32.mrb[0].mxu0
      %v2230 = vadd.f32 0.0, %v2229
      %v2231 = vpop.f32.mrb[0].mxu0
      %2232 = vdwg.mxu0
      %v2234 = vlaneseq
      %v2235 = vshrl.u32 %v2234, 7
      %v2236 = vsub.s32 0, %v2235
      %v2237 = vrot.slane %v2148, %v2236
      %v2239 = vadd.f32 %v2237, %v2230
      %s2240 = scalar_lea.vmem %s5, 80
      %v2241 = vld [vmem:[%s2240] sm:$0xff]
      %v2242 = vld [vmem:[%s2240 + $0x8] sm:$0xff]
      %v2243 = vld [vmem:[%s2240 + $0x10] sm:$0xff]
      %v2244 = vld [vmem:[%s2240 + $0x18] sm:$0xff]
      %v2245 = vld [vmem:[%s2240 + $0x20] sm:$0xff]
      %v2246 = vld [vmem:[%s2240 + $0x28] sm:$0xff]
      %v2247 = vld [vmem:[%s2240 + $0x30] sm:$0xff]
      %v2248 = vld [vmem:[%s2240 + $0x38] sm:$0xff]
      %v2249 = vld [vmem:[%s2240 + $0x40] sm:$0xff]
      %v2250 = vld [vmem:[%s2240 + $0x48] sm:$0xff]
      %v2252 = vsel %vm2159, %v2070, 0
      %2254 = vmatprep.subr.mxu0 0.0
      %2255 = vmatpush1.msra.mxu0 %v2241
      %2256 = vmatprep.subr.mxu0 0.0
      %2257 = vmatpush1.msra.mxu0 %v2242
      %2258 = vmatprep.subr.mxu0 0.0
      %2259 = vmatpush1.msra.mxu0 %v2243
      %2260 = vmatprep.subr.mxu0 0.0
      %2261 = vmatpush1.msra.mxu0 %v2244
      %2262 = vmatprep.subr.mxu0 0.0
      %2263 = vmatpush1.msra.mxu0 %v2245
      %2264 = vmatprep.subr.mxu0 0.0
      %2265 = vmatpush1.msra.mxu0 %v2246
      %2266 = vmatprep.subr.mxu0 0.0
      %2267 = vmatpush1.msra.mxu0 %v2247
      %2268 = vmatprep.subr.mxu0 0.0
      %2269 = vmatpush1.msra.mxu0 %v2248
      %2270 = vmatprep.subr.mxu0 0.0
      %2271 = vmatpush1.msra.mxu0 %v2249
      %2272 = vmatprep.subr.mxu0 0.0
      %2273 = vmatpush1.msra.mxu0 %v2250
      %2274 = vmatprep.subr.mxu0 0.0
      %2275 = vmatpush1.msra.mxu0 0.0
      %2276 = vmatprep.subr.mxu0 0.0
      %2277 = vmatpush1.msra.mxu0 0.0
      %2278 = vmatprep.subr.mxu0 0.0
      %2279 = vmatpush1.msra.mxu0 0.0
      %2280 = vmatprep.subr.mxu0 0.0
      %2281 = vmatpush1.msra.mxu0 0.0
      %2282 = vmatprep.subr.mxu0 0.0
      %2283 = vmatpush1.msra.mxu0 0.0
      %2284 = vmatprep.subr.mxu0 0.0
      %2285 = vmatpush1.msra.mxu0 0.0
      %2286 = vmatprep.subr.mxu0 0.0
      %2287 = vmatpush1.msra.mxu0 0.0
      %2288 = vmatprep.subr.mxu0 0.0
      %2289 = vmatpush1.msra.mxu0 0.0
      %2290 = vmatprep.subr.mxu0 0.0
      %2291 = vmatpush1.msra.mxu0 0.0
      %2292 = vmatprep.subr.mxu0 0.0
      %2293 = vmatpush1.msra.mxu0 0.0
      %2294 = vmatprep.subr.mxu0 0.0
      %2295 = vmatpush1.msra.mxu0 0.0
      %2296 = vmatprep.subr.mxu0 0.0
      %2297 = vmatpush1.msra.mxu0 0.0
      %2298 = vmatprep.subr.mxu0 0.0
      %2299 = vmatpush1.msra.mxu0 0.0
      %2300 = vmatprep.subr.mxu0 0.0
      %2301 = vmatpush1.msra.mxu0 0.0
      %2302 = vmatprep.subr.mxu0 0.0
      %2303 = vmatpush1.msra.mxu0 0.0
      %2304 = vmatprep.subr.mxu0 0.0
      %2305 = vmatpush1.msra.mxu0 0.0
      %2306 = vmatprep.subr.mxu0 0.0
      %2307 = vmatpush1.msra.mxu0 0.0
      %2308 = vmatprep.subr.mxu0 0.0
      %2309 = vmatpush1.msra.mxu0 0.0
      %2310 = vmatprep.subr.mxu0 0.0
      %2311 = vmatpush1.msra.mxu0 0.0
      %2312 = vmatprep.subr.mxu0 0.0
      %2313 = vmatpush1.msra.mxu0 0.0
      %2314 = vmatprep.subr.mxu0 0.0
      %2315 = vmatpush1.msra.mxu0 0.0
      %2316 = vmatprep.subr.mxu0 0.0
      %2317 = vmatpush1.msra.mxu0 0.0
      %2318 = vmatprep.mubr.f32.mxu0 0.0
      %2319 = vmatmul.mubr.f32.gmra.mrb[0].mxu0 %v2252
      %v2320 = vpop.f32.mrb[0].mxu0
      %v2321 = vadd.f32 0.0, %v2320
      %v2322 = vpop.f32.mrb[0].mxu0
      %2323 = vdwg.mxu0
      %v2324 = vadd.f32 %v2239, %v2321
      %s2325 = scalar_lea.vmem %s5, 160
      %v2326 = vld [vmem:[%s2325] sm:$0xff]
      %v2327 = vld [vmem:[%s2325 + $0x8] sm:$0xff]
      %v2328 = vld [vmem:[%s2325 + $0x10] sm:$0xff]
      %v2329 = vld [vmem:[%s2325 + $0x18] sm:$0xff]
      %v2330 = vld [vmem:[%s2325 + $0x20] sm:$0xff]
      %v2331 = vld [vmem:[%s2325 + $0x28] sm:$0xff]
      %v2332 = vld [vmem:[%s2325 + $0x30] sm:$0xff]
      %v2333 = vld [vmem:[%s2325 + $0x38] sm:$0xff]
      %v2334 = vld [vmem:[%s2325 + $0x40] sm:$0xff]
      %v2335 = vld [vmem:[%s2325 + $0x48] sm:$0xff]
      %v2337 = vsel %vm2159, %v2145, 0
      %2339 = vmatprep.subr.mxu0 0.0
      %2340 = vmatpush1.msra.mxu0 %v2326
      %2341 = vmatprep.subr.mxu0 0.0
      %2342 = vmatpush1.msra.mxu0 %v2327
      %2343 = vmatprep.subr.mxu0 0.0
      %2344 = vmatpush1.msra.mxu0 %v2328
      %2345 = vmatprep.subr.mxu0 0.0
      %2346 = vmatpush1.msra.mxu0 %v2329
      %2347 = vmatprep.subr.mxu0 0.0
      %2348 = vmatpush1.msra.mxu0 %v2330
      %2349 = vmatprep.subr.mxu0 0.0
      %2350 = vmatpush1.msra.mxu0 %v2331
      %2351 = vmatprep.subr.mxu0 0.0
      %2352 = vmatpush1.msra.mxu0 %v2332
      %2353 = vmatprep.subr.mxu0 0.0
      %2354 = vmatpush1.msra.mxu0 %v2333
      %2355 = vmatprep.subr.mxu0 0.0
      %2356 = vmatpush1.msra.mxu0 %v2334
      %2357 = vmatprep.subr.mxu0 0.0
      %2358 = vmatpush1.msra.mxu0 %v2335
      %2359 = vmatprep.subr.mxu0 0.0
      %2360 = vmatpush1.msra.mxu0 0.0
      %2361 = vmatprep.subr.mxu0 0.0
      %2362 = vmatpush1.msra.mxu0 0.0
      %2363 = vmatprep.subr.mxu0 0.0
      %2364 = vmatpush1.msra.mxu0 0.0
      %2365 = vmatprep.subr.mxu0 0.0
      %2366 = vmatpush1.msra.mxu0 0.0
      %2367 = vmatprep.subr.mxu0 0.0
      %2368 = vmatpush1.msra.mxu0 0.0
      %2369 = vmatprep.subr.mxu0 0.0
      %2370 = vmatpush1.msra.mxu0 0.0
      %2371 = vmatprep.subr.mxu0 0.0
      %2372 = vmatpush1.msra.mxu0 0.0
      %2373 = vmatprep.subr.mxu0 0.0
      %2374 = vmatpush1.msra.mxu0 0.0
      %2375 = vmatprep.subr.mxu0 0.0
      %2376 = vmatpush1.msra.mxu0 0.0
      %2377 = vmatprep.subr.mxu0 0.0
      %2378 = vmatpush1.msra.mxu0 0.0
      %2379 = vmatprep.subr.mxu0 0.0
      %2380 = vmatpush1.msra.mxu0 0.0
      %2381 = vmatprep.subr.mxu0 0.0
      %2382 = vmatpush1.msra.mxu0 0.0
      %2383 = vmatprep.subr.mxu0 0.0
      %2384 = vmatpush1.msra.mxu0 0.0
      %2385 = vmatprep.subr.mxu0 0.0
      %2386 = vmatpush1.msra.mxu0 0.0
      %2387 = vmatprep.subr.mxu0 0.0
      %2388 = vmatpush1.msra.mxu0 0.0
      %2389 = vmatprep.subr.mxu0 0.0
      %2390 = vmatpush1.msra.mxu0 0.0
      %2391 = vmatprep.subr.mxu0 0.0
      %2392 = vmatpush1.msra.mxu0 0.0
      %2393 = vmatprep.subr.mxu0 0.0
      %2394 = vmatpush1.msra.mxu0 0.0
      %2395 = vmatprep.subr.mxu0 0.0
      %2396 = vmatpush1.msra.mxu0 0.0
      %2397 = vmatprep.subr.mxu0 0.0
      %2398 = vmatpush1.msra.mxu0 0.0
      %2399 = vmatprep.subr.mxu0 0.0
      %2400 = vmatpush1.msra.mxu0 0.0
      %2401 = vmatprep.subr.mxu0 0.0
      %2402 = vmatpush1.msra.mxu0 0.0
      %2403 = vmatprep.mubr.f32.mxu0 0.0
      %2404 = vmatmul.mubr.f32.gmra.mrb[0].mxu0 %v2337
      %v2405 = vpop.f32.mrb[0].mxu0
      %v2406 = vadd.f32 0.0, %v2405
      %v2407 = vpop.f32.mrb[0].mxu0
      %2408 = vdwg.mxu0
      %v2409 = vadd.f32 %v2324, %v2406
      %v2410 = vmax.f32 %v2409, 0.0
      %s2411 = scalar_lea.vmem %s6, 1
      %v2412 = vld [vmem:[%s2411] sm:$0x1]
      %s2413 = scalar_lea.vmem %s5, 240
      %v2414 = vld [vmem:[%s2413] sm:$0xff]
      %v2415 = vld [vmem:[%s2413 + $0x8] sm:$0xff]
      %v2416 = vld [vmem:[%s2413 + $0x10] sm:$0xff]
      %v2417 = vld [vmem:[%s2413 + $0x18] sm:$0xff]
      %v2418 = vld [vmem:[%s2413 + $0x20] sm:$0xff]
      %v2419 = vld [vmem:[%s2413 + $0x28] sm:$0xff]
      %v2420 = vld [vmem:[%s2413 + $0x30] sm:$0xff]
      %v2421 = vld [vmem:[%s2413 + $0x38] sm:$0xff]
      %v2422 = vld [vmem:[%s2413 + $0x40] sm:$0xff]
      %v2423 = vld [vmem:[%s2413 + $0x48] sm:$0xff]
      %2424 = vmatprep.subr.mxu0 0.0
      %2425 = vmatpush1.msra.mxu0 %v2414
      %2426 = vmatprep.subr.mxu0 0.0
      %2427 = vmatpush1.msra.mxu0 %v2415
      %2428 = vmatprep.subr.mxu0 0.0
      %2429 = vmatpush1.msra.mxu0 %v2416
      %2430 = vmatprep.subr.mxu0 0.0
      %2431 = vmatpush1.msra.mxu0 %v2417
      %2432 = vmatprep.subr.mxu0 0.0
      %2433 = vmatpush1.msra.mxu0 %v2418
      %2434 = vmatprep.subr.mxu0 0.0
      %2435 = vmatpush1.msra.mxu0 %v2419
      %2436 = vmatprep.subr.mxu0 0.0
      %2437 = vmatpush1.msra.mxu0 %v2420
      %2438 = vmatprep.subr.mxu0 0.0
      %2439 = vmatpush1.msra.mxu0 %v2421
      %2440 = vmatprep.subr.mxu0 0.0
      %2441 = vmatpush1.msra.mxu0 %v2422
      %2442 = vmatprep.subr.mxu0 0.0
      %2443 = vmatpush1.msra.mxu0 %v2423
      %2444 = vmatprep.subr.mxu0 0.0
      %2445 = vmatpush1.msra.mxu0 0.0
      %2446 = vmatprep.subr.mxu0 0.0
      %2447 = vmatpush1.msra.mxu0 0.0
      %2448 = vmatprep.subr.mxu0 0.0
      %2449 = vmatpush1.msra.mxu0 0.0
      %2450 = vmatprep.subr.mxu0 0.0
      %2451 = vmatpush1.msra.mxu0 0.0
      %2452 = vmatprep.subr.mxu0 0.0
      %2453 = vmatpush1.msra.mxu0 0.0
      %2454 = vmatprep.subr.mxu0 0.0
      %2455 = vmatpush1.msra.mxu0 0.0
      %2456 = vmatprep.subr.mxu0 0.0
      %2457 = vmatpush1.msra.mxu0 0.0
      %2458 = vmatprep.subr.mxu0 0.0
      %2459 = vmatpush1.msra.mxu0 0.0
      %2460 = vmatprep.subr.mxu0 0.0
      %2461 = vmatpush1.msra.mxu0 0.0
      %2462 = vmatprep.subr.mxu0 0.0
      %2463 = vmatpush1.msra.mxu0 0.0
      %2464 = vmatprep.subr.mxu0 0.0
      %2465 = vmatpush1.msra.mxu0 0.0
      %2466 = vmatprep.subr.mxu0 0.0
      %2467 = vmatpush1.msra.mxu0 0.0
      %2468 = vmatprep.subr.mxu0 0.0
      %2469 = vmatpush1.msra.mxu0 0.0
      %2470 = vmatprep.subr.mxu0 0.0
      %2471 = vmatpush1.msra.mxu0 0.0
      %2472 = vmatprep.subr.mxu0 0.0
      %2473 = vmatpush1.msra.mxu0 0.0
      %2474 = vmatprep.subr.mxu0 0.0
      %2475 = vmatpush1.msra.mxu0 0.0
      %2476 = vmatprep.subr.mxu0 0.0
      %2477 = vmatpush1.msra.mxu0 0.0
      %2478 = vmatprep.subr.mxu0 0.0
      %2479 = vmatpush1.msra.mxu0 0.0
      %2480 = vmatprep.subr.mxu0 0.0
      %2481 = vmatpush1.msra.mxu0 0.0
      %2482 = vmatprep.subr.mxu0 0.0
      %2483 = vmatpush1.msra.mxu0 0.0
      %2484 = vmatprep.subr.mxu0 0.0
      %2485 = vmatpush1.msra.mxu0 0.0
      %2486 = vmatprep.subr.mxu0 0.0
      %2487 = vmatpush1.msra.mxu0 0.0
      %2488 = vmatprep.mubr.f32.mxu0 0.0
      %2489 = vmatmul.mubr.f32.gmra.mrb[0].mxu0 %v2161
      %v2490 = vpop.f32.mrb[0].mxu0
      %v2491 = vadd.f32 0.0, %v2490
      %v2492 = vpop.f32.mrb[0].mxu0
      %2493 = vdwg.mxu0
      %v2495 = vlaneseq
      %v2496 = vshrl.u32 %v2495, 7
      %v2497 = vsub.s32 0, %v2496
      %v2498 = vrot.slane %v2412, %v2497
      %v2500 = vadd.f32 %v2498, %v2491
      %s2501 = scalar_lea.vmem %s5, 320
      %v2502 = vld [vmem:[%s2501] sm:$0xff]
      %v2503 = vld [vmem:[%s2501 + $0x8] sm:$0xff]
      %v2504 = vld [vmem:[%s2501 + $0x10] sm:$0xff]
      %v2505 = vld [vmem:[%s2501 + $0x18] sm:$0xff]
      %v2506 = vld [vmem:[%s2501 + $0x20] sm:$0xff]
      %v2507 = vld [vmem:[%s2501 + $0x28] sm:$0xff]
      %v2508 = vld [vmem:[%s2501 + $0x30] sm:$0xff]
      %v2509 = vld [vmem:[%s2501 + $0x38] sm:$0xff]
      %v2510 = vld [vmem:[%s2501 + $0x40] sm:$0xff]
      %v2511 = vld [vmem:[%s2501 + $0x48] sm:$0xff]
      %2512 = vmatprep.subr.mxu0 0.0
      %2513 = vmatpush1.msra.mxu0 %v2502
      %2514 = vmatprep.subr.mxu0 0.0
      %2515 = vmatpush1.msra.mxu0 %v2503
      %2516 = vmatprep.subr.mxu0 0.0
      %2517 = vmatpush1.msra.mxu0 %v2504
      %2518 = vmatprep.subr.mxu0 0.0
      %2519 = vmatpush1.msra.mxu0 %v2505
      %2520 = vmatprep.subr.mxu0 0.0
      %2521 = vmatpush1.msra.mxu0 %v2506
      %2522 = vmatprep.subr.mxu0 0.0
      %2523 = vmatpush1.msra.mxu0 %v2507
      %2524 = vmatprep.subr.mxu0 0.0
      %2525 = vmatpush1.msra.mxu0 %v2508
      %2526 = vmatprep.subr.mxu0 0.0
      %2527 = vmatpush1.msra.mxu0 %v2509
      %2528 = vmatprep.subr.mxu0 0.0
      %2529 = vmatpush1.msra.mxu0 %v2510
      %2530 = vmatprep.subr.mxu0 0.0
      %2531 = vmatpush1.msra.mxu0 %v2511
      %2532 = vmatprep.subr.mxu0 0.0
      %2533 = vmatpush1.msra.mxu0 0.0
      %2534 = vmatprep.subr.mxu0 0.0
      %2535 = vmatpush1.msra.mxu0 0.0
      %2536 = vmatprep.subr.mxu0 0.0
      %2537 = vmatpush1.msra.mxu0 0.0
      %2538 = vmatprep.subr.mxu0 0.0
      %2539 = vmatpush1.msra.mxu0 0.0
      %2540 = vmatprep.subr.mxu0 0.0
      %2541 = vmatpush1.msra.mxu0 0.0
      %2542 = vmatprep.subr.mxu0 0.0
      %2543 = vmatpush1.msra.mxu0 0.0
      %2544 = vmatprep.subr.mxu0 0.0
      %2545 = vmatpush1.msra.mxu0 0.0
      %2546 = vmatprep.subr.mxu0 0.0
      %2547 = vmatpush1.msra.mxu0 0.0
      %2548 = vmatprep.subr.mxu0 0.0
      %2549 = vmatpush1.msra.mxu0 0.0
      %2550 = vmatprep.subr.mxu0 0.0
      %2551 = vmatpush1.msra.mxu0 0.0
      %2552 = vmatprep.subr.mxu0 0.0
      %2553 = vmatpush1.msra.mxu0 0.0
      %2554 = vmatprep.subr.mxu0 0.0
      %2555 = vmatpush1.msra.mxu0 0.0
      %2556 = vmatprep.subr.mxu0 0.0
      %2557 = vmatpush1.msra.mxu0 0.0
      %2558 = vmatprep.subr.mxu0 0.0
      %2559 = vmatpush1.msra.mxu0 0.0
      %2560 = vmatprep.subr.mxu0 0.0
      %2561 = vmatpush1.msra.mxu0 0.0
      %2562 = vmatprep.subr.mxu0 0.0
      %2563 = vmatpush1.msra.mxu0 0.0
      %2564 = vmatprep.subr.mxu0 0.0
      %2565 = vmatpush1.msra.mxu0 0.0
      %2566 = vmatprep.subr.mxu0 0.0
      %2567 = vmatpush1.msra.mxu0 0.0
      %2568 = vmatprep.subr.mxu0 0.0
      %2569 = vmatpush1.msra.mxu0 0.0
      %2570 = vmatprep.subr.mxu0 0.0
      %2571 = vmatpush1.msra.mxu0 0.0
      %2572 = vmatprep.subr.mxu0 0.0
      %2573 = vmatpush1.msra.mxu0 0.0
      %2574 = vmatprep.subr.mxu0 0.0
      %2575 = vmatpush1.msra.mxu0 0.0
      %2576 = vmatprep.mubr.f32.mxu0 0.0
      %2577 = vmatmul.mubr.f32.gmra.mrb[0].mxu0 %v2252
      %v2578 = vpop.f32.mrb[0].mxu0
      %v2579 = vadd.f32 0.0, %v2578
      %v2580 = vpop.f32.mrb[0].mxu0
      %2581 = vdwg.mxu0
      %v2582 = vadd.f32 %v2500, %v2579
      %s2583 = scalar_lea.vmem %s5, 400
      %v2584 = vld [vmem:[%s2583] sm:$0xff]
      %v2585 = vld [vmem:[%s2583 + $0x8] sm:$0xff]
      %v2586 = vld [vmem:[%s2583 + $0x10] sm:$0xff]
      %v2587 = vld [vmem:[%s2583 + $0x18] sm:$0xff]
      %v2588 = vld [vmem:[%s2583 + $0x20] sm:$0xff]
      %v2589 = vld [vmem:[%s2583 + $0x28] sm:$0xff]
      %v2590 = vld [vmem:[%s2583 + $0x30] sm:$0xff]
      %v2591 = vld [vmem:[%s2583 + $0x38] sm:$0xff]
      %v2592 = vld [vmem:[%s2583 + $0x40] sm:$0xff]
      %v2593 = vld [vmem:[%s2583 + $0x48] sm:$0xff]
      %2594 = vmatprep.subr.mxu0 0.0
      %2595 = vmatpush1.msra.mxu0 %v2584
      %2596 = vmatprep.subr.mxu0 0.0
      %2597 = vmatpush1.msra.mxu0 %v2585
      %2598 = vmatprep.subr.mxu0 0.0
      %2599 = vmatpush1.msra.mxu0 %v2586
      %2600 = vmatprep.subr.mxu0 0.0
      %2601 = vmatpush1.msra.mxu0 %v2587
      %2602 = vmatprep.subr.mxu0 0.0
      %2603 = vmatpush1.msra.mxu0 %v2588
      %2604 = vmatprep.subr.mxu0 0.0
      %2605 = vmatpush1.msra.mxu0 %v2589
      %2606 = vmatprep.subr.mxu0 0.0
      %2607 = vmatpush1.msra.mxu0 %v2590
      %2608 = vmatprep.subr.mxu0 0.0
      %2609 = vmatpush1.msra.mxu0 %v2591
      %2610 = vmatprep.subr.mxu0 0.0
      %2611 = vmatpush1.msra.mxu0 %v2592
      %2612 = vmatprep.subr.mxu0 0.0
      %2613 = vmatpush1.msra.mxu0 %v2593
      %2614 = vmatprep.subr.mxu0 0.0
      %2615 = vmatpush1.msra.mxu0 0.0
      %2616 = vmatprep.subr.mxu0 0.0
      %2617 = vmatpush1.msra.mxu0 0.0
      %2618 = vmatprep.subr.mxu0 0.0
      %2619 = vmatpush1.msra.mxu0 0.0
      %2620 = vmatprep.subr.mxu0 0.0
      %2621 = vmatpush1.msra.mxu0 0.0
      %2622 = vmatprep.subr.mxu0 0.0
      %2623 = vmatpush1.msra.mxu0 0.0
      %2624 = vmatprep.subr.mxu0 0.0
      %2625 = vmatpush1.msra.mxu0 0.0
      %2626 = vmatprep.subr.mxu0 0.0
      %2627 = vmatpush1.msra.mxu0 0.0
      %2628 = vmatprep.subr.mxu0 0.0
      %2629 = vmatpush1.msra.mxu0 0.0
      %2630 = vmatprep.subr.mxu0 0.0
      %2631 = vmatpush1.msra.mxu0 0.0
      %2632 = vmatprep.subr.mxu0 0.0
      %2633 = vmatpush1.msra.mxu0 0.0
      %2634 = vmatprep.subr.mxu0 0.0
      %2635 = vmatpush1.msra.mxu0 0.0
      %2636 = vmatprep.subr.mxu0 0.0
      %2637 = vmatpush1.msra.mxu0 0.0
      %2638 = vmatprep.subr.mxu0 0.0
      %2639 = vmatpush1.msra.mxu0 0.0
      %2640 = vmatprep.subr.mxu0 0.0
      %2641 = vmatpush1.msra.mxu0 0.0
      %2642 = vmatprep.subr.mxu0 0.0
      %2643 = vmatpush1.msra.mxu0 0.0
      %2644 = vmatprep.subr.mxu0 0.0
      %2645 = vmatpush1.msra.mxu0 0.0
      %2646 = vmatprep.subr.mxu0 0.0
      %2647 = vmatpush1.msra.mxu0 0.0
      %2648 = vmatprep.subr.mxu0 0.0
      %2649 = vmatpush1.msra.mxu0 0.0
      %2650 = vmatprep.subr.mxu0 0.0
      %2651 = vmatpush1.msra.mxu0 0.0
      %2652 = vmatprep.subr.mxu0 0.0
      %2653 = vmatpush1.msra.mxu0 0.0
      %2654 = vmatprep.subr.mxu0 0.0
      %2655 = vmatpush1.msra.mxu0 0.0
      %2656 = vmatprep.subr.mxu0 0.0
      %2657 = vmatpush1.msra.mxu0 0.0
      %2658 = vmatprep.mubr.f32.mxu0 0.0
      %2659 = vmatmul.mubr.f32.gmra.mrb[0].mxu0 %v2337
      %v2660 = vpop.f32.mrb[0].mxu0
      %v2661 = vadd.f32 0.0, %v2660
      %v2662 = vpop.f32.mrb[0].mxu0
      %2663 = vdwg.mxu0
      %v2664 = vadd.f32 %v2582, %v2661
      %v2665 = vmax.f32 %v2664, 0.0
      %v2666 = vmax.f32 %v2410, %v2665
      %s2667 = scalar_lea.vmem %s4, 6
      %v2668 = vld [vmem:[%s2667] sm:$0x3]
      %v2670 = vsel %vm1920, %v2668, 0
      %2672 = vmatprep.subr.mxu0 0.0
      %2673 = vmatpush1.msra.mxu0 %v1926
      %2674 = vmatprep.subr.mxu0 0.0
      %2675 = vmatpush1.msra.mxu0 0.0
      %2676 = vmatprep.subr.mxu0 0.0
      %2677 = vmatpush1.msra.mxu0 0.0
      %2678 = vmatprep.subr.mxu0 0.0
      %2679 = vmatpush1.msra.mxu0 0.0
      %2680 = vmatprep.subr.mxu0 0.0
      %2681 = vmatpush1.msra.mxu0 0.0
      %2682 = vmatprep.subr.mxu0 0.0
      %2683 = vmatpush1.msra.mxu0 0.0
      %2684 = vmatprep.subr.mxu0 0.0
      %2685 = vmatpush1.msra.mxu0 0.0
      %2686 = vmatprep.subr.mxu0 0.0
      %2687 = vmatpush1.msra.mxu0 0.0
      %2688 = vmatprep.subr.mxu0 0.0
      %2689 = vmatpush1.msra.mxu0 0.0
      %2690 = vmatprep.subr.mxu0 0.0
      %2691 = vmatpush1.msra.mxu0 0.0
      %2692 = vmatprep.subr.mxu0 0.0
      %2693 = vmatpush1.msra.mxu0 0.0
      %2694 = vmatprep.subr.mxu0 0.0
      %2695 = vmatpush1.msra.mxu0 0.0
      %2696 = vmatprep.subr.mxu0 0.0
      %2697 = vmatpush1.msra.mxu0 0.0
      %2698 = vmatprep.subr.mxu0 0.0
      %2699 = vmatpush1.msra.mxu0 0.0
      %2700 = vmatprep.subr.mxu0 0.0
      %2701 = vmatpush1.msra.mxu0 0.0
      %2702 = vmatprep.subr.mxu0 0.0
      %2703 = vmatpush1.msra.mxu0 0.0
      %2704 = vmatprep.subr.mxu0 0.0
      %2705 = vmatpush1.msra.mxu0 0.0
      %2706 = vmatprep.subr.mxu0 0.0
      %2707 = vmatpush1.msra.mxu0 0.0
      %2708 = vmatprep.subr.mxu0 0.0
      %2709 = vmatpush1.msra.mxu0 0.0
      %2710 = vmatprep.subr.mxu0 0.0
      %2711 = vmatpush1.msra.mxu0 0.0
      %2712 = vmatprep.subr.mxu0 0.0
      %2713 = vmatpush1.msra.mxu0 0.0
      %2714 = vmatprep.subr.mxu0 0.0
      %2715 = vmatpush1.msra.mxu0 0.0
      %2716 = vmatprep.subr.mxu0 0.0
      %2717 = vmatpush1.msra.mxu0 0.0
      %2718 = vmatprep.subr.mxu0 0.0
      %2719 = vmatpush1.msra.mxu0 0.0
      %2720 = vmatprep.subr.mxu0 0.0
      %2721 = vmatpush1.msra.mxu0 0.0
      %2722 = vmatprep.subr.mxu0 0.0
      %2723 = vmatpush1.msra.mxu0 0.0
      %2724 = vmatprep.subr.mxu0 0.0
      %2725 = vmatpush1.msra.mxu0 0.0
      %2726 = vmatprep.subr.mxu0 0.0
      %2727 = vmatpush1.msra.mxu0 0.0
      %2728 = vmatprep.subr.mxu0 0.0
      %2729 = vmatpush1.msra.mxu0 0.0
      %2730 = vmatprep.subr.mxu0 0.0
      %2731 = vmatpush1.msra.mxu0 0.0
      %2732 = vmatprep.subr.mxu0 0.0
      %2733 = vmatpush1.msra.mxu0 0.0
      %2734 = vmatprep.subr.mxu0 0.0
      %2735 = vmatpush1.msra.mxu0 0.0
      %2736 = vmatprep.mubr.f32.mxu0 0.0
      %2737 = vmatmul.mubr.f32.gmra.mrb[0].mxu0 %v2670
      %v2738 = vpop.f32.mrb[0].mxu0
      %v2739 = vadd.f32 0.0, %v2738
      %v2740 = vpop.f32.mrb[0].mxu0
      %2741 = vdwg.mxu0
      %s2742 = scalar_lea.vmem %s4, 8
      %v2743 = vld [vmem:[%s2742] sm:$0x3]
      %v2745 = vsel %vm1920, %v2743, 0
      %2747 = vmatprep.subr.mxu0 0.0
      %2748 = vmatpush1.msra.mxu0 %v1926
      %2749 = vmatprep.subr.mxu0 0.0
      %2750 = vmatpush1.msra.mxu0 0.0
      %2751 = vmatprep.subr.mxu0 0.0
      %2752 = vmatpush1.msra.mxu0 0.0
      %2753 = vmatprep.subr.mxu0 0.0
      %2754 = vmatpush1.msra.mxu0 0.0
      %2755 = vmatprep.subr.mxu0 0.0
      %2756 = vmatpush1.msra.mxu0 0.0
      %2757 = vmatprep.subr.mxu0 0.0
      %2758 = vmatpush1.msra.mxu0 0.0
      %2759 = vmatprep.subr.mxu0 0.0
      %2760 = vmatpush1.msra.mxu0 0.0
      %2761 = vmatprep.subr.mxu0 0.0
      %2762 = vmatpush1.msra.mxu0 0.0
      %2763 = vmatprep.subr.mxu0 0.0
      %2764 = vmatpush1.msra.mxu0 0.0
      %2765 = vmatprep.subr.mxu0 0.0
      %2766 = vmatpush1.msra.mxu0 0.0
      %2767 = vmatprep.subr.mxu0 0.0
      %2768 = vmatpush1.msra.mxu0 0.0
      %2769 = vmatprep.subr.mxu0 0.0
      %2770 = vmatpush1.msra.mxu0 0.0
      %2771 = vmatprep.subr.mxu0 0.0
      %2772 = vmatpush1.msra.mxu0 0.0
      %2773 = vmatprep.subr.mxu0 0.0
      %2774 = vmatpush1.msra.mxu0 0.0
      %2775 = vmatprep.subr.mxu0 0.0
      %2776 = vmatpush1.msra.mxu0 0.0
      %2777 = vmatprep.subr.mxu0 0.0
      %2778 = vmatpush1.msra.mxu0 0.0
      %2779 = vmatprep.subr.mxu0 0.0
      %2780 = vmatpush1.msra.mxu0 0.0
      %2781 = vmatprep.subr.mxu0 0.0
      %2782 = vmatpush1.msra.mxu0 0.0
      %2783 = vmatprep.subr.mxu0 0.0
      %2784 = vmatpush1.msra.mxu0 0.0
      %2785 = vmatprep.subr.mxu0 0.0
      %2786 = vmatpush1.msra.mxu0 0.0
      %2787 = vmatprep.subr.mxu0 0.0
      %2788 = vmatpush1.msra.mxu0 0.0
      %2789 = vmatprep.subr.mxu0 0.0
      %2790 = vmatpush1.msra.mxu0 0.0
      %2791 = vmatprep.subr.mxu0 0.0
      %2792 = vmatpush1.msra.mxu0 0.0
      %2793 = vmatprep.subr.mxu0 0.0
      %2794 = vmatpush1.msra.mxu0 0.0
      %2795 = vmatprep.subr.mxu0 0.0
      %2796 = vmatpush1.msra.mxu0 0.0
      %2797 = vmatprep.subr.mxu0 0.0
      %2798 = vmatpush1.msra.mxu0 0.0
      %2799 = vmatprep.subr.mxu0 0.0
      %2800 = vmatpush1.msra.mxu0 0.0
      %2801 = vmatprep.subr.mxu0 0.0
      %2802 = vmatpush1.msra.mxu0 0.0
      %2803 = vmatprep.subr.mxu0 0.0
      %2804 = vmatpush1.msra.mxu0 0.0
      %2805 = vmatprep.subr.mxu0 0.0
      %2806 = vmatpush1.msra.mxu0 0.0
      %2807 = vmatprep.subr.mxu0 0.0
      %2808 = vmatpush1.msra.mxu0 0.0
      %2809 = vmatprep.subr.mxu0 0.0
      %2810 = vmatpush1.msra.mxu0 0.0
      %2811 = vmatprep.mubr.f32.mxu0 0.0
      %2812 = vmatmul.mubr.f32.gmra.mrb[0].mxu0 %v2745
      %v2813 = vpop.f32.mrb[0].mxu0
      %v2814 = vadd.f32 0.0, %v2813
      %v2815 = vpop.f32.mrb[0].mxu0
      %2816 = vdwg.mxu0
      %s2817 = scalar_lea.vmem %s4, 10
      %v2818 = vld [vmem:[%s2817] sm:$0x3]
      %v2820 = vsel %vm1920, %v2818, 0
      %2822 = vmatprep.subr.mxu0 0.0
      %2823 = vmatpush1.msra.mxu0 %v1926
      %2824 = vmatprep.subr.mxu0 0.0
      %2825 = vmatpush1.msra.mxu0 0.0
      %2826 = vmatprep.subr.mxu0 0.0
      %2827 = vmatpush1.msra.mxu0 0.0
      %2828 = vmatprep.subr.mxu0 0.0
      %2829 = vmatpush1.msra.mxu0 0.0
      %2830 = vmatprep.subr.mxu0 0.0
      %2831 = vmatpush1.msra.mxu0 0.0
      %2832 = vmatprep.subr.mxu0 0.0
      %2833 = vmatpush1.msra.mxu0 0.0
      %2834 = vmatprep.subr.mxu0 0.0
      %2835 = vmatpush1.msra.mxu0 0.0
      %2836 = vmatprep.subr.mxu0 0.0
      %2837 = vmatpush1.msra.mxu0 0.0
      %2838 = vmatprep.subr.mxu0 0.0
      %2839 = vmatpush1.msra.mxu0 0.0
      %2840 = vmatprep.subr.mxu0 0.0
      %2841 = vmatpush1.msra.mxu0 0.0
      %2842 = vmatprep.subr.mxu0 0.0
      %2843 = vmatpush1.msra.mxu0 0.0
      %2844 = vmatprep.subr.mxu0 0.0
      %2845 = vmatpush1.msra.mxu0 0.0
      %2846 = vmatprep.subr.mxu0 0.0
      %2847 = vmatpush1.msra.mxu0 0.0
      %2848 = vmatprep.subr.mxu0 0.0
      %2849 = vmatpush1.msra.mxu0 0.0
      %2850 = vmatprep.subr.mxu0 0.0
      %2851 = vmatpush1.msra.mxu0 0.0
      %2852 = vmatprep.subr.mxu0 0.0
      %2853 = vmatpush1.msra.mxu0 0.0
      %2854 = vmatprep.subr.mxu0 0.0
      %2855 = vmatpush1.msra.mxu0 0.0
      %2856 = vmatprep.subr.mxu0 0.0
      %2857 = vmatpush1.msra.mxu0 0.0
      %2858 = vmatprep.subr.mxu0 0.0
      %2859 = vmatpush1.msra.mxu0 0.0
      %2860 = vmatprep.subr.mxu0 0.0
      %2861 = vmatpush1.msra.mxu0 0.0
      %2862 = vmatprep.subr.mxu0 0.0
      %2863 = vmatpush1.msra.mxu0 0.0
      %2864 = vmatprep.subr.mxu0 0.0
      %2865 = vmatpush1.msra.mxu0 0.0
      %2866 = vmatprep.subr.mxu0 0.0
      %2867 = vmatpush1.msra.mxu0 0.0
      %2868 = vmatprep.subr.mxu0 0.0
      %2869 = vmatpush1.msra.mxu0 0.0
      %2870 = vmatprep.subr.mxu0 0.0
      %2871 = vmatpush1.msra.mxu0 0.0
      %2872 = vmatprep.subr.mxu0 0.0
      %2873 = vmatpush1.msra.mxu0 0.0
      %2874 = vmatprep.subr.mxu0 0.0
      %2875 = vmatpush1.msra.mxu0 0.0
      %2876 = vmatprep.subr.mxu0 0.0
      %2877 = vmatpush1.msra.mxu0 0.0
      %2878 = vmatprep.subr.mxu0 0.0
      %2879 = vmatpush1.msra.mxu0 0.0
      %2880 = vmatprep.subr.mxu0 0.0
      %2881 = vmatpush1.msra.mxu0 0.0
      %2882 = vmatprep.subr.mxu0 0.0
      %2883 = vmatpush1.msra.mxu0 0.0
      %2884 = vmatprep.subr.mxu0 0.0
      %2885 = vmatpush1.msra.mxu0 0.0
      %2886 = vmatprep.mubr.f32.mxu0 0.0
      %2887 = vmatmul.mubr.f32.gmra.mrb[0].mxu0 %v2820
      %v2888 = vpop.f32.mrb[0].mxu0
      %v2889 = vadd.f32 0.0, %v2888
      %v2890 = vpop.f32.mrb[0].mxu0
      %2891 = vdwg.mxu0
      %v2893 = vsel %vm2159, %v2739, 0
      %2895 = vmatprep.subr.mxu0 0.0
      %2896 = vmatpush1.msra.mxu0 %v2149
      %2897 = vmatprep.subr.mxu0 0.0
      %2898 = vmatpush1.msra.mxu0 %v2150
      %2899 = vmatprep.subr.mxu0 0.0
      %2900 = vmatpush1.msra.mxu0 %v2151
      %2901 = vmatprep.subr.mxu0 0.0
      %2902 = vmatpush1.msra.mxu0 %v2152
      %2903 = vmatprep.subr.mxu0 0.0
      %2904 = vmatpush1.msra.mxu0 %v2153
      %2905 = vmatprep.subr.mxu0 0.0
      %2906 = vmatpush1.msra.mxu0 %v2154
      %2907 = vmatprep.subr.mxu0 0.0
      %2908 = vmatpush1.msra.mxu0 %v2155
      %2909 = vmatprep.subr.mxu0 0.0
      %2910 = vmatpush1.msra.mxu0 %v2156
      %2911 = vmatprep.subr.mxu0 0.0
      %2912 = vmatpush1.msra.mxu0 %v2157
      %2913 = vmatprep.subr.mxu0 0.0
      %2914 = vmatpush1.msra.mxu0 %v2158
      %2915 = vmatprep.subr.mxu0 0.0
      %2916 = vmatpush1.msra.mxu0 0.0
      %2917 = vmatprep.subr.mxu0 0.0
      %2918 = vmatpush1.msra.mxu0 0.0
      %2919 = vmatprep.subr.mxu0 0.0
      %2920 = vmatpush1.msra.mxu0 0.0
      %2921 = vmatprep.subr.mxu0 0.0
      %2922 = vmatpush1.msra.mxu0 0.0
      %2923 = vmatprep.subr.mxu0 0.0
      %2924 = vmatpush1.msra.mxu0 0.0
      %2925 = vmatprep.subr.mxu0 0.0
      %2926 = vmatpush1.msra.mxu0 0.0
      %2927 = vmatprep.subr.mxu0 0.0
      %2928 = vmatpush1.msra.mxu0 0.0
      %2929 = vmatprep.subr.mxu0 0.0
      %2930 = vmatpush1.msra.mxu0 0.0
      %2931 = vmatprep.subr.mxu0 0.0
      %2932 = vmatpush1.msra.mxu0 0.0
      %2933 = vmatprep.subr.mxu0 0.0
      %2934 = vmatpush1.msra.mxu0 0.0
      %2935 = vmatprep.subr.mxu0 0.0
      %2936 = vmatpush1.msra.mxu0 0.0
      %2937 = vmatprep.subr.mxu0 0.0
      %2938 = vmatpush1.msra.mxu0 0.0
      %2939 = vmatprep.subr.mxu0 0.0
      %2940 = vmatpush1.msra.mxu0 0.0
      %2941 = vmatprep.subr.mxu0 0.0
      %2942 = vmatpush1.msra.mxu0 0.0
      %2943 = vmatprep.subr.mxu0 0.0
      %2944 = vmatpush1.msra.mxu0 0.0
      %2945 = vmatprep.subr.mxu0 0.0
      %2946 = vmatpush1.msra.mxu0 0.0
      %2947 = vmatprep.subr.mxu0 0.0
      %2948 = vmatpush1.msra.mxu0 0.0
      %2949 = vmatprep.subr.mxu0 0.0
      %2950 = vmatpush1.msra.mxu0 0.0
      %2951 = vmatprep.subr.mxu0 0.0
      %2952 = vmatpush1.msra.mxu0 0.0
      %2953 = vmatprep.subr.mxu0 0.0
      %2954 = vmatpush1.msra.mxu0 0.0
      %2955 = vmatprep.subr.mxu0 0.0
      %2956 = vmatpush1.msra.mxu0 0.0
      %2957 = vmatprep.subr.mxu0 0.0
      %2958 = vmatpush1.msra.mxu0 0.0
      %2959 = vmatprep.mubr.f32.mxu0 0.0
      %2960 = vmatmul.mubr.f32.gmra.mrb[0].mxu0 %v2893
      %v2961 = vpop.f32.mrb[0].mxu0
      %v2962 = vadd.f32 0.0, %v2961
      %v2963 = vpop.f32.mrb[0].mxu0
      %2964 = vdwg.mxu0
      %v2965 = vadd.f32 %v2237, %v2962
      %v2967 = vsel %vm2159, %v2814, 0
      %2969 = vmatprep.subr.mxu0 0.0
      %2970 = vmatpush1.msra.mxu0 %v2241
      %2971 = vmatprep.subr.mxu0 0.0
      %2972 = vmatpush1.msra.mxu0 %v2242
      %2973 = vmatprep.subr.mxu0 0.0
      %2974 = vmatpush1.msra.mxu0 %v2243
      %2975 = vmatprep.subr.mxu0 0.0
      %2976 = vmatpush1.msra.mxu0 %v2244
      %2977 = vmatprep.subr.mxu0 0.0
      %2978 = vmatpush1.msra.mxu0 %v2245
      %2979 = vmatprep.subr.mxu0 0.0
      %2980 = vmatpush1.msra.mxu0 %v2246
      %2981 = vmatprep.subr.mxu0 0.0
      %2982 = vmatpush1.msra.mxu0 %v2247
      %2983 = vmatprep.subr.mxu0 0.0
      %2984 = vmatpush1.msra.mxu0 %v2248
      %2985 = vmatprep.subr.mxu0 0.0
      %2986 = vmatpush1.msra.mxu0 %v2249
      %2987 = vmatprep.subr.mxu0 0.0
      %2988 = vmatpush1.msra.mxu0 %v2250
      %2989 = vmatprep.subr.mxu0 0.0
      %2990 = vmatpush1.msra.mxu0 0.0
      %2991 = vmatprep.subr.mxu0 0.0
      %2992 = vmatpush1.msra.mxu0 0.0
      %2993 = vmatprep.subr.mxu0 0.0
      %2994 = vmatpush1.msra.mxu0 0.0
      %2995 = vmatprep.subr.mxu0 0.0
      %2996 = vmatpush1.msra.mxu0 0.0
      %2997 = vmatprep.subr.mxu0 0.0
      %2998 = vmatpush1.msra.mxu0 0.0
      %2999 = vmatprep.subr.mxu0 0.0
      %3000 = vmatpush1.msra.mxu0 0.0
      %3001 = vmatprep.subr.mxu0 0.0
      %3002 = vmatpush1.msra.mxu0 0.0
      %3003 = vmatprep.subr.mxu0 0.0
      %3004 = vmatpush1.msra.mxu0 0.0
      %3005 = vmatprep.subr.mxu0 0.0
      %3006 = vmatpush1.msra.mxu0 0.0
      %3007 = vmatprep.subr.mxu0 0.0
      %3008 = vmatpush1.msra.mxu0 0.0
      %3009 = vmatprep.subr.mxu0 0.0
      %3010 = vmatpush1.msra.mxu0 0.0
      %3011 = vmatprep.subr.mxu0 0.0
      %3012 = vmatpush1.msra.mxu0 0.0
      %3013 = vmatprep.subr.mxu0 0.0
      %3014 = vmatpush1.msra.mxu0 0.0
      %3015 = vmatprep.subr.mxu0 0.0
      %3016 = vmatpush1.msra.mxu0 0.0
      %3017 = vmatprep.subr.mxu0 0.0
      %3018 = vmatpush1.msra.mxu0 0.0
      %3019 = vmatprep.subr.mxu0 0.0
      %3020 = vmatpush1.msra.mxu0 0.0
      %3021 = vmatprep.subr.mxu0 0.0
      %3022 = vmatpush1.msra.mxu0 0.0
      %3023 = vmatprep.subr.mxu0 0.0
      %3024 = vmatpush1.msra.mxu0 0.0
      %3025 = vmatprep.subr.mxu0 0.0
      %3026 = vmatpush1.msra.mxu0 0.0
      %3027 = vmatprep.subr.mxu0 0.0
      %3028 = vmatpush1.msra.mxu0 0.0
      %3029 = vmatprep.subr.mxu0 0.0
      %3030 = vmatpush1.msra.mxu0 0.0
      %3031 = vmatprep.subr.mxu0 0.0
      %3032 = vmatpush1.msra.mxu0 0.0
      %3033 = vmatprep.mubr.f32.mxu0 0.0
      %3034 = vmatmul.mubr.f32.gmra.mrb[0].mxu0 %v2967
      %v3035 = vpop.f32.mrb[0].mxu0
      %v3036 = vadd.f32 0.0, %v3035
      %v3037 = vpop.f32.mrb[0].mxu0
      %3038 = vdwg.mxu0
      %v3039 = vadd.f32 %v2965, %v3036
      %v3041 = vsel %vm2159, %v2889, 0
      %3043 = vmatprep.subr.mxu0 0.0
      %3044 = vmatpush1.msra.mxu0 %v2326
      %3045 = vmatprep.subr.mxu0 0.0
      %3046 = vmatpush1.msra.mxu0 %v2327
      %3047 = vmatprep.subr.mxu0 0.0
      %3048 = vmatpush1.msra.mxu0 %v2328
      %3049 = vmatprep.subr.mxu0 0.0
      %3050 = vmatpush1.msra.mxu0 %v2329
      %3051 = vmatprep.subr.mxu0 0.0
      %3052 = vmatpush1.msra.mxu0 %v2330
      %3053 = vmatprep.subr.mxu0 0.0
      %3054 = vmatpush1.msra.mxu0 %v2331
      %3055 = vmatprep.subr.mxu0 0.0
      %3056 = vmatpush1.msra.mxu0 %v2332
      %3057 = vmatprep.subr.mxu0 0.0
      %3058 = vmatpush1.msra.mxu0 %v2333
      %3059 = vmatprep.subr.mxu0 0.0
      %3060 = vmatpush1.msra.mxu0 %v2334
      %3061 = vmatprep.subr.mxu0 0.0
      %3062 = vmatpush1.msra.mxu0 %v2335
      %3063 = vmatprep.subr.mxu0 0.0
      %3064 = vmatpush1.msra.mxu0 0.0
      %3065 = vmatprep.subr.mxu0 0.0
      %3066 = vmatpush1.msra.mxu0 0.0
      %3067 = vmatprep.subr.mxu0 0.0
      %3068 = vmatpush1.msra.mxu0 0.0
      %3069 = vmatprep.subr.mxu0 0.0
      %3070 = vmatpush1.msra.mxu0 0.0
      %3071 = vmatprep.subr.mxu0 0.0
      %3072 = vmatpush1.msra.mxu0 0.0
      %3073 = vmatprep.subr.mxu0 0.0
      %3074 = vmatpush1.msra.mxu0 0.0
      %3075 = vmatprep.subr.mxu0 0.0
      %3076 = vmatpush1.msra.mxu0 0.0
      %3077 = vmatprep.subr.mxu0 0.0
      %3078 = vmatpush1.msra.mxu0 0.0
      %3079 = vmatprep.subr.mxu0 0.0
      %3080 = vmatpush1.msra.mxu0 0.0
      %3081 = vmatprep.subr.mxu0 0.0
      %3082 = vmatpush1.msra.mxu0 0.0
      %3083 = vmatprep.subr.mxu0 0.0
      %3084 = vmatpush1.msra.mxu0 0.0
      %3085 = vmatprep.subr.mxu0 0.0
      %3086 = vmatpush1.msra.mxu0 0.0
      %3087 = vmatprep.subr.mxu0 0.0
      %3088 = vmatpush1.msra.mxu0 0.0
      %3089 = vmatprep.subr.mxu0 0.0
      %3090 = vmatpush1.msra.mxu0 0.0
      %3091 = vmatprep.subr.mxu0 0.0
      %3092 = vmatpush1.msra.mxu0 0.0
      %3093 = vmatprep.subr.mxu0 0.0
      %3094 = vmatpush1.msra.mxu0 0.0
      %3095 = vmatprep.subr.mxu0 0.0
      %3096 = vmatpush1.msra.mxu0 0.0
      %3097 = vmatprep.subr.mxu0 0.0
      %3098 = vmatpush1.msra.mxu0 0.0
      %3099 = vmatprep.subr.mxu0 0.0
      %3100 = vmatpush1.msra.mxu0 0.0
      %3101 = vmatprep.subr.mxu0 0.0
      %3102 = vmatpush1.msra.mxu0 0.0
      %3103 = vmatprep.subr.mxu0 0.0
      %3104 = vmatpush1.msra.mxu0 0.0
      %3105 = vmatprep.subr.mxu0 0.0
      %3106 = vmatpush1.msra.mxu0 0.0
      %3107 = vmatprep.mubr.f32.mxu0 0.0
      %3108 = vmatmul.mubr.f32.gmra.mrb[0].mxu0 %v3041
      %v3109 = vpop.f32.mrb[0].mxu0
      %v3110 = vadd.f32 0.0, %v3109
      %v3111 = vpop.f32.mrb[0].mxu0
      %3112 = vdwg.mxu0
      %v3113 = vadd.f32 %v3039, %v3110
      %v3114 = vmax.f32 %v3113, 0.0
      %v3115 = vmax.f32 %v2666, %v3114
      %3116 = vmatprep.subr.mxu0 0.0
      %3117 = vmatpush1.msra.mxu0 %v2414
      %3118 = vmatprep.subr.mxu0 0.0
      %3119 = vmatpush1.msra.mxu0 %v2415
      %3120 = vmatprep.subr.mxu0 0.0
      %3121 = vmatpush1.msra.mxu0 %v2416
      %3122 = vmatprep.subr.mxu0 0.0
      %3123 = vmatpush1.msra.mxu0 %v2417
      %3124 = vmatprep.subr.mxu0 0.0
      %3125 = vmatpush1.msra.mxu0 %v2418
      %3126 = vmatprep.subr.mxu0 0.0
      %3127 = vmatpush1.msra.mxu0 %v2419
      %3128 = vmatprep.subr.mxu0 0.0
      %3129 = vmatpush1.msra.mxu0 %v2420
      %3130 = vmatprep.subr.mxu0 0.0
      %3131 = vmatpush1.msra.mxu0 %v2421
      %3132 = vmatprep.subr.mxu0 0.0
      %3133 = vmatpush1.msra.mxu0 %v2422
      %3134 = vmatprep.subr.mxu0 0.0
      %3135 = vmatpush1.msra.mxu0 %v2423
      %3136 = vmatprep.subr.mxu0 0.0
      %3137 = vmatpush1.msra.mxu0 0.0
      %3138 = vmatprep.subr.mxu0 0.0
      %3139 = vmatpush1.msra.mxu0 0.0
      %3140 = vmatprep.subr.mxu0 0.0
      %3141 = vmatpush1.msra.mxu0 0.0
      %3142 = vmatprep.subr.mxu0 0.0
      %3143 = vmatpush1.msra.mxu0 0.0
      %3144 = vmatprep.subr.mxu0 0.0
      %3145 = vmatpush1.msra.mxu0 0.0
      %3146 = vmatprep.subr.mxu0 0.0
      %3147 = vmatpush1.msra.mxu0 0.0
      %3148 = vmatprep.subr.mxu0 0.0
      %3149 = vmatpush1.msra.mxu0 0.0
      %3150 = vmatprep.subr.mxu0 0.0
      %3151 = vmatpush1.msra.mxu0 0.0
      %3152 = vmatprep.subr.mxu0 0.0
      %3153 = vmatpush1.msra.mxu0 0.0
      %3154 = vmatprep.subr.mxu0 0.0
      %3155 = vmatpush1.msra.mxu0 0.0
      %3156 = vmatprep.subr.mxu0 0.0
      %3157 = vmatpush1.msra.mxu0 0.0
      %3158 = vmatprep.subr.mxu0 0.0
      %3159 = vmatpush1.msra.mxu0 0.0
      %3160 = vmatprep.subr.mxu0 0.0
      %3161 = vmatpush1.msra.mxu0 0.0
      %3162 = vmatprep.subr.mxu0 0.0
      %3163 = vmatpush1.msra.mxu0 0.0
      %3164 = vmatprep.subr.mxu0 0.0
      %3165 = vmatpush1.msra.mxu0 0.0
      %3166 = vmatprep.subr.mxu0 0.0
      %3167 = vmatpush1.msra.mxu0 0.0
      %3168 = vmatprep.subr.mxu0 0.0
      %3169 = vmatpush1.msra.mxu0 0.0
      %3170 = vmatprep.subr.mxu0 0.0
      %3171 = vmatpush1.msra.mxu0 0.0
      %3172 = vmatprep.subr.mxu0 0.0
      %3173 = vmatpush1.msra.mxu0 0.0
      %3174 = vmatprep.subr.mxu0 0.0
      %3175 = vmatpush1.msra.mxu0 0.0
      %3176 = vmatprep.subr.mxu0 0.0
      %3177 = vmatpush1.msra.mxu0 0.0
      %3178 = vmatprep.subr.mxu0 0.0
      %3179 = vmatpush1.msra.mxu0 0.0
      %3180 = vmatprep.mubr.f32.mxu0 0.0
      %3181 = vmatmul.mubr.f32.gmra.mrb[0].mxu0 %v2893
      %v3182 = vpop.f32.mrb[0].mxu0
      %v3183 = vadd.f32 0.0, %v3182
      %v3184 = vpop.f32.mrb[0].mxu0
      %3185 = vdwg.mxu0
      %v3186 = vadd.f32 %v2498, %v3183
      %3187 = vmatprep.subr.mxu0 0.0
      %3188 = vmatpush1.msra.mxu0 %v2502
      %3189 = vmatprep.subr.mxu0 0.0
      %3190 = vmatpush1.msra.mxu0 %v2503
      %3191 = vmatprep.subr.mxu0 0.0
      %3192 = vmatpush1.msra.mxu0 %v2504
      %3193 = vmatprep.subr.mxu0 0.0
      %3194 = vmatpush1.msra.mxu0 %v2505
      %3195 = vmatprep.subr.mxu0 0.0
      %3196 = vmatpush1.msra.mxu0 %v2506
      %3197 = vmatprep.subr.mxu0 0.0
      %3198 = vmatpush1.msra.mxu0 %v2507
      %3199 = vmatprep.subr.mxu0 0.0
      %3200 = vmatpush1.msra.mxu0 %v2508
      %3201 = vmatprep.subr.mxu0 0.0
      %3202 = vmatpush1.msra.mxu0 %v2509
      %3203 = vmatprep.subr.mxu0 0.0
      %3204 = vmatpush1.msra.mxu0 %v2510
      %3205 = vmatprep.subr.mxu0 0.0
      %3206 = vmatpush1.msra.mxu0 %v2511
      %3207 = vmatprep.subr.mxu0 0.0
      %3208 = vmatpush1.msra.mxu0 0.0
      %3209 = vmatprep.subr.mxu0 0.0
      %3210 = vmatpush1.msra.mxu0 0.0
      %3211 = vmatprep.subr.mxu0 0.0
      %3212 = vmatpush1.msra.mxu0 0.0
      %3213 = vmatprep.subr.mxu0 0.0
      %3214 = vmatpush1.msra.mxu0 0.0
      %3215 = vmatprep.subr.mxu0 0.0
      %3216 = vmatpush1.msra.mxu0 0.0
      %3217 = vmatprep.subr.mxu0 0.0
      %3218 = vmatpush1.msra.mxu0 0.0
      %3219 = vmatprep.subr.mxu0 0.0
      %3220 = vmatpush1.msra.mxu0 0.0
      %3221 = vmatprep.subr.mxu0 0.0
      %3222 = vmatpush1.msra.mxu0 0.0
      %3223 = vmatprep.subr.mxu0 0.0
      %3224 = vmatpush1.msra.mxu0 0.0
      %3225 = vmatprep.subr.mxu0 0.0
      %3226 = vmatpush1.msra.mxu0 0.0
      %3227 = vmatprep.subr.mxu0 0.0
      %3228 = vmatpush1.msra.mxu0 0.0
      %3229 = vmatprep.subr.mxu0 0.0
      %3230 = vmatpush1.msra.mxu0 0.0
      %3231 = vmatprep.subr.mxu0 0.0
      %3232 = vmatpush1.msra.mxu0 0.0
      %3233 = vmatprep.subr.mxu0 0.0
      %3234 = vmatpush1.msra.mxu0 0.0
      %3235 = vmatprep.subr.mxu0 0.0
      %3236 = vmatpush1.msra.mxu0 0.0
      %3237 = vmatprep.subr.mxu0 0.0
      %3238 = vmatpush1.msra.mxu0 0.0
      %3239 = vmatprep.subr.mxu0 0.0
      %3240 = vmatpush1.msra.mxu0 0.0
      %3241 = vmatprep.subr.mxu0 0.0
      %3242 = vmatpush1.msra.mxu0 0.0
      %3243 = vmatprep.subr.mxu0 0.0
      %3244 = vmatpush1.msra.mxu0 0.0
      %3245 = vmatprep.subr.mxu0 0.0
      %3246 = vmatpush1.msra.mxu0 0.0
      %3247 = vmatprep.subr.mxu0 0.0
      %3248 = vmatpush1.msra.mxu0 0.0
      %3249 = vmatprep.subr.mxu0 0.0
      %3250 = vmatpush1.msra.mxu0 0.0
      %3251 = vmatprep.mubr.f32.mxu0 0.0
      %3252 = vmatmul.mubr.f32.gmra.mrb[0].mxu0 %v2967
      %v3253 = vpop.f32.mrb[0].mxu0
      %v3254 = vadd.f32 0.0, %v3253
      %v3255 = vpop.f32.mrb[0].mxu0
      %3256 = vdwg.mxu0
      %v3257 = vadd.f32 %v3186, %v3254
      %3258 = vmatprep.subr.mxu0 0.0
      %3259 = vmatpush1.msra.mxu0 %v2584
      %3260 = vmatprep.subr.mxu0 0.0
      %3261 = vmatpush1.msra.mxu0 %v2585
      %3262 = vmatprep.subr.mxu0 0.0
      %3263 = vmatpush1.msra.mxu0 %v2586
      %3264 = vmatprep.subr.mxu0 0.0
      %3265 = vmatpush1.msra.mxu0 %v2587
      %3266 = vmatprep.subr.mxu0 0.0
      %3267 = vmatpush1.msra.mxu0 %v2588
      %3268 = vmatprep.subr.mxu0 0.0
      %3269 = vmatpush1.msra.mxu0 %v2589
      %3270 = vmatprep.subr.mxu0 0.0
      %3271 = vmatpush1.msra.mxu0 %v2590
      %3272 = vmatprep.subr.mxu0 0.0
      %3273 = vmatpush1.msra.mxu0 %v2591
      %3274 = vmatprep.subr.mxu0 0.0
      %3275 = vmatpush1.msra.mxu0 %v2592
      %3276 = vmatprep.subr.mxu0 0.0
      %3277 = vmatpush1.msra.mxu0 %v2593
      %3278 = vmatprep.subr.mxu0 0.0
      %3279 = vmatpush1.msra.mxu0 0.0
      %3280 = vmatprep.subr.mxu0 0.0
      %3281 = vmatpush1.msra.mxu0 0.0
      %3282 = vmatprep.subr.mxu0 0.0
      %3283 = vmatpush1.msra.mxu0 0.0
      %3284 = vmatprep.subr.mxu0 0.0
      %3285 = vmatpush1.msra.mxu0 0.0
      %3286 = vmatprep.subr.mxu0 0.0
      %3287 = vmatpush1.msra.mxu0 0.0
      %3288 = vmatprep.subr.mxu0 0.0
      %3289 = vmatpush1.msra.mxu0 0.0
      %3290 = vmatprep.subr.mxu0 0.0
      %3291 = vmatpush1.msra.mxu0 0.0
      %3292 = vmatprep.subr.mxu0 0.0
      %3293 = vmatpush1.msra.mxu0 0.0
      %3294 = vmatprep.subr.mxu0 0.0
      %3295 = vmatpush1.msra.mxu0 0.0
      %3296 = vmatprep.subr.mxu0 0.0
      %3297 = vmatpush1.msra.mxu0 0.0
      %3298 = vmatprep.subr.mxu0 0.0
      %3299 = vmatpush1.msra.mxu0 0.0
      %3300 = vmatprep.subr.mxu0 0.0
      %3301 = vmatpush1.msra.mxu0 0.0
      %3302 = vmatprep.subr.mxu0 0.0
      %3303 = vmatpush1.msra.mxu0 0.0
      %3304 = vmatprep.subr.mxu0 0.0
      %3305 = vmatpush1.msra.mxu0 0.0
      %3306 = vmatprep.subr.mxu0 0.0
      %3307 = vmatpush1.msra.mxu0 0.0
      %3308 = vmatprep.subr.mxu0 0.0
      %3309 = vmatpush1.msra.mxu0 0.0
      %3310 = vmatprep.subr.mxu0 0.0
      %3311 = vmatpush1.msra.mxu0 0.0
      %3312 = vmatprep.subr.mxu0 0.0
      %3313 = vmatpush1.msra.mxu0 0.0
      %3314 = vmatprep.subr.mxu0 0.0
      %3315 = vmatpush1.msra.mxu0 0.0
      %3316 = vmatprep.subr.mxu0 0.0
      %3317 = vmatpush1.msra.mxu0 0.0
      %3318 = vmatprep.subr.mxu0 0.0
      %3319 = vmatpush1.msra.mxu0 0.0
      %3320 = vmatprep.subr.mxu0 0.0
      %3321 = vmatpush1.msra.mxu0 0.0
      %3322 = vmatprep.mubr.f32.mxu0 0.0
      %3323 = vmatmul.mubr.f32.gmra.mrb[0].mxu0 %v3041
      %v3324 = vpop.f32.mrb[0].mxu0
      %v3325 = vadd.f32 0.0, %v3324
      %v3326 = vpop.f32.mrb[0].mxu0
      %3327 = vdwg.mxu0
      %v3328 = vadd.f32 %v3257, %v3325
      %v3329 = vmax.f32 %v3328, 0.0
      %v3330 = vmax.f32 %v3115, %v3329
      %v3331 = vld [vmem:[%s9] sm:$0x1]
      %v3332 = vld [vmem:[%s7] sm:$0x1f]
      %vm3333 = vcmask 15360
      %v3335 = vsel %vm3333, %v3332, 0
      %vm3337 = vcmask 1041408
      %v3339 = vsel %vm3337, %v3330, 0
      %3341 = vmatprep.subr.mxu0 0.0
      %3342 = vmatpush1.msra.mxu0 %v3339
      %3343 = vmatprep.subr.mxu0 0.0
      %3344 = vmatpush1.msra.mxu0 0.0
      %3345 = vmatprep.subr.mxu0 0.0
      %3346 = vmatpush1.msra.mxu0 0.0
      %3347 = vmatprep.subr.mxu0 0.0
      %3348 = vmatpush1.msra.mxu0 0.0
      %3349 = vmatprep.subr.mxu0 0.0
      %3350 = vmatpush1.msra.mxu0 0.0
      %3351 = vmatprep.subr.mxu0 0.0
      %3352 = vmatpush1.msra.mxu0 0.0
      %3353 = vmatprep.subr.mxu0 0.0
      %3354 = vmatpush1.msra.mxu0 0.0
      %3355 = vmatprep.subr.mxu0 0.0
      %3356 = vmatpush1.msra.mxu0 0.0
      %3357 = vmatprep.subr.mxu0 0.0
      %3358 = vmatpush1.msra.mxu0 0.0
      %3359 = vmatprep.subr.mxu0 0.0
      %3360 = vmatpush1.msra.mxu0 0.0
      %3361 = vmatprep.subr.mxu0 0.0
      %3362 = vmatpush1.msra.mxu0 0.0
      %3363 = vmatprep.subr.mxu0 0.0
      %3364 = vmatpush1.msra.mxu0 0.0
      %3365 = vmatprep.subr.mxu0 0.0
      %3366 = vmatpush1.msra.mxu0 0.0
      %3367 = vmatprep.subr.mxu0 0.0
      %3368 = vmatpush1.msra.mxu0 0.0
      %3369 = vmatprep.subr.mxu0 0.0
      %3370 = vmatpush1.msra.mxu0 0.0
      %3371 = vmatprep.subr.mxu0 0.0
      %3372 = vmatpush1.msra.mxu0 0.0
      %3373 = vmatprep.subr.mxu0 0.0
      %3374 = vmatpush1.msra.mxu0 0.0
      %3375 = vmatprep.subr.mxu0 0.0
      %3376 = vmatpush1.msra.mxu0 0.0
      %3377 = vmatprep.subr.mxu0 0.0
      %3378 = vmatpush1.msra.mxu0 0.0
      %3379 = vmatprep.subr.mxu0 0.0
      %3380 = vmatpush1.msra.mxu0 0.0
      %3381 = vmatprep.subr.mxu0 0.0
      %3382 = vmatpush1.msra.mxu0 0.0
      %3383 = vmatprep.subr.mxu0 0.0
      %3384 = vmatpush1.msra.mxu0 0.0
      %3385 = vmatprep.subr.mxu0 0.0
      %3386 = vmatpush1.msra.mxu0 0.0
      %3387 = vmatprep.subr.mxu0 0.0
      %3388 = vmatpush1.msra.mxu0 0.0
      %3389 = vmatprep.subr.mxu0 0.0
      %3390 = vmatpush1.msra.mxu0 0.0
      %3391 = vmatprep.subr.mxu0 0.0
      %3392 = vmatpush1.msra.mxu0 0.0
      %3393 = vmatprep.subr.mxu0 0.0
      %3394 = vmatpush1.msra.mxu0 0.0
      %3395 = vmatprep.subr.mxu0 0.0
      %3396 = vmatpush1.msra.mxu0 0.0
      %3397 = vmatprep.subr.mxu0 0.0
      %3398 = vmatpush1.msra.mxu0 0.0
      %3399 = vmatprep.subr.mxu0 0.0
      %3400 = vmatpush1.msra.mxu0 0.0
      %3401 = vmatprep.subr.mxu0 0.0
      %3402 = vmatpush1.msra.mxu0 0.0
      %3403 = vmatprep.subr.mxu0 0.0
      %3404 = vmatpush1.msra.mxu0 0.0
      %3405 = vmatprep.mubr.f32.mxu0 0.0
      %3406 = vmatmul.mubr.f32.gmra.mrb[0].mxu0 %v3335
      %v3407 = vpop.f32.mrb[0].mxu0
      %v3408 = vadd.f32 0.0, %v3407
      %v3409 = vpop.f32.mrb[0].mxu0
      %3410 = vdwg.mxu0
      %v3411 = vld [vmem:[%s8] sm:$0xff]
      %v3412 = vld [vmem:[%s8 + $0x8] sm:$0xff]
      %vm3413 = vcmask 130048
      %v3415 = vsel %vm3413, %v3408, 0
      %3417 = vmatprep.subr.mxu0 0.0
      %3418 = vmatpush1.msra.mxu0 %v3411
      %3419 = vmatprep.subr.mxu0 0.0
      %3420 = vmatpush1.msra.mxu0 %v3412
      %3421 = vmatprep.subr.mxu0 0.0
      %3422 = vmatpush1.msra.mxu0 0.0
      %3423 = vmatprep.subr.mxu0 0.0
      %3424 = vmatpush1.msra.mxu0 0.0
      %3425 = vmatprep.subr.mxu0 0.0
      %3426 = vmatpush1.msra.mxu0 0.0
      %3427 = vmatprep.subr.mxu0 0.0
      %3428 = vmatpush1.msra.mxu0 0.0
      %3429 = vmatprep.subr.mxu0 0.0
      %3430 = vmatpush1.msra.mxu0 0.0
      %3431 = vmatprep.subr.mxu0 0.0
      %3432 = vmatpush1.msra.mxu0 0.0
      %3433 = vmatprep.subr.mxu0 0.0
      %3434 = vmatpush1.msra.mxu0 0.0
      %3435 = vmatprep.subr.mxu0 0.0
      %3436 = vmatpush1.msra.mxu0 0.0
      %3437 = vmatprep.subr.mxu0 0.0
      %3438 = vmatpush1.msra.mxu0 0.0
      %3439 = vmatprep.subr.mxu0 0.0
      %3440 = vmatpush1.msra.mxu0 0.0
      %3441 = vmatprep.subr.mxu0 0.0
      %3442 = vmatpush1.msra.mxu0 0.0
      %3443 = vmatprep.subr.mxu0 0.0
      %3444 = vmatpush1.msra.mxu0 0.0
      %3445 = vmatprep.subr.mxu0 0.0
      %3446 = vmatpush1.msra.mxu0 0.0
      %3447 = vmatprep.subr.mxu0 0.0
      %3448 = vmatpush1.msra.mxu0 0.0
      %3449 = vmatprep.subr.mxu0 0.0
      %3450 = vmatpush1.msra.mxu0 0.0
      %3451 = vmatprep.subr.mxu0 0.0
      %3452 = vmatpush1.msra.mxu0 0.0
      %3453 = vmatprep.subr.mxu0 0.0
      %3454 = vmatpush1.msra.mxu0 0.0
      %3455 = vmatprep.subr.mxu0 0.0
      %3456 = vmatpush1.msra.mxu0 0.0
      %3457 = vmatprep.subr.mxu0 0.0
      %3458 = vmatpush1.msra.mxu0 0.0
      %3459 = vmatprep.subr.mxu0 0.0
      %3460 = vmatpush1.msra.mxu0 0.0
      %3461 = vmatprep.subr.mxu0 0.0
      %3462 = vmatpush1.msra.mxu0 0.0
      %3463 = vmatprep.subr.mxu0 0.0
      %3464 = vmatpush1.msra.mxu0 0.0
      %3465 = vmatprep.subr.mxu0 0.0
      %3466 = vmatpush1.msra.mxu0 0.0
      %3467 = vmatprep.subr.mxu0 0.0
      %3468 = vmatpush1.msra.mxu0 0.0
      %3469 = vmatprep.subr.mxu0 0.0
      %3470 = vmatpush1.msra.mxu0 0.0
      %3471 = vmatprep.subr.mxu0 0.0
      %3472 = vmatpush1.msra.mxu0 0.0
      %3473 = vmatprep.subr.mxu0 0.0
      %3474 = vmatpush1.msra.mxu0 0.0
      %3475 = vmatprep.subr.mxu0 0.0
      %3476 = vmatpush1.msra.mxu0 0.0
      %3477 = vmatprep.subr.mxu0 0.0
      %3478 = vmatpush1.msra.mxu0 0.0
      %3479 = vmatprep.subr.mxu0 0.0
      %3480 = vmatpush1.msra.mxu0 0.0
      %3481 = vmatprep.mubr.f32.mxu0 0.0
      %3482 = vmatmul.mubr.f32.gmra.mrb[0].mxu0 %v3415
      %v3483 = vpop.f32.mrb[0].mxu0
      %v3484 = vadd.f32 0.0, %v3483
      %v3485 = vpop.f32.mrb[0].mxu0
      %3486 = vdwg.mxu0
      %v3488 = vlaneseq
      %v3489 = vshrl.u32 %v3488, 7
      %v3490 = vsub.s32 0, %v3489
      %v3491 = vrot.slane %v3331, %v3490
      %v3493 = vadd.f32 %v3491, %v3484
      %s3494 = scalar_lea.vmem %s7, 8
      %v3495 = vld [vmem:[%s3494] sm:$0x1f]
      %v3497 = vsel %vm3333, %v3495, 0
      %3499 = vmatprep.subr.mxu0 0.0
      %3500 = vmatpush1.msra.mxu0 %v3339
      %3501 = vmatprep.subr.mxu0 0.0
      %3502 = vmatpush1.msra.mxu0 0.0
      %3503 = vmatprep.subr.mxu0 0.0
      %3504 = vmatpush1.msra.mxu0 0.0
      %3505 = vmatprep.subr.mxu0 0.0
      %3506 = vmatpush1.msra.mxu0 0.0
      %3507 = vmatprep.subr.mxu0 0.0
      %3508 = vmatpush1.msra.mxu0 0.0
      %3509 = vmatprep.subr.mxu0 0.0
      %3510 = vmatpush1.msra.mxu0 0.0
      %3511 = vmatprep.subr.mxu0 0.0
      %3512 = vmatpush1.msra.mxu0 0.0
      %3513 = vmatprep.subr.mxu0 0.0
      %3514 = vmatpush1.msra.mxu0 0.0
      %3515 = vmatprep.subr.mxu0 0.0
      %3516 = vmatpush1.msra.mxu0 0.0
      %3517 = vmatprep.subr.mxu0 0.0
      %3518 = vmatpush1.msra.mxu0 0.0
      %3519 = vmatprep.subr.mxu0 0.0
      %3520 = vmatpush1.msra.mxu0 0.0
      %3521 = vmatprep.subr.mxu0 0.0
      %3522 = vmatpush1.msra.mxu0 0.0
      %3523 = vmatprep.subr.mxu0 0.0
      %3524 = vmatpush1.msra.mxu0 0.0
      %3525 = vmatprep.subr.mxu0 0.0
      %3526 = vmatpush1.msra.mxu0 0.0
      %3527 = vmatprep.subr.mxu0 0.0
      %3528 = vmatpush1.msra.mxu0 0.0
      %3529 = vmatprep.subr.mxu0 0.0
      %3530 = vmatpush1.msra.mxu0 0.0
      %3531 = vmatprep.subr.mxu0 0.0
      %3532 = vmatpush1.msra.mxu0 0.0
      %3533 = vmatprep.subr.mxu0 0.0
      %3534 = vmatpush1.msra.mxu0 0.0
      %3535 = vmatprep.subr.mxu0 0.0
      %3536 = vmatpush1.msra.mxu0 0.0
      %3537 = vmatprep.subr.mxu0 0.0
      %3538 = vmatpush1.msra.mxu0 0.0
      %3539 = vmatprep.subr.mxu0 0.0
      %3540 = vmatpush1.msra.mxu0 0.0
      %3541 = vmatprep.subr.mxu0 0.0
      %3542 = vmatpush1.msra.mxu0 0.0
      %3543 = vmatprep.subr.mxu0 0.0
      %3544 = vmatpush1.msra.mxu0 0.0
      %3545 = vmatprep.subr.mxu0 0.0
      %3546 = vmatpush1.msra.mxu0 0.0
      %3547 = vmatprep.subr.mxu0 0.0
      %3548 = vmatpush1.msra.mxu0 0.0
      %3549 = vmatprep.subr.mxu0 0.0
      %3550 = vmatpush1.msra.mxu0 0.0
      %3551 = vmatprep.subr.mxu0 0.0
      %3552 = vmatpush1.msra.mxu0 0.0
      %3553 = vmatprep.subr.mxu0 0.0
      %3554 = vmatpush1.msra.mxu0 0.0
      %3555 = vmatprep.subr.mxu0 0.0
      %3556 = vmatpush1.msra.mxu0 0.0
      %3557 = vmatprep.subr.mxu0 0.0
      %3558 = vmatpush1.msra.mxu0 0.0
      %3559 = vmatprep.subr.mxu0 0.0
      %3560 = vmatpush1.msra.mxu0 0.0
      %3561 = vmatprep.subr.mxu0 0.0
      %3562 = vmatpush1.msra.mxu0 0.0
      %3563 = vmatprep.mubr.f32.mxu0 0.0
      %3564 = vmatmul.mubr.f32.gmra.mrb[0].mxu0 %v3497
      %v3565 = vpop.f32.mrb[0].mxu0
      %v3566 = vadd.f32 0.0, %v3565
      %v3567 = vpop.f32.mrb[0].mxu0
      %3568 = vdwg.mxu0
      %s3569 = scalar_lea.vmem %s8, 16
      %v3570 = vld [vmem:[%s3569] sm:$0xff]
      %v3571 = vld [vmem:[%s3569 + $0x8] sm:$0xff]
      %v3573 = vsel %vm3413, %v3566, 0
      %3575 = vmatprep.subr.mxu0 0.0
      %3576 = vmatpush1.msra.mxu0 %v3570
      %3577 = vmatprep.subr.mxu0 0.0
      %3578 = vmatpush1.msra.mxu0 %v3571
      %3579 = vmatprep.subr.mxu0 0.0
      %3580 = vmatpush1.msra.mxu0 0.0
      %3581 = vmatprep.subr.mxu0 0.0
      %3582 = vmatpush1.msra.mxu0 0.0
      %3583 = vmatprep.subr.mxu0 0.0
      %3584 = vmatpush1.msra.mxu0 0.0
      %3585 = vmatprep.subr.mxu0 0.0
      %3586 = vmatpush1.msra.mxu0 0.0
      %3587 = vmatprep.subr.mxu0 0.0
      %3588 = vmatpush1.msra.mxu0 0.0
      %3589 = vmatprep.subr.mxu0 0.0
      %3590 = vmatpush1.msra.mxu0 0.0
      %3591 = vmatprep.subr.mxu0 0.0
      %3592 = vmatpush1.msra.mxu0 0.0
      %3593 = vmatprep.subr.mxu0 0.0
      %3594 = vmatpush1.msra.mxu0 0.0
      %3595 = vmatprep.subr.mxu0 0.0
      %3596 = vmatpush1.msra.mxu0 0.0
      %3597 = vmatprep.subr.mxu0 0.0
      %3598 = vmatpush1.msra.mxu0 0.0
      %3599 = vmatprep.subr.mxu0 0.0
      %3600 = vmatpush1.msra.mxu0 0.0
      %3601 = vmatprep.subr.mxu0 0.0
      %3602 = vmatpush1.msra.mxu0 0.0
      %3603 = vmatprep.subr.mxu0 0.0
      %3604 = vmatpush1.msra.mxu0 0.0
      %3605 = vmatprep.subr.mxu0 0.0
      %3606 = vmatpush1.msra.mxu0 0.0
      %3607 = vmatprep.subr.mxu0 0.0
      %3608 = vmatpush1.msra.mxu0 0.0
      %3609 = vmatprep.subr.mxu0 0.0
      %3610 = vmatpush1.msra.mxu0 0.0
      %3611 = vmatprep.subr.mxu0 0.0
      %3612 = vmatpush1.msra.mxu0 0.0
      %3613 = vmatprep.subr.mxu0 0.0
      %3614 = vmatpush1.msra.mxu0 0.0
      %3615 = vmatprep.subr.mxu0 0.0
      %3616 = vmatpush1.msra.mxu0 0.0
      %3617 = vmatprep.subr.mxu0 0.0
      %3618 = vmatpush1.msra.mxu0 0.0
      %3619 = vmatprep.subr.mxu0 0.0
      %3620 = vmatpush1.msra.mxu0 0.0
      %3621 = vmatprep.subr.mxu0 0.0
      %3622 = vmatpush1.msra.mxu0 0.0
      %3623 = vmatprep.subr.mxu0 0.0
      %3624 = vmatpush1.msra.mxu0 0.0
      %3625 = vmatprep.subr.mxu0 0.0
      %3626 = vmatpush1.msra.mxu0 0.0
      %3627 = vmatprep.subr.mxu0 0.0
      %3628 = vmatpush1.msra.mxu0 0.0
      %3629 = vmatprep.subr.mxu0 0.0
      %3630 = vmatpush1.msra.mxu0 0.0
      %3631 = vmatprep.subr.mxu0 0.0
      %3632 = vmatpush1.msra.mxu0 0.0
      %3633 = vmatprep.subr.mxu0 0.0
      %3634 = vmatpush1.msra.mxu0 0.0
      %3635 = vmatprep.subr.mxu0 0.0
      %3636 = vmatpush1.msra.mxu0 0.0
      %3637 = vmatprep.subr.mxu0 0.0
      %3638 = vmatpush1.msra.mxu0 0.0
      %3639 = vmatprep.mubr.f32.mxu0 0.0
      %3640 = vmatmul.mubr.f32.gmra.mrb[0].mxu0 %v3573
      %v3641 = vpop.f32.mrb[0].mxu0
      %v3642 = vadd.f32 0.0, %v3641
      %v3643 = vpop.f32.mrb[0].mxu0
      %3644 = vdwg.mxu0
      %v3645 = vadd.f32 %v3493, %v3642
      %s3646 = scalar_lea.vmem %s7, 16
      %v3647 = vld [vmem:[%s3646] sm:$0x1f]
      %v3649 = vsel %vm3333, %v3647, 0
      %3651 = vmatprep.subr.mxu0 0.0
      %3652 = vmatpush1.msra.mxu0 %v3339
      %3653 = vmatprep.subr.mxu0 0.0
      %3654 = vmatpush1.msra.mxu0 0.0
      %3655 = vmatprep.subr.mxu0 0.0
      %3656 = vmatpush1.msra.mxu0 0.0
      %3657 = vmatprep.subr.mxu0 0.0
      %3658 = vmatpush1.msra.mxu0 0.0
      %3659 = vmatprep.subr.mxu0 0.0
      %3660 = vmatpush1.msra.mxu0 0.0
      %3661 = vmatprep.subr.mxu0 0.0
      %3662 = vmatpush1.msra.mxu0 0.0
      %3663 = vmatprep.subr.mxu0 0.0
      %3664 = vmatpush1.msra.mxu0 0.0
      %3665 = vmatprep.subr.mxu0 0.0
      %3666 = vmatpush1.msra.mxu0 0.0
      %3667 = vmatprep.subr.mxu0 0.0
      %3668 = vmatpush1.msra.mxu0 0.0
      %3669 = vmatprep.subr.mxu0 0.0
      %3670 = vmatpush1.msra.mxu0 0.0
      %3671 = vmatprep.subr.mxu0 0.0
      %3672 = vmatpush1.msra.mxu0 0.0
      %3673 = vmatprep.subr.mxu0 0.0
      %3674 = vmatpush1.msra.mxu0 0.0
      %3675 = vmatprep.subr.mxu0 0.0
      %3676 = vmatpush1.msra.mxu0 0.0
      %3677 = vmatprep.subr.mxu0 0.0
      %3678 = vmatpush1.msra.mxu0 0.0
      %3679 = vmatprep.subr.mxu0 0.0
      %3680 = vmatpush1.msra.mxu0 0.0
      %3681 = vmatprep.subr.mxu0 0.0
      %3682 = vmatpush1.msra.mxu0 0.0
      %3683 = vmatprep.subr.mxu0 0.0
      %3684 = vmatpush1.msra.mxu0 0.0
      %3685 = vmatprep.subr.mxu0 0.0
      %3686 = vmatpush1.msra.mxu0 0.0
      %3687 = vmatprep.subr.mxu0 0.0
      %3688 = vmatpush1.msra.mxu0 0.0
      %3689 = vmatprep.subr.mxu0 0.0
      %3690 = vmatpush1.msra.mxu0 0.0
      %3691 = vmatprep.subr.mxu0 0.0
      %3692 = vmatpush1.msra.mxu0 0.0
      %3693 = vmatprep.subr.mxu0 0.0
      %3694 = vmatpush1.msra.mxu0 0.0
      %3695 = vmatprep.subr.mxu0 0.0
      %3696 = vmatpush1.msra.mxu0 0.0
      %3697 = vmatprep.subr.mxu0 0.0
      %3698 = vmatpush1.msra.mxu0 0.0
      %3699 = vmatprep.subr.mxu0 0.0
      %3700 = vmatpush1.msra.mxu0 0.0
      %3701 = vmatprep.subr.mxu0 0.0
      %3702 = vmatpush1.msra.mxu0 0.0
      %3703 = vmatprep.subr.mxu0 0.0
      %3704 = vmatpush1.msra.mxu0 0.0
      %3705 = vmatprep.subr.mxu0 0.0
      %3706 = vmatpush1.msra.mxu0 0.0
      %3707 = vmatprep.subr.mxu0 0.0
      %3708 = vmatpush1.msra.mxu0 0.0
      %3709 = vmatprep.subr.mxu0 0.0
      %3710 = vmatpush1.msra.mxu0 0.0
      %3711 = vmatprep.subr.mxu0 0.0
      %3712 = vmatpush1.msra.mxu0 0.0
      %3713 = vmatprep.subr.mxu0 0.0
      %3714 = vmatpush1.msra.mxu0 0.0
      %3715 = vmatprep.mubr.f32.mxu0 0.0
      %3716 = vmatmul.mubr.f32.gmra.mrb[0].mxu0 %v3649
      %v3717 = vpop.f32.mrb[0].mxu0
      %v3718 = vadd.f32 0.0, %v3717
      %v3719 = vpop.f32.mrb[0].mxu0
      %3720 = vdwg.mxu0
      %s3721 = scalar_lea.vmem %s8, 32
      %v3722 = vld [vmem:[%s3721] sm:$0xff]
      %v3723 = vld [vmem:[%s3721 + $0x8] sm:$0xff]
      %v3725 = vsel %vm3413, %v3718, 0
      %3727 = vmatprep.subr.mxu0 0.0
      %3728 = vmatpush1.msra.mxu0 %v3722
      %3729 = vmatprep.subr.mxu0 0.0
      %3730 = vmatpush1.msra.mxu0 %v3723
      %3731 = vmatprep.subr.mxu0 0.0
      %3732 = vmatpush1.msra.mxu0 0.0
      %3733 = vmatprep.subr.mxu0 0.0
      %3734 = vmatpush1.msra.mxu0 0.0
      %3735 = vmatprep.subr.mxu0 0.0
      %3736 = vmatpush1.msra.mxu0 0.0
      %3737 = vmatprep.subr.mxu0 0.0
      %3738 = vmatpush1.msra.mxu0 0.0
      %3739 = vmatprep.subr.mxu0 0.0
      %3740 = vmatpush1.msra.mxu0 0.0
      %3741 = vmatprep.subr.mxu0 0.0
      %3742 = vmatpush1.msra.mxu0 0.0
      %3743 = vmatprep.subr.mxu0 0.0
      %3744 = vmatpush1.msra.mxu0 0.0
      %3745 = vmatprep.subr.mxu0 0.0
      %3746 = vmatpush1.msra.mxu0 0.0
      %3747 = vmatprep.subr.mxu0 0.0
      %3748 = vmatpush1.msra.mxu0 0.0
      %3749 = vmatprep.subr.mxu0 0.0
      %3750 = vmatpush1.msra.mxu0 0.0
      %3751 = vmatprep.subr.mxu0 0.0
      %3752 = vmatpush1.msra.mxu0 0.0
      %3753 = vmatprep.subr.mxu0 0.0
      %3754 = vmatpush1.msra.mxu0 0.0
      %3755 = vmatprep.subr.mxu0 0.0
      %3756 = vmatpush1.msra.mxu0 0.0
      %3757 = vmatprep.subr.mxu0 0.0
      %3758 = vmatpush1.msra.mxu0 0.0
      %3759 = vmatprep.subr.mxu0 0.0
      %3760 = vmatpush1.msra.mxu0 0.0
      %3761 = vmatprep.subr.mxu0 0.0
      %3762 = vmatpush1.msra.mxu0 0.0
      %3763 = vmatprep.subr.mxu0 0.0
      %3764 = vmatpush1.msra.mxu0 0.0
      %3765 = vmatprep.subr.mxu0 0.0
      %3766 = vmatpush1.msra.mxu0 0.0
      %3767 = vmatprep.subr.mxu0 0.0
      %3768 = vmatpush1.msra.mxu0 0.0
      %3769 = vmatprep.subr.mxu0 0.0
      %3770 = vmatpush1.msra.mxu0 0.0
      %3771 = vmatprep.subr.mxu0 0.0
      %3772 = vmatpush1.msra.mxu0 0.0
      %3773 = vmatprep.subr.mxu0 0.0
      %3774 = vmatpush1.msra.mxu0 0.0
      %3775 = vmatprep.subr.mxu0 0.0
      %3776 = vmatpush1.msra.mxu0 0.0
      %3777 = vmatprep.subr.mxu0 0.0
      %3778 = vmatpush1.msra.mxu0 0.0
      %3779 = vmatprep.subr.mxu0 0.0
      %3780 = vmatpush1.msra.mxu0 0.0
      %3781 = vmatprep.subr.mxu0 0.0
      %3782 = vmatpush1.msra.mxu0 0.0
      %3783 = vmatprep.subr.mxu0 0.0
      %3784 = vmatpush1.msra.mxu0 0.0
      %3785 = vmatprep.subr.mxu0 0.0
      %3786 = vmatpush1.msra.mxu0 0.0
      %3787 = vmatprep.subr.mxu0 0.0
      %3788 = vmatpush1.msra.mxu0 0.0
      %3789 = vmatprep.subr.mxu0 0.0
      %3790 = vmatpush1.msra.mxu0 0.0
      %3791 = vmatprep.mubr.f32.mxu0 0.0
      %3792 = vmatmul.mubr.f32.gmra.mrb[0].mxu0 %v3725
      %v3793 = vpop.f32.mrb[0].mxu0
      %v3794 = vadd.f32 0.0, %v3793
      %v3795 = vpop.f32.mrb[0].mxu0
      %3796 = vdwg.mxu0
      %v3797 = vadd.f32 %v3645, %v3794
      %v3798 = vmax.f32 %v3797, 0.0
      %v3799 = vld [vmem:[%s12] sm:$0x1]
      %v3800 = vld [vmem:[%s10] sm:$0xff]
      %v3801 = vld [vmem:[%s10 + $0x8] sm:$0x7f]
      %v3803 = vsel %vm1920, %v3800, 0
      %v3806 = vsel %vm1920, %v3801, 0
      %v3809 = vsel %vm1924, %v3798, 0
      %3811 = vmatprep.subr.mxu0 0.0
      %3812 = vmatpush1.msra.mxu0 %v3809
      %3813 = vmatprep.subr.mxu0 0.0
      %3814 = vmatpush1.msra.mxu0 0.0
      %3815 = vmatprep.subr.mxu0 0.0
      %3816 = vmatpush1.msra.mxu0 0.0
      %3817 = vmatprep.subr.mxu0 0.0
      %3818 = vmatpush1.msra.mxu0 0.0
      %3819 = vmatprep.subr.mxu0 0.0
      %3820 = vmatpush1.msra.mxu0 0.0
      %3821 = vmatprep.subr.mxu0 0.0
      %3822 = vmatpush1.msra.mxu0 0.0
      %3823 = vmatprep.subr.mxu0 0.0
      %3824 = vmatpush1.msra.mxu0 0.0
      %3825 = vmatprep.subr.mxu0 0.0
      %3826 = vmatpush1.msra.mxu0 0.0
      %3827 = vmatprep.subr.mxu0 0.0
      %3828 = vmatpush1.msra.mxu0 0.0
      %3829 = vmatprep.subr.mxu0 0.0
      %3830 = vmatpush1.msra.mxu0 0.0
      %3831 = vmatprep.subr.mxu0 0.0
      %3832 = vmatpush1.msra.mxu0 0.0
      %3833 = vmatprep.subr.mxu0 0.0
      %3834 = vmatpush1.msra.mxu0 0.0
      %3835 = vmatprep.subr.mxu0 0.0
      %3836 = vmatpush1.msra.mxu0 0.0
      %3837 = vmatprep.subr.mxu0 0.0
      %3838 = vmatpush1.msra.mxu0 0.0
      %3839 = vmatprep.subr.mxu0 0.0
      %3840 = vmatpush1.msra.mxu0 0.0
      %3841 = vmatprep.subr.mxu0 0.0
      %3842 = vmatpush1.msra.mxu0 0.0
      %3843 = vmatprep.subr.mxu0 0.0
      %3844 = vmatpush1.msra.mxu0 0.0
      %3845 = vmatprep.subr.mxu0 0.0
      %3846 = vmatpush1.msra.mxu0 0.0
      %3847 = vmatprep.subr.mxu0 0.0
      %3848 = vmatpush1.msra.mxu0 0.0
      %3849 = vmatprep.subr.mxu0 0.0
      %3850 = vmatpush1.msra.mxu0 0.0
      %3851 = vmatprep.subr.mxu0 0.0
      %3852 = vmatpush1.msra.mxu0 0.0
      %3853 = vmatprep.subr.mxu0 0.0
      %3854 = vmatpush1.msra.mxu0 0.0
      %3855 = vmatprep.subr.mxu0 0.0
      %3856 = vmatpush1.msra.mxu0 0.0
      %3857 = vmatprep.subr.mxu0 0.0
      %3858 = vmatpush1.msra.mxu0 0.0
      %3859 = vmatprep.subr.mxu0 0.0
      %3860 = vmatpush1.msra.mxu0 0.0
      %3861 = vmatprep.subr.mxu0 0.0
      %3862 = vmatpush1.msra.mxu0 0.0
      %3863 = vmatprep.subr.mxu0 0.0
      %3864 = vmatpush1.msra.mxu0 0.0
      %3865 = vmatprep.subr.mxu0 0.0
      %3866 = vmatpush1.msra.mxu0 0.0
      %3867 = vmatprep.subr.mxu0 0.0
      %3868 = vmatpush1.msra.mxu0 0.0
      %3869 = vmatprep.subr.mxu0 0.0
      %3870 = vmatpush1.msra.mxu0 0.0
      %3871 = vmatprep.subr.mxu0 0.0
      %3872 = vmatpush1.msra.mxu0 0.0
      %3873 = vmatprep.subr.mxu0 0.0
      %3874 = vmatpush1.msra.mxu0 0.0
      %3875 = vmatprep.mubr.f32.mxu0 0.0
      %3876 = vmatmul.mubr.f32.gmra.mrb[0].mxu0 %v3803
      %v3877 = vpop.f32.mrb[0].mxu0
      %v3878 = vadd.f32 0.0, %v3877
      %v3879 = vpop.f32.mrb[0].mxu0
      %3880 = vmatprep.mubr.f32.mxu0 0.0
      %3881 = vmatmul.mubr.f32.gmra.mrb[0].mxu0 %v3806
      %v3882 = vpop.f32.mrb[0].mxu0
      %v3883 = vadd.f32 0.0, %v3882
      %v3884 = vpop.f32.mrb[0].mxu0
      %3885 = vdwg.mxu0
      %v3886 = vld [vmem:[%s11] sm:$0xff]
      %v3887 = vld [vmem:[%s11 + $0x8] sm:$0xff]
      %v3888 = vld [vmem:[%s11 + $0x10] sm:$0xff]
      %v3889 = vld [vmem:[%s11 + $0x18] sm:$0xff]
      %v3890 = vld [vmem:[%s11 + $0x20] sm:$0xff]
      %v3891 = vld [vmem:[%s11 + $0x28] sm:$0xff]
      %v3892 = vld [vmem:[%s11 + $0x30] sm:$0xff]
      %v3893 = vld [vmem:[%s11 + $0x38] sm:$0xff]
      %v3894 = vld [vmem:[%s11 + $0x40] sm:$0xff]
      %v3895 = vld [vmem:[%s11 + $0x48] sm:$0xff]
      %v3897 = vsel %vm2159, %v3878, 0
      %v3900 = vsel %vm2159, %v3883, 0
      %3902 = vmatprep.subr.mxu0 0.0
      %3903 = vmatpush1.msra.mxu0 %v3886
      %3904 = vmatprep.subr.mxu0 0.0
      %3905 = vmatpush1.msra.mxu0 %v3887
      %3906 = vmatprep.subr.mxu0 0.0
      %3907 = vmatpush1.msra.mxu0 %v3888
      %3908 = vmatprep.subr.mxu0 0.0
      %3909 = vmatpush1.msra.mxu0 %v3889
      %3910 = vmatprep.subr.mxu0 0.0
      %3911 = vmatpush1.msra.mxu0 %v3890
      %3912 = vmatprep.subr.mxu0 0.0
      %3913 = vmatpush1.msra.mxu0 %v3891
      %3914 = vmatprep.subr.mxu0 0.0
      %3915 = vmatpush1.msra.mxu0 %v3892
      %3916 = vmatprep.subr.mxu0 0.0
      %3917 = vmatpush1.msra.mxu0 %v3893
      %3918 = vmatprep.subr.mxu0 0.0
      %3919 = vmatpush1.msra.mxu0 %v3894
      %3920 = vmatprep.subr.mxu0 0.0
      %3921 = vmatpush1.msra.mxu0 %v3895
      %3922 = vmatprep.subr.mxu0 0.0
      %3923 = vmatpush1.msra.mxu0 0.0
      %3924 = vmatprep.subr.mxu0 0.0
      %3925 = vmatpush1.msra.mxu0 0.0
      %3926 = vmatprep.subr.mxu0 0.0
      %3927 = vmatpush1.msra.mxu0 0.0
      %3928 = vmatprep.subr.mxu0 0.0
      %3929 = vmatpush1.msra.mxu0 0.0
      %3930 = vmatprep.subr.mxu0 0.0
      %3931 = vmatpush1.msra.mxu0 0.0
      %3932 = vmatprep.subr.mxu0 0.0
      %3933 = vmatpush1.msra.mxu0 0.0
      %3934 = vmatprep.subr.mxu0 0.0
      %3935 = vmatpush1.msra.mxu0 0.0
      %3936 = vmatprep.subr.mxu0 0.0
      %3937 = vmatpush1.msra.mxu0 0.0
      %3938 = vmatprep.subr.mxu0 0.0
      %3939 = vmatpush1.msra.mxu0 0.0
      %3940 = vmatprep.subr.mxu0 0.0
      %3941 = vmatpush1.msra.mxu0 0.0
      %3942 = vmatprep.subr.mxu0 0.0
      %3943 = vmatpush1.msra.mxu0 0.0
      %3944 = vmatprep.subr.mxu0 0.0
      %3945 = vmatpush1.msra.mxu0 0.0
      %3946 = vmatprep.subr.mxu0 0.0
      %3947 = vmatpush1.msra.mxu0 0.0
      %3948 = vmatprep.subr.mxu0 0.0
      %3949 = vmatpush1.msra.mxu0 0.0
      %3950 = vmatprep.subr.mxu0 0.0
      %3951 = vmatpush1.msra.mxu0 0.0
      %3952 = vmatprep.subr.mxu0 0.0
      %3953 = vmatpush1.msra.mxu0 0.0
      %3954 = vmatprep.subr.mxu0 0.0
      %3955 = vmatpush1.msra.mxu0 0.0
      %3956 = vmatprep.subr.mxu0 0.0
      %3957 = vmatpush1.msra.mxu0 0.0
      %3958 = vmatprep.subr.mxu0 0.0
      %3959 = vmatpush1.msra.mxu0 0.0
      %3960 = vmatprep.subr.mxu0 0.0
      %3961 = vmatpush1.msra.mxu0 0.0
      %3962 = vmatprep.subr.mxu0 0.0
      %3963 = vmatpush1.msra.mxu0 0.0
      %3964 = vmatprep.subr.mxu0 0.0
      %3965 = vmatpush1.msra.mxu0 0.0
      %3966 = vmatprep.mubr.f32.mxu0 0.0
      %3967 = vmatmul.mubr.f32.gmra.mrb[0].mxu0 %v3897
      %v3968 = vpop.f32.mrb[0].mxu0
      %v3969 = vadd.f32 0.0, %v3968
      %v3970 = vpop.f32.mrb[0].mxu0
      %3971 = vmatprep.mubr.f32.mxu0 0.0
      %3972 = vmatmul.mubr.f32.gmra.mrb[0].mxu0 %v3900
      %v3973 = vpop.f32.mrb[0].mxu0
      %v3974 = vadd.f32 0.0, %v3973
      %v3975 = vpop.f32.mrb[0].mxu0
      %3976 = vdwg.mxu0
      %v3978 = vlaneseq
      %v3979 = vshrl.u32 %v3978, 7
      %v3980 = vsub.s32 0, %v3979
      %v3981 = vrot.slane %v3799, %v3980
      %v3983 = vadd.f32 %v3981, %v3969
      %v3984 = vadd.f32 %v3981, %v3974
      %s3985 = scalar_lea.vmem %s10, 16
      %v3986 = vld [vmem:[%s3985] sm:$0xff]
      %v3987 = vld [vmem:[%s3985 + $0x8] sm:$0x7f]
      %v3989 = vsel %vm1920, %v3986, 0
      %v3992 = vsel %vm1920, %v3987, 0
      %3994 = vmatprep.subr.mxu0 0.0
      %3995 = vmatpush1.msra.mxu0 %v3809
      %3996 = vmatprep.subr.mxu0 0.0
      %3997 = vmatpush1.msra.mxu0 0.0
      %3998 = vmatprep.subr.mxu0 0.0
      %3999 = vmatpush1.msra.mxu0 0.0
      %4000 = vmatprep.subr.mxu0 0.0
      %4001 = vmatpush1.msra.mxu0 0.0
      %4002 = vmatprep.subr.mxu0 0.0
      %4003 = vmatpush1.msra.mxu0 0.0
      %4004 = vmatprep.subr.mxu0 0.0
      %4005 = vmatpush1.msra.mxu0 0.0
      %4006 = vmatprep.subr.mxu0 0.0
      %4007 = vmatpush1.msra.mxu0 0.0
      %4008 = vmatprep.subr.mxu0 0.0
      %4009 = vmatpush1.msra.mxu0 0.0
      %4010 = vmatprep.subr.mxu0 0.0
      %4011 = vmatpush1.msra.mxu0 0.0
      %4012 = vmatprep.subr.mxu0 0.0
      %4013 = vmatpush1.msra.mxu0 0.0
      %4014 = vmatprep.subr.mxu0 0.0
      %4015 = vmatpush1.msra.mxu0 0.0
      %4016 = vmatprep.subr.mxu0 0.0
      %4017 = vmatpush1.msra.mxu0 0.0
      %4018 = vmatprep.subr.mxu0 0.0
      %4019 = vmatpush1.msra.mxu0 0.0
      %4020 = vmatprep.subr.mxu0 0.0
      %4021 = vmatpush1.msra.mxu0 0.0
      %4022 = vmatprep.subr.mxu0 0.0
      %4023 = vmatpush1.msra.mxu0 0.0
      %4024 = vmatprep.subr.mxu0 0.0
      %4025 = vmatpush1.msra.mxu0 0.0
      %4026 = vmatprep.subr.mxu0 0.0
      %4027 = vmatpush1.msra.mxu0 0.0
      %4028 = vmatprep.subr.mxu0 0.0
      %4029 = vmatpush1.msra.mxu0 0.0
      %4030 = vmatprep.subr.mxu0 0.0
      %4031 = vmatpush1.msra.mxu0 0.0
      %4032 = vmatprep.subr.mxu0 0.0
      %4033 = vmatpush1.msra.mxu0 0.0
      %4034 = vmatprep.subr.mxu0 0.0
      %4035 = vmatpush1.msra.mxu0 0.0
      %4036 = vmatprep.subr.mxu0 0.0
      %4037 = vmatpush1.msra.mxu0 0.0
      %4038 = vmatprep.subr.mxu0 0.0
      %4039 = vmatpush1.msra.mxu0 0.0
      %4040 = vmatprep.subr.mxu0 0.0
      %4041 = vmatpush1.msra.mxu0 0.0
      %4042 = vmatprep.subr.mxu0 0.0
      %4043 = vmatpush1.msra.mxu0 0.0
      %4044 = vmatprep.subr.mxu0 0.0
      %4045 = vmatpush1.msra.mxu0 0.0
      %4046 = vmatprep.subr.mxu0 0.0
      %4047 = vmatpush1.msra.mxu0 0.0
      %4048 = vmatprep.subr.mxu0 0.0
      %4049 = vmatpush1.msra.mxu0 0.0
      %4050 = vmatprep.subr.mxu0 0.0
      %4051 = vmatpush1.msra.mxu0 0.0
      %4052 = vmatprep.subr.mxu0 0.0
      %4053 = vmatpush1.msra.mxu0 0.0
      %4054 = vmatprep.subr.mxu0 0.0
      %4055 = vmatpush1.msra.mxu0 0.0
      %4056 = vmatprep.subr.mxu0 0.0
      %4057 = vmatpush1.msra.mxu0 0.0
      %4058 = vmatprep.mubr.f32.mxu0 0.0
      %4059 = vmatmul.mubr.f32.gmra.mrb[0].mxu0 %v3989
      %v4060 = vpop.f32.mrb[0].mxu0
      %v4061 = vadd.f32 0.0, %v4060
      %v4062 = vpop.f32.mrb[0].mxu0
      %4063 = vmatprep.mubr.f32.mxu0 0.0
      %4064 = vmatmul.mubr.f32.gmra.mrb[0].mxu0 %v3992
      %v4065 = vpop.f32.mrb[0].mxu0
      %v4066 = vadd.f32 0.0, %v4065
      %v4067 = vpop.f32.mrb[0].mxu0
      %4068 = vdwg.mxu0
      %s4069 = scalar_lea.vmem %s11, 80
      %v4070 = vld [vmem:[%s4069] sm:$0xff]
      %v4071 = vld [vmem:[%s4069 + $0x8] sm:$0xff]
      %v4072 = vld [vmem:[%s4069 + $0x10] sm:$0xff]
      %v4073 = vld [vmem:[%s4069 + $0x18] sm:$0xff]
      %v4074 = vld [vmem:[%s4069 + $0x20] sm:$0xff]
      %v4075 = vld [vmem:[%s4069 + $0x28] sm:$0xff]
      %v4076 = vld [vmem:[%s4069 + $0x30] sm:$0xff]
      %v4077 = vld [vmem:[%s4069 + $0x38] sm:$0xff]
      %v4078 = vld [vmem:[%s4069 + $0x40] sm:$0xff]
      %v4079 = vld [vmem:[%s4069 + $0x48] sm:$0xff]
      %v4081 = vsel %vm2159, %v4061, 0
      %v4084 = vsel %vm2159, %v4066, 0
      %4086 = vmatprep.subr.mxu0 0.0
      %4087 = vmatpush1.msra.mxu0 %v4070
      %4088 = vmatprep.subr.mxu0 0.0
      %4089 = vmatpush1.msra.mxu0 %v4071
      %4090 = vmatprep.subr.mxu0 0.0
      %4091 = vmatpush1.msra.mxu0 %v4072
      %4092 = vmatprep.subr.mxu0 0.0
      %4093 = vmatpush1.msra.mxu0 %v4073
      %4094 = vmatprep.subr.mxu0 0.0
      %4095 = vmatpush1.msra.mxu0 %v4074
      %4096 = vmatprep.subr.mxu0 0.0
      %4097 = vmatpush1.msra.mxu0 %v4075
      %4098 = vmatprep.subr.mxu0 0.0
      %4099 = vmatpush1.msra.mxu0 %v4076
      %4100 = vmatprep.subr.mxu0 0.0
      %4101 = vmatpush1.msra.mxu0 %v4077
      %4102 = vmatprep.subr.mxu0 0.0
      %4103 = vmatpush1.msra.mxu0 %v4078
      %4104 = vmatprep.subr.mxu0 0.0
      %4105 = vmatpush1.msra.mxu0 %v4079
      %4106 = vmatprep.subr.mxu0 0.0
      %4107 = vmatpush1.msra.mxu0 0.0
      %4108 = vmatprep.subr.mxu0 0.0
      %4109 = vmatpush1.msra.mxu0 0.0
      %4110 = vmatprep.subr.mxu0 0.0
      %4111 = vmatpush1.msra.mxu0 0.0
      %4112 = vmatprep.subr.mxu0 0.0
      %4113 = vmatpush1.msra.mxu0 0.0
      %4114 = vmatprep.subr.mxu0 0.0
      %4115 = vmatpush1.msra.mxu0 0.0
      %4116 = vmatprep.subr.mxu0 0.0
      %4117 = vmatpush1.msra.mxu0 0.0
      %4118 = vmatprep.subr.mxu0 0.0
      %4119 = vmatpush1.msra.mxu0 0.0
      %4120 = vmatprep.subr.mxu0 0.0
      %4121 = vmatpush1.msra.mxu0 0.0
      %4122 = vmatprep.subr.mxu0 0.0
      %4123 = vmatpush1.msra.mxu0 0.0
      %4124 = vmatprep.subr.mxu0 0.0
      %4125 = vmatpush1.msra.mxu0 0.0
      %4126 = vmatprep.subr.mxu0 0.0
      %4127 = vmatpush1.msra.mxu0 0.0
      %4128 = vmatprep.subr.mxu0 0.0
      %4129 = vmatpush1.msra.mxu0 0.0
      %4130 = vmatprep.subr.mxu0 0.0
      %4131 = vmatpush1.msra.mxu0 0.0
      %4132 = vmatprep.subr.mxu0 0.0
      %4133 = vmatpush1.msra.mxu0 0.0
      %4134 = vmatprep.subr.mxu0 0.0
      %4135 = vmatpush1.msra.mxu0 0.0
      %4136 = vmatprep.subr.mxu0 0.0
      %4137 = vmatpush1.msra.mxu0 0.0
      %4138 = vmatprep.subr.mxu0 0.0
      %4139 = vmatpush1.msra.mxu0 0.0
      %4140 = vmatprep.subr.mxu0 0.0
      %4141 = vmatpush1.msra.mxu0 0.0
      %4142 = vmatprep.subr.mxu0 0.0
      %4143 = vmatpush1.msra.mxu0 0.0
      %4144 = vmatprep.subr.mxu0 0.0
      %4145 = vmatpush1.msra.mxu0 0.0
      %4146 = vmatprep.subr.mxu0 0.0
      %4147 = vmatpush1.msra.mxu0 0.0
      %4148 = vmatprep.subr.mxu0 0.0
      %4149 = vmatpush1.msra.mxu0 0.0
      %4150 = vmatprep.mubr.f32.mxu0 0.0
      %4151 = vmatmul.mubr.f32.gmra.mrb[0].mxu0 %v4081
      %v4152 = vpop.f32.mrb[0].mxu0
      %v4153 = vadd.f32 0.0, %v4152
      %v4154 = vpop.f32.mrb[0].mxu0
      %4155 = vmatprep.mubr.f32.mxu0 0.0
      %4156 = vmatmul.mubr.f32.gmra.mrb[0].mxu0 %v4084
      %v4157 = vpop.f32.mrb[0].mxu0
      %v4158 = vadd.f32 0.0, %v4157
      %v4159 = vpop.f32.mrb[0].mxu0
      %4160 = vdwg.mxu0
      %v4161 = vadd.f32 %v3983, %v4153
      %v4162 = vadd.f32 %v3984, %v4158
      %s4163 = scalar_lea.vmem %s10, 32
      %v4164 = vld [vmem:[%s4163] sm:$0xff]
      %v4165 = vld [vmem:[%s4163 + $0x8] sm:$0x7f]
      %v4167 = vsel %vm1920, %v4164, 0
      %v4170 = vsel %vm1920, %v4165, 0
      %4172 = vmatprep.subr.mxu0 0.0
      %4173 = vmatpush1.msra.mxu0 %v3809
      %4174 = vmatprep.subr.mxu0 0.0
      %4175 = vmatpush1.msra.mxu0 0.0
      %4176 = vmatprep.subr.mxu0 0.0
      %4177 = vmatpush1.msra.mxu0 0.0
      %4178 = vmatprep.subr.mxu0 0.0
      %4179 = vmatpush1.msra.mxu0 0.0
      %4180 = vmatprep.subr.mxu0 0.0
      %4181 = vmatpush1.msra.mxu0 0.0
      %4182 = vmatprep.subr.mxu0 0.0
      %4183 = vmatpush1.msra.mxu0 0.0
      %4184 = vmatprep.subr.mxu0 0.0
      %4185 = vmatpush1.msra.mxu0 0.0
      %4186 = vmatprep.subr.mxu0 0.0
      %4187 = vmatpush1.msra.mxu0 0.0
      %4188 = vmatprep.subr.mxu0 0.0
      %4189 = vmatpush1.msra.mxu0 0.0
      %4190 = vmatprep.subr.mxu0 0.0
      %4191 = vmatpush1.msra.mxu0 0.0
      %4192 = vmatprep.subr.mxu0 0.0
      %4193 = vmatpush1.msra.mxu0 0.0
      %4194 = vmatprep.subr.mxu0 0.0
      %4195 = vmatpush1.msra.mxu0 0.0
      %4196 = vmatprep.subr.mxu0 0.0
      %4197 = vmatpush1.msra.mxu0 0.0
      %4198 = vmatprep.subr.mxu0 0.0
      %4199 = vmatpush1.msra.mxu0 0.0
      %4200 = vmatprep.subr.mxu0 0.0
      %4201 = vmatpush1.msra.mxu0 0.0
      %4202 = vmatprep.subr.mxu0 0.0
      %4203 = vmatpush1.msra.mxu0 0.0
      %4204 = vmatprep.subr.mxu0 0.0
      %4205 = vmatpush1.msra.mxu0 0.0
      %4206 = vmatprep.subr.mxu0 0.0
      %4207 = vmatpush1.msra.mxu0 0.0
      %4208 = vmatprep.subr.mxu0 0.0
      %4209 = vmatpush1.msra.mxu0 0.0
      %4210 = vmatprep.subr.mxu0 0.0
      %4211 = vmatpush1.msra.mxu0 0.0
      %4212 = vmatprep.subr.mxu0 0.0
      %4213 = vmatpush1.msra.mxu0 0.0
      %4214 = vmatprep.subr.mxu0 0.0
      %4215 = vmatpush1.msra.mxu0 0.0
      %4216 = vmatprep.subr.mxu0 0.0
      %4217 = vmatpush1.msra.mxu0 0.0
      %4218 = vmatprep.subr.mxu0 0.0
      %4219 = vmatpush1.msra.mxu0 0.0
      %4220 = vmatprep.subr.mxu0 0.0
      %4221 = vmatpush1.msra.mxu0 0.0
      %4222 = vmatprep.subr.mxu0 0.0
      %4223 = vmatpush1.msra.mxu0 0.0
      %4224 = vmatprep.subr.mxu0 0.0
      %4225 = vmatpush1.msra.mxu0 0.0
      %4226 = vmatprep.subr.mxu0 0.0
      %4227 = vmatpush1.msra.mxu0 0.0
      %4228 = vmatprep.subr.mxu0 0.0
      %4229 = vmatpush1.msra.mxu0 0.0
      %4230 = vmatprep.subr.mxu0 0.0
      %4231 = vmatpush1.msra.mxu0 0.0
      %4232 = vmatprep.subr.mxu0 0.0
      %4233 = vmatpush1.msra.mxu0 0.0
      %4234 = vmatprep.subr.mxu0 0.0
      %4235 = vmatpush1.msra.mxu0 0.0
      %4236 = vmatprep.mubr.f32.mxu0 0.0
      %4237 = vmatmul.mubr.f32.gmra.mrb[0].mxu0 %v4167
      %v4238 = vpop.f32.mrb[0].mxu0
      %v4239 = vadd.f32 0.0, %v4238
      %v4240 = vpop.f32.mrb[0].mxu0
      %4241 = vmatprep.mubr.f32.mxu0 0.0
      %4242 = vmatmul.mubr.f32.gmra.mrb[0].mxu0 %v4170
      %v4243 = vpop.f32.mrb[0].mxu0
      %v4244 = vadd.f32 0.0, %v4243
      %v4245 = vpop.f32.mrb[0].mxu0
      %4246 = vdwg.mxu0
      %s4247 = scalar_lea.vmem %s11, 160
      %v4248 = vld [vmem:[%s4247] sm:$0xff]
      %v4249 = vld [vmem:[%s4247 + $0x8] sm:$0xff]
      %v4250 = vld [vmem:[%s4247 + $0x10] sm:$0xff]
      %v4251 = vld [vmem:[%s4247 + $0x18] sm:$0xff]
      %v4252 = vld [vmem:[%s4247 + $0x20] sm:$0xff]
      %v4253 = vld [vmem:[%s4247 + $0x28] sm:$0xff]
      %v4254 = vld [vmem:[%s4247 + $0x30] sm:$0xff]
      %v4255 = vld [vmem:[%s4247 + $0x38] sm:$0xff]
      %v4256 = vld [vmem:[%s4247 + $0x40] sm:$0xff]
      %v4257 = vld [vmem:[%s4247 + $0x48] sm:$0xff]
      %v4259 = vsel %vm2159, %v4239, 0
      %v4262 = vsel %vm2159, %v4244, 0
      %4264 = vmatprep.subr.mxu0 0.0
      %4265 = vmatpush1.msra.mxu0 %v4248
      %4266 = vmatprep.subr.mxu0 0.0
      %4267 = vmatpush1.msra.mxu0 %v4249
      %4268 = vmatprep.subr.mxu0 0.0
      %4269 = vmatpush1.msra.mxu0 %v4250
      %4270 = vmatprep.subr.mxu0 0.0
      %4271 = vmatpush1.msra.mxu0 %v4251
      %4272 = vmatprep.subr.mxu0 0.0
      %4273 = vmatpush1.msra.mxu0 %v4252
      %4274 = vmatprep.subr.mxu0 0.0
      %4275 = vmatpush1.msra.mxu0 %v4253
      %4276 = vmatprep.subr.mxu0 0.0
      %4277 = vmatpush1.msra.mxu0 %v4254
      %4278 = vmatprep.subr.mxu0 0.0
      %4279 = vmatpush1.msra.mxu0 %v4255
      %4280 = vmatprep.subr.mxu0 0.0
      %4281 = vmatpush1.msra.mxu0 %v4256
      %4282 = vmatprep.subr.mxu0 0.0
      %4283 = vmatpush1.msra.mxu0 %v4257
      %4284 = vmatprep.subr.mxu0 0.0
      %4285 = vmatpush1.msra.mxu0 0.0
      %4286 = vmatprep.subr.mxu0 0.0
      %4287 = vmatpush1.msra.mxu0 0.0
      %4288 = vmatprep.subr.mxu0 0.0
      %4289 = vmatpush1.msra.mxu0 0.0
      %4290 = vmatprep.subr.mxu0 0.0
      %4291 = vmatpush1.msra.mxu0 0.0
      %4292 = vmatprep.subr.mxu0 0.0
      %4293 = vmatpush1.msra.mxu0 0.0
      %4294 = vmatprep.subr.mxu0 0.0
      %4295 = vmatpush1.msra.mxu0 0.0
      %4296 = vmatprep.subr.mxu0 0.0
      %4297 = vmatpush1.msra.mxu0 0.0
      %4298 = vmatprep.subr.mxu0 0.0
      %4299 = vmatpush1.msra.mxu0 0.0
      %4300 = vmatprep.subr.mxu0 0.0
      %4301 = vmatpush1.msra.mxu0 0.0
      %4302 = vmatprep.subr.mxu0 0.0
      %4303 = vmatpush1.msra.mxu0 0.0
      %4304 = vmatprep.subr.mxu0 0.0
      %4305 = vmatpush1.msra.mxu0 0.0
      %4306 = vmatprep.subr.mxu0 0.0
      %4307 = vmatpush1.msra.mxu0 0.0
      %4308 = vmatprep.subr.mxu0 0.0
      %4309 = vmatpush1.msra.mxu0 0.0
      %4310 = vmatprep.subr.mxu0 0.0
      %4311 = vmatpush1.msra.mxu0 0.0
      %4312 = vmatprep.subr.mxu0 0.0
      %4313 = vmatpush1.msra.mxu0 0.0
      %4314 = vmatprep.subr.mxu0 0.0
      %4315 = vmatpush1.msra.mxu0 0.0
      %4316 = vmatprep.subr.mxu0 0.0
      %4317 = vmatpush1.msra.mxu0 0.0
      %4318 = vmatprep.subr.mxu0 0.0
      %4319 = vmatpush1.msra.mxu0 0.0
      %4320 = vmatprep.subr.mxu0 0.0
      %4321 = vmatpush1.msra.mxu0 0.0
      %4322 = vmatprep.subr.mxu0 0.0
      %4323 = vmatpush1.msra.mxu0 0.0
      %4324 = vmatprep.subr.mxu0 0.0
      %4325 = vmatpush1.msra.mxu0 0.0
      %4326 = vmatprep.subr.mxu0 0.0
      %4327 = vmatpush1.msra.mxu0 0.0
      %4328 = vmatprep.mubr.f32.mxu0 0.0
      %4329 = vmatmul.mubr.f32.gmra.mrb[0].mxu0 %v4259
      %v4330 = vpop.f32.mrb[0].mxu0
      %v4331 = vadd.f32 0.0, %v4330
      %v4332 = vpop.f32.mrb[0].mxu0
      %4333 = vmatprep.mubr.f32.mxu0 0.0
      %4334 = vmatmul.mubr.f32.gmra.mrb[0].mxu0 %v4262
      %v4335 = vpop.f32.mrb[0].mxu0
      %v4336 = vadd.f32 0.0, %v4335
      %v4337 = vpop.f32.mrb[0].mxu0
      %4338 = vdwg.mxu0
      %v4339 = vadd.f32 %v4161, %v4331
      %v4340 = vadd.f32 %v4162, %v4336
      %s4341 = scalar_lea.vmem %s10, 48
      %v4342 = vld [vmem:[%s4341] sm:$0xff]
      %v4343 = vld [vmem:[%s4341 + $0x8] sm:$0x7f]
      %v4345 = vsel %vm1920, %v4342, 0
      %v4348 = vsel %vm1920, %v4343, 0
      %4350 = vmatprep.subr.mxu0 0.0
      %4351 = vmatpush1.msra.mxu0 %v3809
      %4352 = vmatprep.subr.mxu0 0.0
      %4353 = vmatpush1.msra.mxu0 0.0
      %4354 = vmatprep.subr.mxu0 0.0
      %4355 = vmatpush1.msra.mxu0 0.0
      %4356 = vmatprep.subr.mxu0 0.0
      %4357 = vmatpush1.msra.mxu0 0.0
      %4358 = vmatprep.subr.mxu0 0.0
      %4359 = vmatpush1.msra.mxu0 0.0
      %4360 = vmatprep.subr.mxu0 0.0
      %4361 = vmatpush1.msra.mxu0 0.0
      %4362 = vmatprep.subr.mxu0 0.0
      %4363 = vmatpush1.msra.mxu0 0.0
      %4364 = vmatprep.subr.mxu0 0.0
      %4365 = vmatpush1.msra.mxu0 0.0
      %4366 = vmatprep.subr.mxu0 0.0
      %4367 = vmatpush1.msra.mxu0 0.0
      %4368 = vmatprep.subr.mxu0 0.0
      %4369 = vmatpush1.msra.mxu0 0.0
      %4370 = vmatprep.subr.mxu0 0.0
      %4371 = vmatpush1.msra.mxu0 0.0
      %4372 = vmatprep.subr.mxu0 0.0
      %4373 = vmatpush1.msra.mxu0 0.0
      %4374 = vmatprep.subr.mxu0 0.0
      %4375 = vmatpush1.msra.mxu0 0.0
      %4376 = vmatprep.subr.mxu0 0.0
      %4377 = vmatpush1.msra.mxu0 0.0
      %4378 = vmatprep.subr.mxu0 0.0
      %4379 = vmatpush1.msra.mxu0 0.0
      %4380 = vmatprep.subr.mxu0 0.0
      %4381 = vmatpush1.msra.mxu0 0.0
      %4382 = vmatprep.subr.mxu0 0.0
      %4383 = vmatpush1.msra.mxu0 0.0
      %4384 = vmatprep.subr.mxu0 0.0
      %4385 = vmatpush1.msra.mxu0 0.0
      %4386 = vmatprep.subr.mxu0 0.0
      %4387 = vmatpush1.msra.mxu0 0.0
      %4388 = vmatprep.subr.mxu0 0.0
      %4389 = vmatpush1.msra.mxu0 0.0
      %4390 = vmatprep.subr.mxu0 0.0
      %4391 = vmatpush1.msra.mxu0 0.0
      %4392 = vmatprep.subr.mxu0 0.0
      %4393 = vmatpush1.msra.mxu0 0.0
      %4394 = vmatprep.subr.mxu0 0.0
      %4395 = vmatpush1.msra.mxu0 0.0
      %4396 = vmatprep.subr.mxu0 0.0
      %4397 = vmatpush1.msra.mxu0 0.0
      %4398 = vmatprep.subr.mxu0 0.0
      %4399 = vmatpush1.msra.mxu0 0.0
      %4400 = vmatprep.subr.mxu0 0.0
      %4401 = vmatpush1.msra.mxu0 0.0
      %4402 = vmatprep.subr.mxu0 0.0
      %4403 = vmatpush1.msra.mxu0 0.0
      %4404 = vmatprep.subr.mxu0 0.0
      %4405 = vmatpush1.msra.mxu0 0.0
      %4406 = vmatprep.subr.mxu0 0.0
      %4407 = vmatpush1.msra.mxu0 0.0
      %4408 = vmatprep.subr.mxu0 0.0
      %4409 = vmatpush1.msra.mxu0 0.0
      %4410 = vmatprep.subr.mxu0 0.0
      %4411 = vmatpush1.msra.mxu0 0.0
      %4412 = vmatprep.subr.mxu0 0.0
      %4413 = vmatpush1.msra.mxu0 0.0
      %4414 = vmatprep.mubr.f32.mxu0 0.0
      %4415 = vmatmul.mubr.f32.gmra.mrb[0].mxu0 %v4345
      %v4416 = vpop.f32.mrb[0].mxu0
      %v4417 = vadd.f32 0.0, %v4416
      %v4418 = vpop.f32.mrb[0].mxu0
      %4419 = vmatprep.mubr.f32.mxu0 0.0
      %4420 = vmatmul.mubr.f32.gmra.mrb[0].mxu0 %v4348
      %v4421 = vpop.f32.mrb[0].mxu0
      %v4422 = vadd.f32 0.0, %v4421
      %v4423 = vpop.f32.mrb[0].mxu0
      %4424 = vdwg.mxu0
      %s4425 = scalar_lea.vmem %s11, 240
      %v4426 = vld [vmem:[%s4425] sm:$0xff]
      %v4427 = vld [vmem:[%s4425 + $0x8] sm:$0xff]
      %v4428 = vld [vmem:[%s4425 + $0x10] sm:$0xff]
      %v4429 = vld [vmem:[%s4425 + $0x18] sm:$0xff]
      %v4430 = vld [vmem:[%s4425 + $0x20] sm:$0xff]
      %v4431 = vld [vmem:[%s4425 + $0x28] sm:$0xff]
      %v4432 = vld [vmem:[%s4425 + $0x30] sm:$0xff]
      %v4433 = vld [vmem:[%s4425 + $0x38] sm:$0xff]
      %v4434 = vld [vmem:[%s4425 + $0x40] sm:$0xff]
      %v4435 = vld [vmem:[%s4425 + $0x48] sm:$0xff]
      %v4437 = vsel %vm2159, %v4417, 0
      %v4440 = vsel %vm2159, %v4422, 0
      %4442 = vmatprep.subr.mxu0 0.0
      %4443 = vmatpush1.msra.mxu0 %v4426
      %4444 = vmatprep.subr.mxu0 0.0
      %4445 = vmatpush1.msra.mxu0 %v4427
      %4446 = vmatprep.subr.mxu0 0.0
      %4447 = vmatpush1.msra.mxu0 %v4428
      %4448 = vmatprep.subr.mxu0 0.0
      %4449 = vmatpush1.msra.mxu0 %v4429
      %4450 = vmatprep.subr.mxu0 0.0
      %4451 = vmatpush1.msra.mxu0 %v4430
      %4452 = vmatprep.subr.mxu0 0.0
      %4453 = vmatpush1.msra.mxu0 %v4431
      %4454 = vmatprep.subr.mxu0 0.0
      %4455 = vmatpush1.msra.mxu0 %v4432
      %4456 = vmatprep.subr.mxu0 0.0
      %4457 = vmatpush1.msra.mxu0 %v4433
      %4458 = vmatprep.subr.mxu0 0.0
      %4459 = vmatpush1.msra.mxu0 %v4434
      %4460 = vmatprep.subr.mxu0 0.0
      %4461 = vmatpush1.msra.mxu0 %v4435
      %4462 = vmatprep.subr.mxu0 0.0
      %4463 = vmatpush1.msra.mxu0 0.0
      %4464 = vmatprep.subr.mxu0 0.0
      %4465 = vmatpush1.msra.mxu0 0.0
      %4466 = vmatprep.subr.mxu0 0.0
      %4467 = vmatpush1.msra.mxu0 0.0
      %4468 = vmatprep.subr.mxu0 0.0
      %4469 = vmatpush1.msra.mxu0 0.0
      %4470 = vmatprep.subr.mxu0 0.0
      %4471 = vmatpush1.msra.mxu0 0.0
      %4472 = vmatprep.subr.mxu0 0.0
      %4473 = vmatpush1.msra.mxu0 0.0
      %4474 = vmatprep.subr.mxu0 0.0
      %4475 = vmatpush1.msra.mxu0 0.0
      %4476 = vmatprep.subr.mxu0 0.0
      %4477 = vmatpush1.msra.mxu0 0.0
      %4478 = vmatprep.subr.mxu0 0.0
      %4479 = vmatpush1.msra.mxu0 0.0
      %4480 = vmatprep.subr.mxu0 0.0
      %4481 = vmatpush1.msra.mxu0 0.0
      %4482 = vmatprep.subr.mxu0 0.0
      %4483 = vmatpush1.msra.mxu0 0.0
      %4484 = vmatprep.subr.mxu0 0.0
      %4485 = vmatpush1.msra.mxu0 0.0
      %4486 = vmatprep.subr.mxu0 0.0
      %4487 = vmatpush1.msra.mxu0 0.0
      %4488 = vmatprep.subr.mxu0 0.0
      %4489 = vmatpush1.msra.mxu0 0.0
      %4490 = vmatprep.subr.mxu0 0.0
      %4491 = vmatpush1.msra.mxu0 0.0
      %4492 = vmatprep.subr.mxu0 0.0
      %4493 = vmatpush1.msra.mxu0 0.0
      %4494 = vmatprep.subr.mxu0 0.0
      %4495 = vmatpush1.msra.mxu0 0.0
      %4496 = vmatprep.subr.mxu0 0.0
      %4497 = vmatpush1.msra.mxu0 0.0
      %4498 = vmatprep.subr.mxu0 0.0
      %4499 = vmatpush1.msra.mxu0 0.0
      %4500 = vmatprep.subr.mxu0 0.0
      %4501 = vmatpush1.msra.mxu0 0.0
      %4502 = vmatprep.subr.mxu0 0.0
      %4503 = vmatpush1.msra.mxu0 0.0
      %4504 = vmatprep.subr.mxu0 0.0
      %4505 = vmatpush1.msra.mxu0 0.0
      %4506 = vmatprep.mubr.f32.mxu0 0.0
      %4507 = vmatmul.mubr.f32.gmra.mrb[0].mxu0 %v4437
      %v4508 = vpop.f32.mrb[0].mxu0
      %v4509 = vadd.f32 0.0, %v4508
      %v4510 = vpop.f32.mrb[0].mxu0
      %4511 = vmatprep.mubr.f32.mxu0 0.0
      %4512 = vmatmul.mubr.f32.gmra.mrb[0].mxu0 %v4440
      %v4513 = vpop.f32.mrb[0].mxu0
      %v4514 = vadd.f32 0.0, %v4513
      %v4515 = vpop.f32.mrb[0].mxu0
      %4516 = vdwg.mxu0
      %v4517 = vadd.f32 %v4339, %v4509
      %v4518 = vadd.f32 %v4340, %v4514
      %s4519 = scalar_lea.vmem %s10, 64
      %v4520 = vld [vmem:[%s4519] sm:$0xff]
      %v4521 = vld [vmem:[%s4519 + $0x8] sm:$0x7f]
      %v4523 = vsel %vm1920, %v4520, 0
      %v4526 = vsel %vm1920, %v4521, 0
      %4528 = vmatprep.subr.mxu0 0.0
      %4529 = vmatpush1.msra.mxu0 %v3809
      %4530 = vmatprep.subr.mxu0 0.0
      %4531 = vmatpush1.msra.mxu0 0.0
      %4532 = vmatprep.subr.mxu0 0.0
      %4533 = vmatpush1.msra.mxu0 0.0
      %4534 = vmatprep.subr.mxu0 0.0
      %4535 = vmatpush1.msra.mxu0 0.0
      %4536 = vmatprep.subr.mxu0 0.0
      %4537 = vmatpush1.msra.mxu0 0.0
      %4538 = vmatprep.subr.mxu0 0.0
      %4539 = vmatpush1.msra.mxu0 0.0
      %4540 = vmatprep.subr.mxu0 0.0
      %4541 = vmatpush1.msra.mxu0 0.0
      %4542 = vmatprep.subr.mxu0 0.0
      %4543 = vmatpush1.msra.mxu0 0.0
      %4544 = vmatprep.subr.mxu0 0.0
      %4545 = vmatpush1.msra.mxu0 0.0
      %4546 = vmatprep.subr.mxu0 0.0
      %4547 = vmatpush1.msra.mxu0 0.0
      %4548 = vmatprep.subr.mxu0 0.0
      %4549 = vmatpush1.msra.mxu0 0.0
      %4550 = vmatprep.subr.mxu0 0.0
      %4551 = vmatpush1.msra.mxu0 0.0
      %4552 = vmatprep.subr.mxu0 0.0
      %4553 = vmatpush1.msra.mxu0 0.0
      %4554 = vmatprep.subr.mxu0 0.0
      %4555 = vmatpush1.msra.mxu0 0.0
      %4556 = vmatprep.subr.mxu0 0.0
      %4557 = vmatpush1.msra.mxu0 0.0
      %4558 = vmatprep.subr.mxu0 0.0
      %4559 = vmatpush1.msra.mxu0 0.0
      %4560 = vmatprep.subr.mxu0 0.0
      %4561 = vmatpush1.msra.mxu0 0.0
      %4562 = vmatprep.subr.mxu0 0.0
      %4563 = vmatpush1.msra.mxu0 0.0
      %4564 = vmatprep.subr.mxu0 0.0
      %4565 = vmatpush1.msra.mxu0 0.0
      %4566 = vmatprep.subr.mxu0 0.0
      %4567 = vmatpush1.msra.mxu0 0.0
      %4568 = vmatprep.subr.mxu0 0.0
      %4569 = vmatpush1.msra.mxu0 0.0
      %4570 = vmatprep.subr.mxu0 0.0
      %4571 = vmatpush1.msra.mxu0 0.0
      %4572 = vmatprep.subr.mxu0 0.0
      %4573 = vmatpush1.msra.mxu0 0.0
      %4574 = vmatprep.subr.mxu0 0.0
      %4575 = vmatpush1.msra.mxu0 0.0
      %4576 = vmatprep.subr.mxu0 0.0
      %4577 = vmatpush1.msra.mxu0 0.0
      %4578 = vmatprep.subr.mxu0 0.0
      %4579 = vmatpush1.msra.mxu0 0.0
      %4580 = vmatprep.subr.mxu0 0.0
      %4581 = vmatpush1.msra.mxu0 0.0
      %4582 = vmatprep.subr.mxu0 0.0
      %4583 = vmatpush1.msra.mxu0 0.0
      %4584 = vmatprep.subr.mxu0 0.0
      %4585 = vmatpush1.msra.mxu0 0.0
      %4586 = vmatprep.subr.mxu0 0.0
      %4587 = vmatpush1.msra.mxu0 0.0
      %4588 = vmatprep.subr.mxu0 0.0
      %4589 = vmatpush1.msra.mxu0 0.0
      %4590 = vmatprep.subr.mxu0 0.0
      %4591 = vmatpush1.msra.mxu0 0.0
      %4592 = vmatprep.mubr.f32.mxu0 0.0
      %4593 = vmatmul.mubr.f32.gmra.mrb[0].mxu0 %v4523
      %v4594 = vpop.f32.mrb[0].mxu0
      %v4595 = vadd.f32 0.0, %v4594
      %v4596 = vpop.f32.mrb[0].mxu0
      %4597 = vmatprep.mubr.f32.mxu0 0.0
      %4598 = vmatmul.mubr.f32.gmra.mrb[0].mxu0 %v4526
      %v4599 = vpop.f32.mrb[0].mxu0
      %v4600 = vadd.f32 0.0, %v4599
      %v4601 = vpop.f32.mrb[0].mxu0
      %4602 = vdwg.mxu0
      %s4603 = scalar_lea.vmem %s11, 320
      %v4604 = vld [vmem:[%s4603] sm:$0xff]
      %v4605 = vld [vmem:[%s4603 + $0x8] sm:$0xff]
      %v4606 = vld [vmem:[%s4603 + $0x10] sm:$0xff]
      %v4607 = vld [vmem:[%s4603 + $0x18] sm:$0xff]
      %v4608 = vld [vmem:[%s4603 + $0x20] sm:$0xff]
      %v4609 = vld [vmem:[%s4603 + $0x28] sm:$0xff]
      %v4610 = vld [vmem:[%s4603 + $0x30] sm:$0xff]
      %v4611 = vld [vmem:[%s4603 + $0x38] sm:$0xff]
      %v4612 = vld [vmem:[%s4603 + $0x40] sm:$0xff]
      %v4613 = vld [vmem:[%s4603 + $0x48] sm:$0xff]
      %v4615 = vsel %vm2159, %v4595, 0
      %v4618 = vsel %vm2159, %v4600, 0
      %4620 = vmatprep.subr.mxu0 0.0
      %4621 = vmatpush1.msra.mxu0 %v4604
      %4622 = vmatprep.subr.mxu0 0.0
      %4623 = vmatpush1.msra.mxu0 %v4605
      %4624 = vmatprep.subr.mxu0 0.0
      %4625 = vmatpush1.msra.mxu0 %v4606
      %4626 = vmatprep.subr.mxu0 0.0
      %4627 = vmatpush1.msra.mxu0 %v4607
      %4628 = vmatprep.subr.mxu0 0.0
      %4629 = vmatpush1.msra.mxu0 %v4608
      %4630 = vmatprep.subr.mxu0 0.0
      %4631 = vmatpush1.msra.mxu0 %v4609
      %4632 = vmatprep.subr.mxu0 0.0
      %4633 = vmatpush1.msra.mxu0 %v4610
      %4634 = vmatprep.subr.mxu0 0.0
      %4635 = vmatpush1.msra.mxu0 %v4611
      %4636 = vmatprep.subr.mxu0 0.0
      %4637 = vmatpush1.msra.mxu0 %v4612
      %4638 = vmatprep.subr.mxu0 0.0
      %4639 = vmatpush1.msra.mxu0 %v4613
      %4640 = vmatprep.subr.mxu0 0.0
      %4641 = vmatpush1.msra.mxu0 0.0
      %4642 = vmatprep.subr.mxu0 0.0
      %4643 = vmatpush1.msra.mxu0 0.0
      %4644 = vmatprep.subr.mxu0 0.0
      %4645 = vmatpush1.msra.mxu0 0.0
      %4646 = vmatprep.subr.mxu0 0.0
      %4647 = vmatpush1.msra.mxu0 0.0
      %4648 = vmatprep.subr.mxu0 0.0
      %4649 = vmatpush1.msra.mxu0 0.0
      %4650 = vmatprep.subr.mxu0 0.0
      %4651 = vmatpush1.msra.mxu0 0.0
      %4652 = vmatprep.subr.mxu0 0.0
      %4653 = vmatpush1.msra.mxu0 0.0
      %4654 = vmatprep.subr.mxu0 0.0
      %4655 = vmatpush1.msra.mxu0 0.0
      %4656 = vmatprep.subr.mxu0 0.0
      %4657 = vmatpush1.msra.mxu0 0.0
      %4658 = vmatprep.subr.mxu0 0.0
      %4659 = vmatpush1.msra.mxu0 0.0
      %4660 = vmatprep.subr.mxu0 0.0
      %4661 = vmatpush1.msra.mxu0 0.0
      %4662 = vmatprep.subr.mxu0 0.0
      %4663 = vmatpush1.msra.mxu0 0.0
      %4664 = vmatprep.subr.mxu0 0.0
      %4665 = vmatpush1.msra.mxu0 0.0
      %4666 = vmatprep.subr.mxu0 0.0
      %4667 = vmatpush1.msra.mxu0 0.0
      %4668 = vmatprep.subr.mxu0 0.0
      %4669 = vmatpush1.msra.mxu0 0.0
      %4670 = vmatprep.subr.mxu0 0.0
      %4671 = vmatpush1.msra.mxu0 0.0
      %4672 = vmatprep.subr.mxu0 0.0
      %4673 = vmatpush1.msra.mxu0 0.0
      %4674 = vmatprep.subr.mxu0 0.0
      %4675 = vmatpush1.msra.mxu0 0.0
      %4676 = vmatprep.subr.mxu0 0.0
      %4677 = vmatpush1.msra.mxu0 0.0
      %4678 = vmatprep.subr.mxu0 0.0
      %4679 = vmatpush1.msra.mxu0 0.0
      %4680 = vmatprep.subr.mxu0 0.0
      %4681 = vmatpush1.msra.mxu0 0.0
      %4682 = vmatprep.subr.mxu0 0.0
      %4683 = vmatpush1.msra.mxu0 0.0
      %4684 = vmatprep.mubr.f32.mxu0 0.0
      %4685 = vmatmul.mubr.f32.gmra.mrb[0].mxu0 %v4615
      %v4686 = vpop.f32.mrb[0].mxu0
      %v4687 = vadd.f32 0.0, %v4686
      %v4688 = vpop.f32.mrb[0].mxu0
      %4689 = vmatprep.mubr.f32.mxu0 0.0
      %4690 = vmatmul.mubr.f32.gmra.mrb[0].mxu0 %v4618
      %v4691 = vpop.f32.mrb[0].mxu0
      %v4692 = vadd.f32 0.0, %v4691
      %v4693 = vpop.f32.mrb[0].mxu0
      %4694 = vdwg.mxu0
      %v4695 = vadd.f32 %v4517, %v4687
      %v4696 = vadd.f32 %v4518, %v4692
      %v4697 = vmax.f32 %v4695, 0.0
      %v4698 = vmax.f32 %v4696, 0.0
      %v4699 = vld [vmem:[%s15] sm:$0x1]
      %v4700 = vld [vmem:[%s13] sm:$0xff]
      %v4701 = vld [vmem:[%s13 + $0x8] sm:$0xff]
      %v4702 = vld [vmem:[%s13 + $0x10] sm:$0xff]
      %v4703 = vld [vmem:[%s13 + $0x18] sm:$0xf]
      %vm4704 = vcmask 121856
      %v4706 = vsel %vm4704, %v4700, 0
      %v4709 = vsel %vm4704, %v4701, 0
      %v4712 = vsel %vm4704, %v4702, 0
      %v4715 = vsel %vm4704, %v4703, 0
      %vm4717 = vcmask 1046528
      %v4719 = vsel %vm4717, %v4698, 0
      %4721 = vmatprep.subr.mxu0 0.0
      %4722 = vmatpush1.msra.mxu0 %v4697
      %4723 = vmatprep.subr.mxu0 0.0
      %4724 = vmatpush1.msra.mxu0 %v4719
      %4725 = vmatprep.subr.mxu0 0.0
      %4726 = vmatpush1.msra.mxu0 0.0
      %4727 = vmatprep.subr.mxu0 0.0
      %4728 = vmatpush1.msra.mxu0 0.0
      %4729 = vmatprep.subr.mxu0 0.0
      %4730 = vmatpush1.msra.mxu0 0.0
      %4731 = vmatprep.subr.mxu0 0.0
      %4732 = vmatpush1.msra.mxu0 0.0
      %4733 = vmatprep.subr.mxu0 0.0
      %4734 = vmatpush1.msra.mxu0 0.0
      %4735 = vmatprep.subr.mxu0 0.0
      %4736 = vmatpush1.msra.mxu0 0.0
      %4737 = vmatprep.subr.mxu0 0.0
      %4738 = vmatpush1.msra.mxu0 0.0
      %4739 = vmatprep.subr.mxu0 0.0
      %4740 = vmatpush1.msra.mxu0 0.0
      %4741 = vmatprep.subr.mxu0 0.0
      %4742 = vmatpush1.msra.mxu0 0.0
      %4743 = vmatprep.subr.mxu0 0.0
      %4744 = vmatpush1.msra.mxu0 0.0
      %4745 = vmatprep.subr.mxu0 0.0
      %4746 = vmatpush1.msra.mxu0 0.0
      %4747 = vmatprep.subr.mxu0 0.0
      %4748 = vmatpush1.msra.mxu0 0.0
      %4749 = vmatprep.subr.mxu0 0.0
      %4750 = vmatpush1.msra.mxu0 0.0
      %4751 = vmatprep.subr.mxu0 0.0
      %4752 = vmatpush1.msra.mxu0 0.0
      %4753 = vmatprep.subr.mxu0 0.0
      %4754 = vmatpush1.msra.mxu0 0.0
      %4755 = vmatprep.subr.mxu0 0.0
      %4756 = vmatpush1.msra.mxu0 0.0
      %4757 = vmatprep.subr.mxu0 0.0
      %4758 = vmatpush1.msra.mxu0 0.0
      %4759 = vmatprep.subr.mxu0 0.0
      %4760 = vmatpush1.msra.mxu0 0.0
      %4761 = vmatprep.subr.mxu0 0.0
      %4762 = vmatpush1.msra.mxu0 0.0
      %4763 = vmatprep.subr.mxu0 0.0
      %4764 = vmatpush1.msra.mxu0 0.0
      %4765 = vmatprep.subr.mxu0 0.0
      %4766 = vmatpush1.msra.mxu0 0.0
      %4767 = vmatprep.subr.mxu0 0.0
      %4768 = vmatpush1.msra.mxu0 0.0
      %4769 = vmatprep.subr.mxu0 0.0
      %4770 = vmatpush1.msra.mxu0 0.0
      %4771 = vmatprep.subr.mxu0 0.0
      %4772 = vmatpush1.msra.mxu0 0.0
      %4773 = vmatprep.subr.mxu0 0.0
      %4774 = vmatpush1.msra.mxu0 0.0
      %4775 = vmatprep.subr.mxu0 0.0
      %4776 = vmatpush1.msra.mxu0 0.0
      %4777 = vmatprep.subr.mxu0 0.0
      %4778 = vmatpush1.msra.mxu0 0.0
      %4779 = vmatprep.subr.mxu0 0.0
      %4780 = vmatpush1.msra.mxu0 0.0
      %4781 = vmatprep.subr.mxu0 0.0
      %4782 = vmatpush1.msra.mxu0 0.0
      %4783 = vmatprep.subr.mxu0 0.0
      %4784 = vmatpush1.msra.mxu0 0.0
      %4785 = vmatprep.mubr.f32.mxu0 0.0
      %4786 = vmatmul.mubr.f32.gmra.mrb[0].mxu0 %v4706
      %v4787 = vpop.f32.mrb[0].mxu0
      %v4788 = vadd.f32 0.0, %v4787
      %v4789 = vpop.f32.mrb[0].mxu0
      %4790 = vmatprep.mubr.f32.mxu0 0.0
      %4791 = vmatmul.mubr.f32.gmra.mrb[0].mxu0 %v4709
      %v4792 = vpop.f32.mrb[0].mxu0
      %v4793 = vadd.f32 0.0, %v4792
      %v4794 = vpop.f32.mrb[0].mxu0
      %4795 = vmatprep.mubr.f32.mxu0 0.0
      %4796 = vmatmul.mubr.f32.gmra.mrb[0].mxu0 %v4712
      %v4797 = vpop.f32.mrb[0].mxu0
      %v4798 = vadd.f32 0.0, %v4797
      %v4799 = vpop.f32.mrb[0].mxu0
      %4800 = vmatprep.mubr.f32.mxu0 0.0
      %4801 = vmatmul.mubr.f32.gmra.mrb[0].mxu0 %v4715
      %v4802 = vpop.f32.mrb[0].mxu0
      %v4803 = vadd.f32 0.0, %v4802
      %v4804 = vpop.f32.mrb[0].mxu0
      %4805 = vdwg.mxu0
      %v4806 = vld [vmem:[%s14] sm:$0xff]
      %v4807 = vld [vmem:[%s14 + $0x8] sm:$0xff]
      %v4808 = vld [vmem:[%s14 + $0x10] sm:$0xff]
      %v4809 = vld [vmem:[%s14 + $0x18] sm:$0xff]
      %v4810 = vld [vmem:[%s14 + $0x20] sm:$0xff]
      %v4811 = vld [vmem:[%s14 + $0x28] sm:$0xff]
      %v4812 = vld [vmem:[%s14 + $0x30] sm:$0xff]
      %v4813 = vld [vmem:[%s14 + $0x38] sm:$0xff]
      %v4814 = vld [vmem:[%s14 + $0x40] sm:$0xff]
      %v4815 = vld [vmem:[%s14 + $0x48] sm:$0xff]
      %v4816 = vld [vmem:[%s14 + $0x50] sm:$0xff]
      %v4817 = vld [vmem:[%s14 + $0x58] sm:$0xff]
      %v4818 = vld [vmem:[%s14 + $0x60] sm:$0xff]
      %v4819 = vld [vmem:[%s14 + $0x68] sm:$0xff]
      %v4820 = vld [vmem:[%s14 + $0x70] sm:$0xff]
      %vm4821 = vcmask 982016
      %v4823 = vsel %vm4821, %v4788, 0
      %v4826 = vsel %vm4821, %v4793, 0
      %v4829 = vsel %vm4821, %v4798, 0
      %v4832 = vsel %vm4821, %v4803, 0
      %4834 = vmatprep.subr.mxu0 0.0
      %4835 = vmatpush1.msra.mxu0 %v4806
      %4836 = vmatprep.subr.mxu0 0.0
      %4837 = vmatpush1.msra.mxu0 %v4807
      %4838 = vmatprep.subr.mxu0 0.0
      %4839 = vmatpush1.msra.mxu0 %v4808
      %4840 = vmatprep.subr.mxu0 0.0
      %4841 = vmatpush1.msra.mxu0 %v4809
      %4842 = vmatprep.subr.mxu0 0.0
      %4843 = vmatpush1.msra.mxu0 %v4810
      %4844 = vmatprep.subr.mxu0 0.0
      %4845 = vmatpush1.msra.mxu0 %v4811
      %4846 = vmatprep.subr.mxu0 0.0
      %4847 = vmatpush1.msra.mxu0 %v4812
      %4848 = vmatprep.subr.mxu0 0.0
      %4849 = vmatpush1.msra.mxu0 %v4813
      %4850 = vmatprep.subr.mxu0 0.0
      %4851 = vmatpush1.msra.mxu0 %v4814
      %4852 = vmatprep.subr.mxu0 0.0
      %4853 = vmatpush1.msra.mxu0 %v4815
      %4854 = vmatprep.subr.mxu0 0.0
      %4855 = vmatpush1.msra.mxu0 %v4816
      %4856 = vmatprep.subr.mxu0 0.0
      %4857 = vmatpush1.msra.mxu0 %v4817
      %4858 = vmatprep.subr.mxu0 0.0
      %4859 = vmatpush1.msra.mxu0 %v4818
      %4860 = vmatprep.subr.mxu0 0.0
      %4861 = vmatpush1.msra.mxu0 %v4819
      %4862 = vmatprep.subr.mxu0 0.0
      %4863 = vmatpush1.msra.mxu0 %v4820
      %4864 = vmatprep.subr.mxu0 0.0
      %4865 = vmatpush1.msra.mxu0 0.0
      %4866 = vmatprep.subr.mxu0 0.0
      %4867 = vmatpush1.msra.mxu0 0.0
      %4868 = vmatprep.subr.mxu0 0.0
      %4869 = vmatpush1.msra.mxu0 0.0
      %4870 = vmatprep.subr.mxu0 0.0
      %4871 = vmatpush1.msra.mxu0 0.0
      %4872 = vmatprep.subr.mxu0 0.0
      %4873 = vmatpush1.msra.mxu0 0.0
      %4874 = vmatprep.subr.mxu0 0.0
      %4875 = vmatpush1.msra.mxu0 0.0
      %4876 = vmatprep.subr.mxu0 0.0
      %4877 = vmatpush1.msra.mxu0 0.0
      %4878 = vmatprep.subr.mxu0 0.0
      %4879 = vmatpush1.msra.mxu0 0.0
      %4880 = vmatprep.subr.mxu0 0.0
      %4881 = vmatpush1.msra.mxu0 0.0
      %4882 = vmatprep.subr.mxu0 0.0
      %4883 = vmatpush1.msra.mxu0 0.0
      %4884 = vmatprep.subr.mxu0 0.0
      %4885 = vmatpush1.msra.mxu0 0.0
      %4886 = vmatprep.subr.mxu0 0.0
      %4887 = vmatpush1.msra.mxu0 0.0
      %4888 = vmatprep.subr.mxu0 0.0
      %4889 = vmatpush1.msra.mxu0 0.0
      %4890 = vmatprep.subr.mxu0 0.0
      %4891 = vmatpush1.msra.mxu0 0.0
      %4892 = vmatprep.subr.mxu0 0.0
      %4893 = vmatpush1.msra.mxu0 0.0
      %4894 = vmatprep.subr.mxu0 0.0
      %4895 = vmatpush1.msra.mxu0 0.0
      %4896 = vmatprep.subr.mxu0 0.0
      %4897 = vmatpush1.msra.mxu0 0.0
      %4898 = vmatprep.mubr.f32.mxu0 0.0
      %4899 = vmatmul.mubr.f32.gmra.mrb[0].mxu0 %v4823
      %v4900 = vpop.f32.mrb[0].mxu0
      %v4901 = vadd.f32 0.0, %v4900
      %v4902 = vpop.f32.mrb[0].mxu0
      %4903 = vmatprep.mubr.f32.mxu0 0.0
      %4904 = vmatmul.mubr.f32.gmra.mrb[0].mxu0 %v4826
      %v4905 = vpop.f32.mrb[0].mxu0
      %v4906 = vadd.f32 0.0, %v4905
      %v4907 = vpop.f32.mrb[0].mxu0
      %4908 = vmatprep.mubr.f32.mxu0 0.0
      %4909 = vmatmul.mubr.f32.gmra.mrb[0].mxu0 %v4829
      %v4910 = vpop.f32.mrb[0].mxu0
      %v4911 = vadd.f32 0.0, %v4910
      %v4912 = vpop.f32.mrb[0].mxu0
      %4913 = vmatprep.mubr.f32.mxu0 0.0
      %4914 = vmatmul.mubr.f32.gmra.mrb[0].mxu0 %v4832
      %v4915 = vpop.f32.mrb[0].mxu0
      %v4916 = vadd.f32 0.0, %v4915
      %v4917 = vpop.f32.mrb[0].mxu0
      %4918 = vdwg.mxu0
      %v4920 = vlaneseq
      %v4921 = vshrl.u32 %v4920, 7
      %v4922 = vsub.s32 0, %v4921
      %v4923 = vrot.slane %v4699, %v4922
      %v4925 = vadd.f32 %v4923, %v4901
      %v4926 = vadd.f32 %v4923, %v4906
      %v4927 = vadd.f32 %v4923, %v4911
      %v4928 = vadd.f32 %v4923, %v4916
      %s4929 = scalar_lea.vmem %s13, 32
      %v4930 = vld [vmem:[%s4929] sm:$0xff]
      %v4931 = vld [vmem:[%s4929 + $0x8] sm:$0xff]
      %v4932 = vld [vmem:[%s4929 + $0x10] sm:$0xff]
      %v4933 = vld [vmem:[%s4929 + $0x18] sm:$0xf]
      %v4935 = vsel %vm4704, %v4930, 0
      %v4938 = vsel %vm4704, %v4931, 0
      %v4941 = vsel %vm4704, %v4932, 0
      %v4944 = vsel %vm4704, %v4933, 0
      %4946 = vmatprep.subr.mxu0 0.0
      %4947 = vmatpush1.msra.mxu0 %v4697
      %4948 = vmatprep.subr.mxu0 0.0
      %4949 = vmatpush1.msra.mxu0 %v4719
      %4950 = vmatprep.subr.mxu0 0.0
      %4951 = vmatpush1.msra.mxu0 0.0
      %4952 = vmatprep.subr.mxu0 0.0
      %4953 = vmatpush1.msra.mxu0 0.0
      %4954 = vmatprep.subr.mxu0 0.0
      %4955 = vmatpush1.msra.mxu0 0.0
      %4956 = vmatprep.subr.mxu0 0.0
      %4957 = vmatpush1.msra.mxu0 0.0
      %4958 = vmatprep.subr.mxu0 0.0
      %4959 = vmatpush1.msra.mxu0 0.0
      %4960 = vmatprep.subr.mxu0 0.0
      %4961 = vmatpush1.msra.mxu0 0.0
      %4962 = vmatprep.subr.mxu0 0.0
      %4963 = vmatpush1.msra.mxu0 0.0
      %4964 = vmatprep.subr.mxu0 0.0
      %4965 = vmatpush1.msra.mxu0 0.0
      %4966 = vmatprep.subr.mxu0 0.0
      %4967 = vmatpush1.msra.mxu0 0.0
      %4968 = vmatprep.subr.mxu0 0.0
      %4969 = vmatpush1.msra.mxu0 0.0
      %4970 = vmatprep.subr.mxu0 0.0
      %4971 = vmatpush1.msra.mxu0 0.0
      %4972 = vmatprep.subr.mxu0 0.0
      %4973 = vmatpush1.msra.mxu0 0.0
      %4974 = vmatprep.subr.mxu0 0.0
      %4975 = vmatpush1.msra.mxu0 0.0
      %4976 = vmatprep.subr.mxu0 0.0
      %4977 = vmatpush1.msra.mxu0 0.0
      %4978 = vmatprep.subr.mxu0 0.0
      %4979 = vmatpush1.msra.mxu0 0.0
      %4980 = vmatprep.subr.mxu0 0.0
      %4981 = vmatpush1.msra.mxu0 0.0
      %4982 = vmatprep.subr.mxu0 0.0
      %4983 = vmatpush1.msra.mxu0 0.0
      %4984 = vmatprep.subr.mxu0 0.0
      %4985 = vmatpush1.msra.mxu0 0.0
      %4986 = vmatprep.subr.mxu0 0.0
      %4987 = vmatpush1.msra.mxu0 0.0
      %4988 = vmatprep.subr.mxu0 0.0
      %4989 = vmatpush1.msra.mxu0 0.0
      %4990 = vmatprep.subr.mxu0 0.0
      %4991 = vmatpush1.msra.mxu0 0.0
      %4992 = vmatprep.subr.mxu0 0.0
      %4993 = vmatpush1.msra.mxu0 0.0
      %4994 = vmatprep.subr.mxu0 0.0
      %4995 = vmatpush1.msra.mxu0 0.0
      %4996 = vmatprep.subr.mxu0 0.0
      %4997 = vmatpush1.msra.mxu0 0.0
      %4998 = vmatprep.subr.mxu0 0.0
      %4999 = vmatpush1.msra.mxu0 0.0
      %5000 = vmatprep.subr.mxu0 0.0
      %5001 = vmatpush1.msra.mxu0 0.0
      %5002 = vmatprep.subr.mxu0 0.0
      %5003 = vmatpush1.msra.mxu0 0.0
      %5004 = vmatprep.subr.mxu0 0.0
      %5005 = vmatpush1.msra.mxu0 0.0
      %5006 = vmatprep.subr.mxu0 0.0
      %5007 = vmatpush1.msra.mxu0 0.0
      %5008 = vmatprep.subr.mxu0 0.0
      %5009 = vmatpush1.msra.mxu0 0.0
      %5010 = vmatprep.mubr.f32.mxu0 0.0
      %5011 = vmatmul.mubr.f32.gmra.mrb[0].mxu0 %v4935
      %v5012 = vpop.f32.mrb[0].mxu0
      %v5013 = vadd.f32 0.0, %v5012
      %v5014 = vpop.f32.mrb[0].mxu0
      %5015 = vmatprep.mubr.f32.mxu0 0.0
      %5016 = vmatmul.mubr.f32.gmra.mrb[0].mxu0 %v4938
      %v5017 = vpop.f32.mrb[0].mxu0
      %v5018 = vadd.f32 0.0, %v5017
      %v5019 = vpop.f32.mrb[0].mxu0
      %5020 = vmatprep.mubr.f32.mxu0 0.0
      %5021 = vmatmul.mubr.f32.gmra.mrb[0].mxu0 %v4941
      %v5022 = vpop.f32.mrb[0].mxu0
      %v5023 = vadd.f32 0.0, %v5022
      %v5024 = vpop.f32.mrb[0].mxu0
      %5025 = vmatprep.mubr.f32.mxu0 0.0
      %5026 = vmatmul.mubr.f32.gmra.mrb[0].mxu0 %v4944
      %v5027 = vpop.f32.mrb[0].mxu0
      %v5028 = vadd.f32 0.0, %v5027
      %v5029 = vpop.f32.mrb[0].mxu0
      %5030 = vdwg.mxu0
      %s5031 = scalar_lea.vmem %s14, 120
      %v5032 = vld [vmem:[%s5031] sm:$0xff]
      %v5033 = vld [vmem:[%s5031 + $0x8] sm:$0xff]
      %v5034 = vld [vmem:[%s5031 + $0x10] sm:$0xff]
      %v5035 = vld [vmem:[%s5031 + $0x18] sm:$0xff]
      %v5036 = vld [vmem:[%s5031 + $0x20] sm:$0xff]
      %v5037 = vld [vmem:[%s5031 + $0x28] sm:$0xff]
      %v5038 = vld [vmem:[%s5031 + $0x30] sm:$0xff]
      %v5039 = vld [vmem:[%s5031 + $0x38] sm:$0xff]
      %v5040 = vld [vmem:[%s5031 + $0x40] sm:$0xff]
      %v5041 = vld [vmem:[%s5031 + $0x48] sm:$0xff]
      %v5042 = vld [vmem:[%s5031 + $0x50] sm:$0xff]
      %v5043 = vld [vmem:[%s5031 + $0x58] sm:$0xff]
      %v5044 = vld [vmem:[%s5031 + $0x60] sm:$0xff]
      %v5045 = vld [vmem:[%s5031 + $0x68] sm:$0xff]
      %v5046 = vld [vmem:[%s5031 + $0x70] sm:$0xff]
      %v5048 = vsel %vm4821, %v5013, 0
      %v5051 = vsel %vm4821, %v5018, 0
      %v5054 = vsel %vm4821, %v5023, 0
      %v5057 = vsel %vm4821, %v5028, 0
      %5059 = vmatprep.subr.mxu0 0.0
      %5060 = vmatpush1.msra.mxu0 %v5032
      %5061 = vmatprep.subr.mxu0 0.0
      %5062 = vmatpush1.msra.mxu0 %v5033
      %5063 = vmatprep.subr.mxu0 0.0
      %5064 = vmatpush1.msra.mxu0 %v5034
      %5065 = vmatprep.subr.mxu0 0.0
      %5066 = vmatpush1.msra.mxu0 %v5035
      %5067 = vmatprep.subr.mxu0 0.0
      %5068 = vmatpush1.msra.mxu0 %v5036
      %5069 = vmatprep.subr.mxu0 0.0
      %5070 = vmatpush1.msra.mxu0 %v5037
      %5071 = vmatprep.subr.mxu0 0.0
      %5072 = vmatpush1.msra.mxu0 %v5038
      %5073 = vmatprep.subr.mxu0 0.0
      %5074 = vmatpush1.msra.mxu0 %v5039
      %5075 = vmatprep.subr.mxu0 0.0
      %5076 = vmatpush1.msra.mxu0 %v5040
      %5077 = vmatprep.subr.mxu0 0.0
      %5078 = vmatpush1.msra.mxu0 %v5041
      %5079 = vmatprep.subr.mxu0 0.0
      %5080 = vmatpush1.msra.mxu0 %v5042
      %5081 = vmatprep.subr.mxu0 0.0
      %5082 = vmatpush1.msra.mxu0 %v5043
      %5083 = vmatprep.subr.mxu0 0.0
      %5084 = vmatpush1.msra.mxu0 %v5044
      %5085 = vmatprep.subr.mxu0 0.0
      %5086 = vmatpush1.msra.mxu0 %v5045
      %5087 = vmatprep.subr.mxu0 0.0
      %5088 = vmatpush1.msra.mxu0 %v5046
      %5089 = vmatprep.subr.mxu0 0.0
      %5090 = vmatpush1.msra.mxu0 0.0
      %5091 = vmatprep.subr.mxu0 0.0
      %5092 = vmatpush1.msra.mxu0 0.0
      %5093 = vmatprep.subr.mxu0 0.0
      %5094 = vmatpush1.msra.mxu0 0.0
      %5095 = vmatprep.subr.mxu0 0.0
      %5096 = vmatpush1.msra.mxu0 0.0
      %5097 = vmatprep.subr.mxu0 0.0
      %5098 = vmatpush1.msra.mxu0 0.0
      %5099 = vmatprep.subr.mxu0 0.0
      %5100 = vmatpush1.msra.mxu0 0.0
      %5101 = vmatprep.subr.mxu0 0.0
      %5102 = vmatpush1.msra.mxu0 0.0
      %5103 = vmatprep.subr.mxu0 0.0
      %5104 = vmatpush1.msra.mxu0 0.0
      %5105 = vmatprep.subr.mxu0 0.0
      %5106 = vmatpush1.msra.mxu0 0.0
      %5107 = vmatprep.subr.mxu0 0.0
      %5108 = vmatpush1.msra.mxu0 0.0
      %5109 = vmatprep.subr.mxu0 0.0
      %5110 = vmatpush1.msra.mxu0 0.0
      %5111 = vmatprep.subr.mxu0 0.0
      %5112 = vmatpush1.msra.mxu0 0.0
      %5113 = vmatprep.subr.mxu0 0.0
      %5114 = vmatpush1.msra.mxu0 0.0
      %5115 = vmatprep.subr.mxu0 0.0
      %5116 = vmatpush1.msra.mxu0 0.0
      %5117 = vmatprep.subr.mxu0 0.0
      %5118 = vmatpush1.msra.mxu0 0.0
      %5119 = vmatprep.subr.mxu0 0.0
      %5120 = vmatpush1.msra.mxu0 0.0
      %5121 = vmatprep.subr.mxu0 0.0
      %5122 = vmatpush1.msra.mxu0 0.0
      %5123 = vmatprep.mubr.f32.mxu0 0.0
      %5124 = vmatmul.mubr.f32.gmra.mrb[0].mxu0 %v5048
      %v5125 = vpop.f32.mrb[0].mxu0
      %v5126 = vadd.f32 0.0, %v5125
      %v5127 = vpop.f32.mrb[0].mxu0
      %5128 = vmatprep.mubr.f32.mxu0 0.0
      %5129 = vmatmul.mubr.f32.gmra.mrb[0].mxu0 %v5051
      %v5130 = vpop.f32.mrb[0].mxu0
      %v5131 = vadd.f32 0.0, %v5130
      %v5132 = vpop.f32.mrb[0].mxu0
      %5133 = vmatprep.mubr.f32.mxu0 0.0
      %5134 = vmatmul.mubr.f32.gmra.mrb[0].mxu0 %v5054
      %v5135 = vpop.f32.mrb[0].mxu0
      %v5136 = vadd.f32 0.0, %v5135
      %v5137 = vpop.f32.mrb[0].mxu0
      %5138 = vmatprep.mubr.f32.mxu0 0.0
      %5139 = vmatmul.mubr.f32.gmra.mrb[0].mxu0 %v5057
      %v5140 = vpop.f32.mrb[0].mxu0
      %v5141 = vadd.f32 0.0, %v5140
      %v5142 = vpop.f32.mrb[0].mxu0
      %5143 = vdwg.mxu0
      %v5144 = vadd.f32 %v4925, %v5126
      %v5145 = vadd.f32 %v4926, %v5131
      %v5146 = vadd.f32 %v4927, %v5136
      %v5147 = vadd.f32 %v4928, %v5141
      %v5148 = vtanh.pop %v5144
      %v5149 = vtanh.pop %v5145
      %v5150 = vtanh.pop %v5146
      %v5151 = vtanh.pop %v5147
      %5152 = vst.msk [vmem:[%s521] sm:$0xff] %vm527, %v5148
      %5153 = vst.msk [vmem:[%s521 + $0x8] sm:$0xff] %vm527, %v5149
      %5154 = vst.msk [vmem:[%s521 + $0x10] sm:$0xff] %vm527, %v5150
      %vm5155 = vcmask 224256
      %5156 = vst.msk [vmem:[%s521 + $0x18] sm:$0xf] %vm5155, %v5151
      %p5157 = scmp.lt.s32.totalorder %s27, 1
      %s5158 = scalar_select %p5157, %s27, 1
      %s5159 = smul.addr %s5158, 4
      %s5160 = smul.addr %s5159, 8
      %s5161 = scalar_lea.vmem %s16, %s5160
      // Predicated region
      $region85: #{autoencoder_forward.1} parent=83 // pred_check
        %p5162 = pneg %p386
      $region86: #{autoencoder_forward.1} parent=83 // pred_check_branch
        %5164 = sbr.rel (%p5162) target = $region88
      $region87: #{autoencoder_forward.1} parent=83 // pred_region
        _
      $region88: #{autoencoder_forward.1} parent=83 // pred_fallthru
        _
    $region84: #{autoencoder_forward.1} parent=5 // pred_fallthru
      _
    %p5165 = scmp.le.s32.totalorder 2, %s22
    // Predicated region
    $region89: #{autoencoder_forward.1} parent=5 // pred_check
      %p5166 = pneg %p5165
    $region90: #{autoencoder_forward.1} parent=5 // pred_check_branch
      %5168 = sbr.rel (%p5166) target = $region92
    $region91: #{autoencoder_forward.1} parent=5 // pred_region
      %s5169 = ssub.s32 %s22, 2
      // Predicated region
      $region93: #{autoencoder_forward.1} parent=91 // pred_check
        %p5170 = pneg %p392
      $region94: #{autoencoder_forward.1} parent=91 // pred_check_branch
        %5172 = sbr.rel (%p5170) target = $region96
      $region95: #{autoencoder_forward.1} parent=91 // pred_region
        %p5173 = scmp.lt.s32.totalorder %s28, 1
        %s5174 = scalar_select %p5173, %s28, 1
        %s5175 = smul.addr %s5174, 4
        %s5176 = smul.addr %s5175, 8
        %s5177 = scalar_lea.vmem %s16, %s5176
      $region96: #{autoencoder_forward.1} parent=91 // pred_fallthru
        _
    $region92: #{autoencoder_forward.1} parent=5 // pred_fallthru
      _
  $region6: #{autoencoder_forward.1} parent=0 // loop_footer
    %s26 = sadd.s32 1, %s22
  $region7: #{autoencoder_forward.1} parent=0 // loop_footer_branch
    %21 = sbr.rel target = $region3
  $region8: #{autoencoder_forward.1} parent=0 // loop_exit
    _

</llo_original>
